<compile_context>
chip_gen: v5e
topology: v5e:2x2
jax: 0.10.0
libtpu: 0.0.40
codegen_flags: <defaults>
</compile_context>

<pallas_src>
import jax
import jax.numpy as jnp
from jax.experimental import pallas as pl
from jax.experimental.pallas import tpu as pltpu

CIN_PAD = 8            # pad the 3 input channels up to 8 (zero columns)
C1, C2, C3 = 64, 128, 1024
F1, F2 = 512, 256


def _round_up(a, m):
    return ((a + m - 1) // m) * m


# --------------------------------------------------------------------------
# Kernel
# --------------------------------------------------------------------------
def make_tnet_kernel(bt, nt, ch):
    """grid = (batch tiles [parallel], point tiles [arbitrary, reduction]).

    Inside each grid step the Nt points are processed in `nt // ch` chunks of
    `ch` points (static Python unroll) so the (bt*ch, 1024) f32 conv3 result
    never exceeds ~1 MiB of live data.
    """
    n_chunks = nt // ch
    bf16 = jnp.bfloat16

    def tnet_kernel(x_ref,
                    w1_ref, b1_ref, w2_ref, b2_ref, w3_ref, b3_ref,
                    fw1_ref, fb1_ref, fw2_ref, fb2_ref, fw3_ref, fb3_ref,
                    out_ref, gmax_ref):
        n_idx = pl.program_id(1)

        @pl.when(n_idx == 0)
        def _():
            # raw (pre-bias, pre-ReLU) conv3 outputs can be negative -> -inf
            gmax_ref[...] = jnp.full(gmax_ref.shape, -jnp.inf, gmax_ref.dtype)

        def chunk_max(c):
            # (bt, ch, CIN_PAD) f32 slice -> flattened rows, bf16 MXU path
            xc = x_ref[:, c * ch:(c + 1) * ch, :].reshape(bt * ch, CIN_PAD)
            h = jnp.maximum(
                jnp.dot(xc.astype(bf16), w1_ref[...],
                        preferred_element_type=jnp.float32) + b1_ref[...], 0.0)
            h = jnp.maximum(
                jnp.dot(h.astype(bf16), w2_ref[...],
                        preferred_element_type=jnp.float32) + b2_ref[...], 0.0)
            # raw conv3: bias + ReLU are hoisted to the FC head (exact)
            r = jnp.dot(h.astype(bf16), w3_ref[...],
                        preferred_element_type=jnp.float32)        # (bt*ch, 1024)
            return jnp.max(r.reshape(bt, ch, C3), axis=1)          # (bt, 1024)

        tile_max = chunk_max(0)
        for c in range(1, n_chunks):
            tile_max = jnp.maximum(tile_max, chunk_max(c))

        gmax_ref[...] = jnp.maximum(gmax_ref[...], tile_max)

        # ---- FC head: once per batch tile, on the last points tile --------
        @pl.when(n_idx == pl.num_programs(1) - 1)
        def _():
            # hoisted conv3 bias + ReLU
            g = jnp.maximum(gmax_ref[...] + b3_ref[...], 0.0)       # (bt, 1024)
            g = jnp.maximum(
                jnp.dot(g.astype(bf16), fw1_ref[...],
                        preferred_element_type=jnp.float32) + fb1_ref[...], 0.0)
            g = jnp.maximum(
                jnp.dot(g.astype(bf16), fw2_ref[...],
                        preferred_element_type=jnp.float32) + fb2_ref[...], 0.0)
            out = jnp.dot(g, fw3_ref[...],
                          preferred_element_type=jnp.float32) + fb3_ref[...]
            out_ref[...] = out.reshape(out_ref.shape)               # (bt, 1, KKp)

    return tnet_kernel


# --------------------------------------------------------------------------
# Tiling heuristic
# --------------------------------------------------------------------------
def _choose_tiling(B, N):
    # batch tile: keep >= 2 parallel grid steps when B >= 2 (v7x has 2 TCs);
    # otherwise grow Bt so the FC head gets more MXU rows.
    Bt = 1 if B <= 2 else min(8, B // 2)
    # conv3 chunk: ~256 rows of (rows, 1024) f32 live at a time (~1 MiB)
    CH = max(8, ((256 // Bt) // 8) * 8)
    N8 = _round_up(N, 8)
    if N8 <= CH:
        CH = N8
        n_chunks = 1
    else:
        # up to 8 chunks per grid step -> >= ~2048 rows/step of conv3 work,
        # which amortizes the ~0.35 us per-grid-step overhead.
        n_chunks = min(8, -(-N8 // CH))
    Nt = CH * n_chunks
    return Bt, CH, Nt


# --------------------------------------------------------------------------
# Parameter handling (pure glue, no hot-path compute)
# --------------------------------------------------------------------------
def fold_bn(w, b, gamma, beta, mean, var, eps=1e-5):
    """Fold eval-mode BatchNorm into a (Cin, Cout) weight + (Cout,) bias."""
    scale = gamma / jnp.sqrt(var + eps)
    return w * scale[None, :], (b - mean) * scale + beta


def init_params(key, k):
    ks = iter(jax.random.split(key, 32))
    f32 = jnp.float32

    def rnd(shape, scale=0.1):
        return jax.random.normal(next(ks), shape, f32) * scale

    def bn(c):
        return (1.0 + rnd((c,)),           # gamma
                rnd((c,)),                 # beta
                rnd((c,)),                 # running_mean
                1.0 + jnp.abs(rnd((c,))))  # running_var

    return {
        "w1": rnd((3, C1)),       "b1": rnd((C1,)),     "bn1": bn(C1),
        "w2": rnd((C1, C2)),      "b2": rnd((C2,)),     "bn2": bn(C2),
        "w3": rnd((C2, C3)),      "b3": rnd((C3,)),     "bn3": bn(C3),
        "fw1": rnd((C3, F1), 0.05), "fb1": rnd((F1,)),  "bn4": bn(F1),
        "fw2": rnd((F1, F2), 0.05), "fb2": rnd((F2,)),  "bn5": bn(F2),
        "fw3": rnd((F2, k * k), 0.05), "fb3": rnd((k * k,)),
    }


def fold_params(p, k):
    """Fold BN (+identity) into weights; returns kernel-ready arrays."""
    w1, b1 = fold_bn(p["w1"], p["b1"], *p["bn1"])
    w2, b2 = fold_bn(p["w2"], p["b2"], *p["bn2"])
    w3, b3 = fold_bn(p["w3"], p["b3"], *p["bn3"])
    fw1, fb1 = fold_bn(p["fw1"], p["fb1"], *p["bn4"])
    fw2, fb2 = fold_bn(p["fw2"], p["fb2"], *p["bn5"])
    fw3 = p["fw3"]
    fb3 = p["fb3"] + jnp.eye(k, dtype=jnp.float32).reshape(-1)  # identity folded

    # pad the 3 input channels of w1 up to CIN_PAD with zero rows
    w1p = jnp.zeros((CIN_PAD, C1), jnp.float32).at[:3].set(w1)

    # lane-dense output: pad k*k out to a multiple of 128
    kk = k * k
    kk_pad = _round_up(kk, 128)
    fw3p = jnp.zeros((F2, kk_pad), jnp.float32).at[:, :kk].set(fw3)
    fb3p = jnp.zeros((kk_pad,), jnp.float32).at[:kk].set(fb3)

    bf = jnp.bfloat16

    def row(b):  # biases as (1, C) f32 rows
        return b.reshape(1, -1).astype(jnp.float32)

    return (w1p.astype(bf), row(b1),
            w2.astype(bf), row(b2),
            w3.astype(bf), row(b3),
            fw1.astype(bf), row(fb1),
            fw2.astype(bf), row(fb2),
            fw3p, row(fb3p))


# --------------------------------------------------------------------------
# Wrapper
# --------------------------------------------------------------------------
def tnet_forward(x_ncl, params, k):
    """x_ncl: (B, 3, N) float32 (PyTorch NCL layout).  Returns (B, k, k)."""
    B, Cin, N = x_ncl.shape
    assert Cin == 3
    folded = fold_params(params, k)
    kk_pad = folded[-1].shape[-1]

    Bt, CH, Nt = _choose_tiling(B, N)

    x = jnp.transpose(x_ncl, (0, 2, 1))                        # (B, N, 3)
    x = jnp.pad(x, ((0, 0), (0, 0), (0, CIN_PAD - Cin)))       # (B, N, 8) f32

    # -- points padding: repeat the last point (duplicates never change the
    #    channel max, even for the raw pre-ReLU conv3 outputs) --------------
    N_pad = _round_up(N, Nt)
    if N_pad != N:
        x = jnp.concatenate(
            [x, jnp.broadcast_to(x[:, -1:, :], (B, N_pad - N, CIN_PAD))], axis=1)

    # -- batch padding ------------------------------------------------------
    B_pad = _round_up(B, Bt)
    if B_pad != B:
        x = jnp.pad(x, ((0, B_pad - B), (0, 0), (0, 0)))

    grid = (B_pad // Bt, N_pad // Nt)

    def const_spec(arr):  # full-array weight/bias block, constant index
        return pl.BlockSpec(arr.shape, lambda b, n: (0, 0))

    in_specs = [pl.BlockSpec((Bt, Nt, CIN_PAD), lambda b, n: (b, n, 0))]
    in_specs += [const_spec(a) for a in folded]

    kernel = make_tnet_kernel(Bt, Nt, CH)

    out = pl.pallas_call(
        kernel,
        out_shape=jax.ShapeDtypeStruct((B_pad, 1, kk_pad), jnp.float32),
        grid_spec=pltpu.PrefetchScalarGridSpec(
            num_scalar_prefetch=0,
            grid=grid,
            in_specs=in_specs,
            out_specs=pl.BlockSpec((Bt, 1, kk_pad), lambda b, n: (b, 0, 0)),
            scratch_shapes=[pltpu.VMEM((Bt, C3), jnp.float32)],
        ),
        compiler_params=pltpu.CompilerParams(
            dimension_semantics=("parallel", "arbitrary"),
            vmem_limit_bytes=32 * 1024 * 1024,
        ),
    )(x, *folded)

    return out[:B, 0, :k * k].reshape(B, k, k)


# --------------------------------------------------------------------------
# Plain-JAX reference (same folded params / dtype casts, per-point bias+ReLU
# before the max -> also validates the in-kernel bias/ReLU hoist is exact)
# --------------------------------------------------------------------------
def tnet_reference(x_ncl, params, k):
    (w1p, b1, w2, b2, w3, b3, fw1, fb1, fw2, fb2, fw3, fb3) = fold_params(params, k)
    bf = jnp.bfloat16
    x = jnp.transpose(x_ncl, (0, 2, 1))
    x = jnp.pad(x, ((0, 0), (0, 0), (0, CIN_PAD - x_ncl.shape[1])))

    def pm(a, w):  # per-point (batched) matmul, bf16 inputs, f32 accumulation
        return jnp.einsum('bnc,cd->bnd', a.astype(bf), w,
                          preferred_element_type=jnp.float32)

    def fm(a, w):
        return jnp.dot(a, w, preferred_element_type=jnp.float32)

    h = jax.nn.relu(pm(x, w1p) + b1)
    h = jax.nn.relu(pm(h, w2) + b2)
    h = jax.nn.relu(pm(h, w3) + b3)
    g = jnp.max(h, axis=1)                                     # (B, 1024)
    g = jax.nn.relu(fm(g.astype(bf), fw1) + fb1)
    g = jax.nn.relu(fm(g.astype(bf), fw2) + fb2)
    out = fm(g, fw3) + fb3
    return out[:, :k * k].reshape(-1, k, k)


if __name__ == "__main__":
    key = jax.random.PRNGKey(0)
    k = 3
    B, N = 2, 16                                   # small test shapes
    kx, kp = jax.random.split(key)
    x = jax.random.normal(kx, (B, 3, N), jnp.float32)   # PyTorch NCL input
    params = init_params(kp, k)

    y = tnet_forward(x, params, k)
    y = jax.block_until_ready(y)

    y_ref = tnet_reference(x, params, k)
    assert y.shape == (B, k, k)
    assert jnp.allclose(y, y_ref, atol=1e-2, rtol=1e-2)

    print("KERNEL_OK")
</pallas_src>

<mosaic_0001>
module attributes {stable_mosaic.version = 11 : i64} {
  func.func @tnet_kernel(%arg0: i32, %arg1: i32, %arg2: memref<1x16x8xf32, #tpu.memory_space<vmem>>, %arg3: memref<8x64xbf16, #tpu.memory_space<vmem>>, %arg4: memref<1x64xf32, #tpu.memory_space<vmem>>, %arg5: memref<64x128xbf16, #tpu.memory_space<vmem>>, %arg6: memref<1x128xf32, #tpu.memory_space<vmem>>, %arg7: memref<128x1024xbf16, #tpu.memory_space<vmem>>, %arg8: memref<1x1024xf32, #tpu.memory_space<vmem>>, %arg9: memref<1024x512xbf16, #tpu.memory_space<vmem>>, %arg10: memref<1x512xf32, #tpu.memory_space<vmem>>, %arg11: memref<512x256xbf16, #tpu.memory_space<vmem>>, %arg12: memref<1x256xf32, #tpu.memory_space<vmem>>, %arg13: memref<256x128xf32, #tpu.memory_space<vmem>>, %arg14: memref<1x128xf32, #tpu.memory_space<vmem>>, %arg15: memref<1x1x128xf32, #tpu.memory_space<vmem>>, %arg16: memref<1x1024xf32, #tpu.memory_space<vmem>>) attributes {dimension_semantics = [#tpu.dimension_semantics<parallel>, #tpu.dimension_semantics<arbitrary>], iteration_bounds = array<i64: 2, 1>, scalar_prefetch = 0 : i64, scratch_operands = 1 : i64, tpu.core_type = #tpu.core_type<tc>, window_params = [{transform_indices = @transform_0, window_bounds = array<i64: 1, 16, 8>}, {pipeline_mode = #tpu.pipeline_mode<synchronous>, transform_indices = @transform_1, window_bounds = array<i64: 8, 64>}, {pipeline_mode = #tpu.pipeline_mode<synchronous>, transform_indices = @transform_2, window_bounds = array<i64: 1, 64>}, {pipeline_mode = #tpu.pipeline_mode<synchronous>, transform_indices = @transform_3, window_bounds = array<i64: 64, 128>}, {pipeline_mode = #tpu.pipeline_mode<synchronous>, transform_indices = @transform_4, window_bounds = array<i64: 1, 128>}, {pipeline_mode = #tpu.pipeline_mode<synchronous>, transform_indices = @transform_5, window_bounds = array<i64: 128, 1024>}, {pipeline_mode = #tpu.pipeline_mode<synchronous>, transform_indices = @transform_6, window_bounds = array<i64: 1, 1024>}, {pipeline_mode = #tpu.pipeline_mode<synchronous>, transform_indices = @transform_7, window_bounds = array<i64: 1024, 512>}, {pipeline_mode = #tpu.pipeline_mode<synchronous>, transform_indices = @transform_8, window_bounds = array<i64: 1, 512>}, {pipeline_mode = #tpu.pipeline_mode<synchronous>, transform_indices = @transform_9, window_bounds = array<i64: 512, 256>}, {pipeline_mode = #tpu.pipeline_mode<synchronous>, transform_indices = @transform_10, window_bounds = array<i64: 1, 256>}, {pipeline_mode = #tpu.pipeline_mode<synchronous>, transform_indices = @transform_11, window_bounds = array<i64: 256, 128>}, {pipeline_mode = #tpu.pipeline_mode<synchronous>, transform_indices = @transform_12, window_bounds = array<i64: 1, 128>}, {transform_indices = @transform_13, window_bounds = array<i64: 1, 1, 128>}]} {
    %c0_i32 = arith.constant 0 : i32
    %0 = arith.cmpi eq, %arg1, %c0_i32 : i32
    %1 = arith.extui %0 : i1 to i32
    %c0_i32_0 = arith.constant 0 : i32
    %2 = arith.cmpi ne, %1, %c0_i32_0 : i32
    scf.if %2 {
      %cst_24 = arith.constant 0xFF800000 : f32
      %32 = vector.broadcast %cst_24 : f32 to vector<1x1024xf32>
      %c0_25 = arith.constant 0 : index
      %c0_26 = arith.constant 0 : index
      %33 = vector.load %arg16[%c0_25, %c0_26] : memref<1x1024xf32, #tpu.memory_space<vmem>>, vector<1x1024xf32>
      tpu.vector_store %arg16[%c0_25, %c0_26], %32 {strides = array<i32>} : memref<1x1024xf32, #tpu.memory_space<vmem>>, vector<1x1024xf32>,
    } else {
    }
    %c0 = arith.constant 0 : index
    %c0_1 = arith.constant 0 : index
    %c0_2 = arith.constant 0 : index
    %3 = vector.load %arg2[%c0, %c0_1, %c0_2] : memref<1x16x8xf32, #tpu.memory_space<vmem>>, vector<1x16x8xf32>
    %4 = vector.shape_cast %3 : vector<1x16x8xf32> to vector<16x8xf32>
    %5 = arith.truncf %4 : vector<16x8xf32> to vector<16x8xbf16>
    %c0_3 = arith.constant 0 : index
    %c0_4 = arith.constant 0 : index
    %6 = vector.load %arg3[%c0_3, %c0_4] : memref<8x64xbf16, #tpu.memory_space<vmem>>, vector<8x64xbf16>
    %cst = arith.constant dense<0.000000e+00> : vector<16x64xf32>
    %7 = tpu.matmul %5, %6, %cst {dimension_numbers = #tpu.dot_dimension_numbers<[1], [0], [0], [1], [0, 0, 1, 1], [], []>} : vector<16x8xbf16>, vector<8x64xbf16>, vector<16x64xf32> -> vector<16x64xf32>
    %c0_5 = arith.constant 0 : index
    %c0_6 = arith.constant 0 : index
    %8 = vector.load %arg4[%c0_5, %c0_6] : memref<1x64xf32, #tpu.memory_space<vmem>>, vector<1x64xf32>
    %9 = vector.broadcast %8 : vector<1x64xf32> to vector<16x64xf32>
    %10 = arith.addf %7, %9 : vector<16x64xf32>
    %cst_7 = arith.constant 0.000000e+00 : f32
    %11 = vector.broadcast %cst_7 : f32 to vector<16x64xf32>
    %12 = arith.maximumf %10, %11 : vector<16x64xf32>
    %13 = arith.truncf %12 : vector<16x64xf32> to vector<16x64xbf16>
    %c0_8 = arith.constant 0 : index
    %c0_9 = arith.constant 0 : index
    %14 = vector.load %arg5[%c0_8, %c0_9] : memref<64x128xbf16, #tpu.memory_space<vmem>>, vector<64x128xbf16>
    %cst_10 = arith.constant dense<0.000000e+00> : vector<16x128xf32>
    %15 = tpu.matmul %13, %14, %cst_10 {dimension_numbers = #tpu.dot_dimension_numbers<[1], [0], [0], [1], [0, 0, 1, 1], [], []>} : vector<16x64xbf16>, vector<64x128xbf16>, vector<16x128xf32> -> vector<16x128xf32>
    %c0_11 = arith.constant 0 : index
    %c0_12 = arith.constant 0 : index
    %16 = vector.load %arg6[%c0_11, %c0_12] : memref<1x128xf32, #tpu.memory_space<vmem>>, vector<1x128xf32>
    %17 = vector.broadcast %16 : vector<1x128xf32> to vector<16x128xf32>
    %18 = arith.addf %15, %17 : vector<16x128xf32>
    %cst_13 = arith.constant 0.000000e+00 : f32
    %19 = vector.broadcast %cst_13 : f32 to vector<16x128xf32>
    %20 = arith.maximumf %18, %19 : vector<16x128xf32>
    %21 = arith.truncf %20 : vector<16x128xf32> to vector<16x128xbf16>
    %c0_14 = arith.constant 0 : index
    %c0_15 = arith.constant 0 : index
    %22 = vector.load %arg7[%c0_14, %c0_15] : memref<128x1024xbf16, #tpu.memory_space<vmem>>, vector<128x1024xbf16>
    %cst_16 = arith.constant dense<0.000000e+00> : vector<16x1024xf32>
    %23 = tpu.matmul %21, %22, %cst_16 {dimension_numbers = #tpu.dot_dimension_numbers<[1], [0], [0], [1], [0, 0, 1, 1], [], []>} : vector<16x128xbf16>, vector<128x1024xbf16>, vector<16x1024xf32> -> vector<16x1024xf32>
    %24 = vector.shape_cast %23 : vector<16x1024xf32> to vector<1x16x1024xf32>
    %cst_17 = arith.constant dense<0xFF800000> : vector<1x1024xf32>
    %25 = vector.multi_reduction <maximumf>, %24, %cst_17 [1] : vector<1x16x1024xf32> to vector<1x1024xf32>
    %c0_18 = arith.constant 0 : index
    %c0_19 = arith.constant 0 : index
    %26 = vector.load %arg16[%c0_18, %c0_19] : memref<1x1024xf32, #tpu.memory_space<vmem>>, vector<1x1024xf32>
    %27 = arith.maximumf %26, %25 : vector<1x1024xf32>
    %c0_20 = arith.constant 0 : index
    %c0_21 = arith.constant 0 : index
    %28 = vector.load %arg16[%c0_20, %c0_21] : memref<1x1024xf32, #tpu.memory_space<vmem>>, vector<1x1024xf32>
    tpu.vector_store %arg16[%c0_20, %c0_21], %27 {strides = array<i32>} : memref<1x1024xf32, #tpu.memory_space<vmem>>, vector<1x1024xf32>,
    %c0_i32_22 = arith.constant 0 : i32
    %29 = arith.cmpi eq, %arg1, %c0_i32_22 : i32
    %30 = arith.extui %29 : i1 to i32
    %c0_i32_23 = arith.constant 0 : i32
    %31 = arith.cmpi ne, %30, %c0_i32_23 : i32
    scf.if %31 {
      %c0_24 = arith.constant 0 : index
      %c0_25 = arith.constant 0 : index
      %32 = vector.load %arg16[%c0_24, %c0_25] : memref<1x1024xf32, #tpu.memory_space<vmem>>, vector<1x1024xf32>
      %c0_26 = arith.constant 0 : index
      %c0_27 = arith.constant 0 : index
      %33 = vector.load %arg8[%c0_26, %c0_27] : memref<1x1024xf32, #tpu.memory_space<vmem>>, vector<1x1024xf32>
      %34 = arith.addf %32, %33 : vector<1x1024xf32>
      %cst_28 = arith.constant 0.000000e+00 : f32
      %35 = vector.broadcast %cst_28 : f32 to vector<1x1024xf32>
      %36 = arith.maximumf %34, %35 : vector<1x1024xf32>
      %37 = arith.truncf %36 : vector<1x1024xf32> to vector<1x1024xbf16>
      %c0_29 = arith.constant 0 : index
      %c0_30 = arith.constant 0 : index
      %38 = vector.load %arg9[%c0_29, %c0_30] : memref<1024x512xbf16, #tpu.memory_space<vmem>>, vector<1024x512xbf16>
      %cst_31 = arith.constant dense<0.000000e+00> : vector<1x512xf32>
      %39 = tpu.matmul %37, %38, %cst_31 {dimension_numbers = #tpu.dot_dimension_numbers<[1], [0], [0], [1], [0, 0, 1, 1], [], []>} : vector<1x1024xbf16>, vector<1024x512xbf16>, vector<1x512xf32> -> vector<1x512xf32>
      %c0_32 = arith.constant 0 : index
      %c0_33 = arith.constant 0 : index
      %40 = vector.load %arg10[%c0_32, %c0_33] : memref<1x512xf32, #tpu.memory_space<vmem>>, vector<1x512xf32>
      %41 = arith.addf %39, %40 : vector<1x512xf32>
      %cst_34 = arith.constant 0.000000e+00 : f32
      %42 = vector.broadcast %cst_34 : f32 to vector<1x512xf32>
      %43 = arith.maximumf %41, %42 : vector<1x512xf32>
      %44 = arith.truncf %43 : vector<1x512xf32> to vector<1x512xbf16>
      %c0_35 = arith.constant 0 : index
      %c0_36 = arith.constant 0 : index
      %45 = vector.load %arg11[%c0_35, %c0_36] : memref<512x256xbf16, #tpu.memory_space<vmem>>, vector<512x256xbf16>
      %cst_37 = arith.constant dense<0.000000e+00> : vector<1x256xf32>
      %46 = tpu.matmul %44, %45, %cst_37 {dimension_numbers = #tpu.dot_dimension_numbers<[1], [0], [0], [1], [0, 0, 1, 1], [], []>} : vector<1x512xbf16>, vector<512x256xbf16>, vector<1x256xf32> -> vector<1x256xf32>
      %c0_38 = arith.constant 0 : index
      %c0_39 = arith.constant 0 : index
      %47 = vector.load %arg12[%c0_38, %c0_39] : memref<1x256xf32, #tpu.memory_space<vmem>>, vector<1x256xf32>
      %48 = arith.addf %46, %47 : vector<1x256xf32>
      %cst_40 = arith.constant 0.000000e+00 : f32
      %49 = vector.broadcast %cst_40 : f32 to vector<1x256xf32>
      %50 = arith.maximumf %48, %49 : vector<1x256xf32>
      %c0_41 = arith.constant 0 : index
      %c0_42 = arith.constant 0 : index
      %51 = vector.load %arg13[%c0_41, %c0_42] : memref<256x128xf32, #tpu.memory_space<vmem>>, vector<256x128xf32>
      %cst_43 = arith.constant dense<0.000000e+00> : vector<1x128xf32>
      %52 = tpu.matmul %50, %51, %cst_43 {dimension_numbers = #tpu.dot_dimension_numbers<[1], [0], [0], [1], [0, 0, 1, 1], [], []>} : vector<1x256xf32>, vector<256x128xf32>, vector<1x128xf32> -> vector<1x128xf32>
      %c0_44 = arith.constant 0 : index
      %c0_45 = arith.constant 0 : index
      %53 = vector.load %arg14[%c0_44, %c0_45] : memref<1x128xf32, #tpu.memory_space<vmem>>, vector<1x128xf32>
      %54 = arith.addf %52, %53 : vector<1x128xf32>
      %55 = vector.shape_cast %54 : vector<1x128xf32> to vector<1x1x128xf32>
      %c0_46 = arith.constant 0 : index
      %c0_47 = arith.constant 0 : index
      %c0_48 = arith.constant 0 : index
      %56 = vector.load %arg15[%c0_46, %c0_47, %c0_48] : memref<1x1x128xf32, #tpu.memory_space<vmem>>, vector<1x1x128xf32>
      tpu.vector_store %arg15[%c0_46, %c0_47, %c0_48], %55 {strides = array<i32>} : memref<1x1x128xf32, #tpu.memory_space<vmem>>, vector<1x1x128xf32>,
    } else {
    }
    return
  }
  func.func @transform_0(%arg0: i32, %arg1: i32) -> (i32, i32, i32) {
    %c0_i32 = arith.constant 0 : i32
    %c0_i32_0 = arith.constant 0 : i32
    return %arg0, %arg1, %c0_i32 : i32, i32, i32
  }
  func.func @transform_1(%arg0: i32, %arg1: i32) -> (i32, i32) {
    %c0_i32 = arith.constant 0 : i32
    %c0_i32_0 = arith.constant 0 : i32
    %c0_i32_1 = arith.constant 0 : i32
    return %c0_i32, %c0_i32_0 : i32, i32
  }
  func.func @transform_2(%arg0: i32, %arg1: i32) -> (i32, i32) {
    %c0_i32 = arith.constant 0 : i32
    %c0_i32_0 = arith.constant 0 : i32
    %c0_i32_1 = arith.constant 0 : i32
    return %c0_i32, %c0_i32_0 : i32, i32
  }
  func.func @transform_3(%arg0: i32, %arg1: i32) -> (i32, i32) {
    %c0_i32 = arith.constant 0 : i32
    %c0_i32_0 = arith.constant 0 : i32
    %c0_i32_1 = arith.constant 0 : i32
    return %c0_i32, %c0_i32_0 : i32, i32
  }
  func.func @transform_4(%arg0: i32, %arg1: i32) -> (i32, i32) {
    %c0_i32 = arith.constant 0 : i32
    %c0_i32_0 = arith.constant 0 : i32
    %c0_i32_1 = arith.constant 0 : i32
    return %c0_i32, %c0_i32_0 : i32, i32
  }
  func.func @transform_5(%arg0: i32, %arg1: i32) -> (i32, i32) {
    %c0_i32 = arith.constant 0 : i32
    %c0_i32_0 = arith.constant 0 : i32
    %c0_i32_1 = arith.constant 0 : i32
    return %c0_i32, %c0_i32_0 : i32, i32
  }
  func.func @transform_6(%arg0: i32, %arg1: i32) -> (i32, i32) {
    %c0_i32 = arith.constant 0 : i32
    %c0_i32_0 = arith.constant 0 : i32
    %c0_i32_1 = arith.constant 0 : i32
    return %c0_i32, %c0_i32_0 : i32, i32
  }
  func.func @transform_7(%arg0: i32, %arg1: i32) -> (i32, i32) {
    %c0_i32 = arith.constant 0 : i32
    %c0_i32_0 = arith.constant 0 : i32
    %c0_i32_1 = arith.constant 0 : i32
    return %c0_i32, %c0_i32_0 : i32, i32
  }
  func.func @transform_8(%arg0: i32, %arg1: i32) -> (i32, i32) {
    %c0_i32 = arith.constant 0 : i32
    %c0_i32_0 = arith.constant 0 : i32
    %c0_i32_1 = arith.constant 0 : i32
    return %c0_i32, %c0_i32_0 : i32, i32
  }
  func.func @transform_9(%arg0: i32, %arg1: i32) -> (i32, i32) {
    %c0_i32 = arith.constant 0 : i32
    %c0_i32_0 = arith.constant 0 : i32
    %c0_i32_1 = arith.constant 0 : i32
    return %c0_i32, %c0_i32_0 : i32, i32
  }
  func.func @transform_10(%arg0: i32, %arg1: i32) -> (i32, i32) {
    %c0_i32 = arith.constant 0 : i32
    %c0_i32_0 = arith.constant 0 : i32
    %c0_i32_1 = arith.constant 0 : i32
    return %c0_i32, %c0_i32_0 : i32, i32
  }
  func.func @transform_11(%arg0: i32, %arg1: i32) -> (i32, i32) {
    %c0_i32 = arith.constant 0 : i32
    %c0_i32_0 = arith.constant 0 : i32
    %c0_i32_1 = arith.constant 0 : i32
    return %c0_i32, %c0_i32_0 : i32, i32
  }
  func.func @transform_12(%arg0: i32, %arg1: i32) -> (i32, i32) {
    %c0_i32 = arith.constant 0 : i32
    %c0_i32_0 = arith.constant 0 : i32
    %c0_i32_1 = arith.constant 0 : i32
    return %c0_i32, %c0_i32_0 : i32, i32
  }
  func.func @transform_13(%arg0: i32, %arg1: i32) -> (i32, i32, i32) {
    %c0_i32 = arith.constant 0 : i32
    %c0_i32_0 = arith.constant 0 : i32
    %c0_i32_1 = arith.constant 0 : i32
    return %arg0, %c0_i32, %c0_i32_0 : i32, i32, i32
  }
}

</mosaic_0001>

<llo_original>
// kernel: tpu_custom_call.1
$region0: #{tpu_custom_call.1}
  #allocation0 [shape = 'u32[]', space=smem, size = 0x4, offset = 0x4, fixed_abs, tag = 'smem constant byte address 0x4 - core index']
  #allocation1 [shape = 'u32[72,128]{1,0:T(1,128)}', space=vmem, size = 0x9000, scoped, tag = 'internal scratch']
  #allocation2 [shape = 'f32[1,1024]{1,0:T(1,128)}', space=vmem, size = 0x1000, scoped, tag = 'scratch operand']
  %s0 = inlined_call_operand.vmem [shape: f32[2,16,8], index: 0, kind: input, shape index: {}]
  %s1 = inlined_call_operand.vmem [shape: bf16[8,64], index: 1, kind: input, shape index: {}]
  %s2 = inlined_call_operand.hbm [shape: f32[1,64], index: 2, kind: input, shape index: {}]
  %s3 = inlined_call_operand.vmem [shape: bf16[64,128], index: 3, kind: input, shape index: {}]
  %s4 = inlined_call_operand.vmem [shape: f32[1,128], index: 4, kind: input, shape index: {}]
  %s5 = inlined_call_operand.hbm [shape: bf16[128,1024], index: 5, kind: input, shape index: {}]
  %s6 = inlined_call_operand.vmem [shape: f32[1,1024], index: 6, kind: input, shape index: {}]
  %s7 = inlined_call_operand.hbm [shape: bf16[1024,512], index: 7, kind: input, shape index: {}]
  %s8 = inlined_call_operand.vmem [shape: f32[1,512], index: 8, kind: input, shape index: {}]
  %s9 = inlined_call_operand.hbm [shape: bf16[512,256], index: 9, kind: input, shape index: {}]
  %s10 = inlined_call_operand.vmem [shape: f32[1,256], index: 10, kind: input, shape index: {}]
  %s11 = inlined_call_operand.hbm [shape: f32[256,128], index: 11, kind: input, shape index: {}]
  %s12 = inlined_call_operand.vmem [shape: f32[1,128], index: 12, kind: input, shape index: {}]
  %s13 = inlined_call_operand.hbm [shape: f32[2,1,128], index: 13, kind: output, shape index: {}]
  %s14 = sld [smem:[#allocation0]]
  $region113: #{tpu_custom_call.1} parent=0
    _
  %s16 = ssub.s32 1, %s14
  %s17 = scalar_select 0, %s16, %s14
  $region1: #{tpu_custom_call.1} parent=0
    #allocation3 [shape = 'u8[512]{0}', space=vmem, size = 0x400, scoped, tag = 'input window, operand 2, single buffered']
    #allocation4 [shape = 's32[2]{0}', space=sflag, size = 0x8, scoped, tag = 'scoped memory for tpu_custom_call.1']
    #allocation5 [shape = 's32[2]{0}', space=sflag, size = 0x8, scoped, tag = 'scoped memory for tpu_custom_call.1']
    #allocation6 [shape = 'u8[262144]{0}', space=vmem, size = 0x40000, scoped, tag = 'input window, operand 5, single buffered']
    #allocation7 [shape = 's32[1]{0}', space=sflag, size = 0x4, scoped, tag = 'scoped memory for tpu_custom_call.1']
    #allocation8 [shape = 'u8[1048576]{0}', space=vmem, size = 0x100000, scoped, tag = 'input window, operand 7, single buffered']
    #allocation9 [shape = 'u8[262144]{0}', space=vmem, size = 0x40000, scoped, tag = 'input window, operand 9, single buffered']
    #allocation10 [shape = 's32[1]{0}', space=sflag, size = 0x4, scoped, tag = 'scoped memory for tpu_custom_call.1']
    #allocation11 [shape = 'u8[131072]{0}', space=vmem, size = 0x20000, scoped, tag = 'input window, operand 11, single buffered']
    #allocation12 [shape = 'u8[1024]{0}', space=vmem, size = 0x400, scoped, tag = 'output window, operand 0']
    %18 = vsyncpa [#allocation4], 0
    %19 = vsyncpa [#allocation7], 0
    %20 = vsyncpa [#allocation10], 0
    %21 = vsyncpa [#allocation5], 0
    %s22 = scalar_lea.sflag [#allocation5], 1
    %23 = vsyncpa %s22, 0
    loop: start=0, step=1, limit=4
    $region2: #{tpu_custom_call.1} parent=1 // loop_pre_header
      _
    $region3: #{tpu_custom_call.1} parent=1 // loop_header
      %s25 = sphi 0, %s29
      %p26 = scmp.ge.s32.totalorder %s25, 4
      %s32 = sphi 0, %s44
      %s33 = sphi 0, %s40
      %s34 = sphi 0, %s32
      %s35 = sphi 0, %s33
      %s36 = sphi 0, %s34
      %s37 = sphi 0, %s35
      %s49 = sphi 0, %s51
      %s52 = sphi 0, %s49
      %s53 = sphi 0, %s52
      %s69 = sphi 0, %s53
      %s73 = sphi 0, %s73
      %s75 = sphi 0, %s73
      %s76 = sphi 0, %s75
      %s90 = sphi 0, %s76
      %s94 = sphi 0, %s94
      %s96 = sphi 0, %s94
      %s97 = sphi 0, %s96
      %s111 = sphi 0, %s97
      %s115 = sphi 0, %s115
      %s117 = sphi 0, %s115
      %s118 = sphi 0, %s117
      %s132 = sphi 0, %s118
      %s136 = sphi 0, %s136
      %s138 = sphi 0, %s136
      %s139 = sphi 0, %s138
      %s153 = sphi 0, %s139
      %s157 = sphi 0, %s157
      %s159 = sphi 0, %s157
      %s160 = sphi 0, %s159
      %s174 = sphi 0, %s160
      %s178 = sphi 0, %s178
      %s180 = sphi 0, %s178
      %s181 = sphi 0, %s180
      %s195 = sphi 0, %s181
      %s199 = sphi 0, %s199
      %s201 = sphi 0, %s199
      %s202 = sphi 0, %s201
      %s216 = sphi 0, %s202
      %s220 = sphi 0, %s220
      %s222 = sphi 0, %s220
      %s223 = sphi 0, %s222
      %s237 = sphi 0, %s223
      %s241 = sphi 0, %s241
      %s243 = sphi 0, %s241
      %s244 = sphi 0, %s243
      %s258 = sphi 0, %s244
      %s262 = sphi 0, %s262
      %s264 = sphi 0, %s262
      %s265 = sphi 0, %s264
      %s279 = sphi 0, %s265
      %s283 = sphi 0, %s283
      %s285 = sphi 0, %s283
      %s286 = sphi 0, %s285
      %s300 = sphi 0, %s286
      %s304 = sphi 0, %s304
      %s306 = sphi 0, %s304
      %s307 = sphi 0, %s306
      %s321 = sphi 0, %s307
      %s327 = sphi 0, %s329
      %s330 = sphi 0, %s327
      %s331 = sphi 0, %s330
      %s347 = sphi 0, %s331
    $region4: #{tpu_custom_call.1} parent=1 // loop_header_branch
      %28 = sbr.rel (%p26) target = $region8
    $region5: #{tpu_custom_call.1} parent=1 // loop_body
      %s30 = ssub.s32 %s25, 1
      %s31 = ssub.s32 %s25, 2
      %s38 = sadd.s32 1, %s33
      %p39 = scmp.ge.s32.totalorder %s38, 1
      %s40 = scalar_select %p39, 0, %s38
      %s41 = sadd.s32 1, %s32
      %s42 = scalar_select %p39, %s41, %s32
      %p43 = scmp.ge.s32.totalorder %s42, 2
      %s44 = scalar_select %p43, 0, %s42
      %s45 = ssub.s32 %s32, %s44
      %s46 = ssub.s32 %s33, %s40
      %s47 = sor.u32 %s45, %s46
      %p48 = scmp.eq.s32.totalorder %s47, 0
      %s50 = sadd.s32 %s49, 1
      %s51 = scalar_select %p48, %s49, %s50
      %p54 = pneg %p48
      %p55 = scmp.eq.s32.totalorder %s25, 1
      %p56 = por %p54, %p55
      %p57 = scmp.ne.s32.totalorder %s49, %s52
      %p58 = scmp.eq.s32.totalorder %s25, 0
      %p59 = por %p57, %p58
      %p60 = scmp.ne.s32.totalorder %s49, %s52
      %p61 = scmp.eq.s32.totalorder %s30, 1
      %p62 = por %p60, %p61
      %p63 = scmp.ne.s32.totalorder %s52, %s53
      %p64 = scmp.eq.s32.totalorder %s30, 0
      %p65 = por %p63, %p64
      %p66 = scmp.ne.s32.totalorder %s52, %s53
      %p67 = scmp.eq.s32.totalorder %s31, 1
      %p68 = por %p66, %p67
      %p70 = scmp.ne.s32.totalorder %s53, %s69
      %p71 = scmp.eq.s32.totalorder %s31, 0
      %p72 = por %p70, %p71
      %s74 = sadd.s32 %s73, 1
      %p77 = scmp.eq.s32.totalorder %s25, 1
      %p78 = scmp.ne.s32.totalorder %s73, %s75
      %p79 = scmp.eq.s32.totalorder %s25, 0
      %p80 = por %p78, %p79
      %p81 = scmp.ne.s32.totalorder %s73, %s75
      %p82 = scmp.eq.s32.totalorder %s30, 1
      %p83 = por %p81, %p82
      %p84 = scmp.ne.s32.totalorder %s75, %s76
      %p85 = scmp.eq.s32.totalorder %s30, 0
      %p86 = por %p84, %p85
      %p87 = scmp.ne.s32.totalorder %s75, %s76
      %p88 = scmp.eq.s32.totalorder %s31, 1
      %p89 = por %p87, %p88
      %p91 = scmp.ne.s32.totalorder %s76, %s90
      %p92 = scmp.eq.s32.totalorder %s31, 0
      %p93 = por %p91, %p92
      %s95 = sadd.s32 %s94, 1
      %p98 = scmp.eq.s32.totalorder %s25, 1
      %p99 = scmp.ne.s32.totalorder %s94, %s96
      %p100 = scmp.eq.s32.totalorder %s25, 0
      %p101 = por %p99, %p100
      %p102 = scmp.ne.s32.totalorder %s94, %s96
      %p103 = scmp.eq.s32.totalorder %s30, 1
      %p104 = por %p102, %p103
      %p105 = scmp.ne.s32.totalorder %s96, %s97
      %p106 = scmp.eq.s32.totalorder %s30, 0
      %p107 = por %p105, %p106
      %p108 = scmp.ne.s32.totalorder %s96, %s97
      %p109 = scmp.eq.s32.totalorder %s31, 1
      %p110 = por %p108, %p109
      %p112 = scmp.ne.s32.totalorder %s97, %s111
      %p113 = scmp.eq.s32.totalorder %s31, 0
      %p114 = por %p112, %p113
      %s116 = sadd.s32 %s115, 1
      %p119 = scmp.eq.s32.totalorder %s25, 1
      %p120 = scmp.ne.s32.totalorder %s115, %s117
      %p121 = scmp.eq.s32.totalorder %s25, 0
      %p122 = por %p120, %p121
      %p123 = scmp.ne.s32.totalorder %s115, %s117
      %p124 = scmp.eq.s32.totalorder %s30, 1
      %p125 = por %p123, %p124
      %p126 = scmp.ne.s32.totalorder %s117, %s118
      %p127 = scmp.eq.s32.totalorder %s30, 0
      %p128 = por %p126, %p127
      %p129 = scmp.ne.s32.totalorder %s117, %s118
      %p130 = scmp.eq.s32.totalorder %s31, 1
      %p131 = por %p129, %p130
      %p133 = scmp.ne.s32.totalorder %s118, %s132
      %p134 = scmp.eq.s32.totalorder %s31, 0
      %p135 = por %p133, %p134
      %s137 = sadd.s32 %s136, 1
      %p140 = scmp.eq.s32.totalorder %s25, 1
      %p141 = scmp.ne.s32.totalorder %s136, %s138
      %p142 = scmp.eq.s32.totalorder %s25, 0
      %p143 = por %p141, %p142
      %p144 = scmp.ne.s32.totalorder %s136, %s138
      %p145 = scmp.eq.s32.totalorder %s30, 1
      %p146 = por %p144, %p145
      %p147 = scmp.ne.s32.totalorder %s138, %s139
      %p148 = scmp.eq.s32.totalorder %s30, 0
      %p149 = por %p147, %p148
      %p150 = scmp.ne.s32.totalorder %s138, %s139
      %p151 = scmp.eq.s32.totalorder %s31, 1
      %p152 = por %p150, %p151
      %p154 = scmp.ne.s32.totalorder %s139, %s153
      %p155 = scmp.eq.s32.totalorder %s31, 0
      %p156 = por %p154, %p155
      %s158 = sadd.s32 %s157, 1
      %p161 = scmp.eq.s32.totalorder %s25, 1
      %p162 = scmp.ne.s32.totalorder %s157, %s159
      %p163 = scmp.eq.s32.totalorder %s25, 0
      %p164 = por %p162, %p163
      %p165 = scmp.ne.s32.totalorder %s157, %s159
      %p166 = scmp.eq.s32.totalorder %s30, 1
      %p167 = por %p165, %p166
      %p168 = scmp.ne.s32.totalorder %s159, %s160
      %p169 = scmp.eq.s32.totalorder %s30, 0
      %p170 = por %p168, %p169
      %p171 = scmp.ne.s32.totalorder %s159, %s160
      %p172 = scmp.eq.s32.totalorder %s31, 1
      %p173 = por %p171, %p172
      %p175 = scmp.ne.s32.totalorder %s160, %s174
      %p176 = scmp.eq.s32.totalorder %s31, 0
      %p177 = por %p175, %p176
      %s179 = sadd.s32 %s178, 1
      %p182 = scmp.eq.s32.totalorder %s25, 1
      %p183 = scmp.ne.s32.totalorder %s178, %s180
      %p184 = scmp.eq.s32.totalorder %s25, 0
      %p185 = por %p183, %p184
      %p186 = scmp.ne.s32.totalorder %s178, %s180
      %p187 = scmp.eq.s32.totalorder %s30, 1
      %p188 = por %p186, %p187
      %p189 = scmp.ne.s32.totalorder %s180, %s181
      %p190 = scmp.eq.s32.totalorder %s30, 0
      %p191 = por %p189, %p190
      %p192 = scmp.ne.s32.totalorder %s180, %s181
      %p193 = scmp.eq.s32.totalorder %s31, 1
      %p194 = por %p192, %p193
      %p196 = scmp.ne.s32.totalorder %s181, %s195
      %p197 = scmp.eq.s32.totalorder %s31, 0
      %p198 = por %p196, %p197
      %s200 = sadd.s32 %s199, 1
      %p203 = scmp.eq.s32.totalorder %s25, 1
      %p204 = scmp.ne.s32.totalorder %s199, %s201
      %p205 = scmp.eq.s32.totalorder %s25, 0
      %p206 = por %p204, %p205
      %p207 = scmp.ne.s32.totalorder %s199, %s201
      %p208 = scmp.eq.s32.totalorder %s30, 1
      %p209 = por %p207, %p208
      %p210 = scmp.ne.s32.totalorder %s201, %s202
      %p211 = scmp.eq.s32.totalorder %s30, 0
      %p212 = por %p210, %p211
      %p213 = scmp.ne.s32.totalorder %s201, %s202
      %p214 = scmp.eq.s32.totalorder %s31, 1
      %p215 = por %p213, %p214
      %p217 = scmp.ne.s32.totalorder %s202, %s216
      %p218 = scmp.eq.s32.totalorder %s31, 0
      %p219 = por %p217, %p218
      %s221 = sadd.s32 %s220, 1
      %p224 = scmp.eq.s32.totalorder %s25, 1
      %p225 = scmp.ne.s32.totalorder %s220, %s222
      %p226 = scmp.eq.s32.totalorder %s25, 0
      %p227 = por %p225, %p226
      %p228 = scmp.ne.s32.totalorder %s220, %s222
      %p229 = scmp.eq.s32.totalorder %s30, 1
      %p230 = por %p228, %p229
      %p231 = scmp.ne.s32.totalorder %s222, %s223
      %p232 = scmp.eq.s32.totalorder %s30, 0
      %p233 = por %p231, %p232
      %p234 = scmp.ne.s32.totalorder %s222, %s223
      %p235 = scmp.eq.s32.totalorder %s31, 1
      %p236 = por %p234, %p235
      %p238 = scmp.ne.s32.totalorder %s223, %s237
      %p239 = scmp.eq.s32.totalorder %s31, 0
      %p240 = por %p238, %p239
      %s242 = sadd.s32 %s241, 1
      %p245 = scmp.eq.s32.totalorder %s25, 1
      %p246 = scmp.ne.s32.totalorder %s241, %s243
      %p247 = scmp.eq.s32.totalorder %s25, 0
      %p248 = por %p246, %p247
      %p249 = scmp.ne.s32.totalorder %s241, %s243
      %p250 = scmp.eq.s32.totalorder %s30, 1
      %p251 = por %p249, %p250
      %p252 = scmp.ne.s32.totalorder %s243, %s244
      %p253 = scmp.eq.s32.totalorder %s30, 0
      %p254 = por %p252, %p253
      %p255 = scmp.ne.s32.totalorder %s243, %s244
      %p256 = scmp.eq.s32.totalorder %s31, 1
      %p257 = por %p255, %p256
      %p259 = scmp.ne.s32.totalorder %s244, %s258
      %p260 = scmp.eq.s32.totalorder %s31, 0
      %p261 = por %p259, %p260
      %s263 = sadd.s32 %s262, 1
      %p266 = scmp.eq.s32.totalorder %s25, 1
      %p267 = scmp.ne.s32.totalorder %s262, %s264
      %p268 = scmp.eq.s32.totalorder %s25, 0
      %p269 = por %p267, %p268
      %p270 = scmp.ne.s32.totalorder %s262, %s264
      %p271 = scmp.eq.s32.totalorder %s30, 1
      %p272 = por %p270, %p271
      %p273 = scmp.ne.s32.totalorder %s264, %s265
      %p274 = scmp.eq.s32.totalorder %s30, 0
      %p275 = por %p273, %p274
      %p276 = scmp.ne.s32.totalorder %s264, %s265
      %p277 = scmp.eq.s32.totalorder %s31, 1
      %p278 = por %p276, %p277
      %p280 = scmp.ne.s32.totalorder %s265, %s279
      %p281 = scmp.eq.s32.totalorder %s31, 0
      %p282 = por %p280, %p281
      %s284 = sadd.s32 %s283, 1
      %p287 = scmp.eq.s32.totalorder %s25, 1
      %p288 = scmp.ne.s32.totalorder %s283, %s285
      %p289 = scmp.eq.s32.totalorder %s25, 0
      %p290 = por %p288, %p289
      %p291 = scmp.ne.s32.totalorder %s283, %s285
      %p292 = scmp.eq.s32.totalorder %s30, 1
      %p293 = por %p291, %p292
      %p294 = scmp.ne.s32.totalorder %s285, %s286
      %p295 = scmp.eq.s32.totalorder %s30, 0
      %p296 = por %p294, %p295
      %p297 = scmp.ne.s32.totalorder %s285, %s286
      %p298 = scmp.eq.s32.totalorder %s31, 1
      %p299 = por %p297, %p298
      %p301 = scmp.ne.s32.totalorder %s286, %s300
      %p302 = scmp.eq.s32.totalorder %s31, 0
      %p303 = por %p301, %p302
      %s305 = sadd.s32 %s304, 1
      %p308 = scmp.eq.s32.totalorder %s25, 1
      %p309 = scmp.ne.s32.totalorder %s304, %s306
      %p310 = scmp.eq.s32.totalorder %s25, 0
      %p311 = por %p309, %p310
      %p312 = scmp.ne.s32.totalorder %s304, %s306
      %p313 = scmp.eq.s32.totalorder %s30, 1
      %p314 = por %p312, %p313
      %p315 = scmp.ne.s32.totalorder %s306, %s307
      %p316 = scmp.eq.s32.totalorder %s30, 0
      %p317 = por %p315, %p316
      %p318 = scmp.ne.s32.totalorder %s306, %s307
      %p319 = scmp.eq.s32.totalorder %s31, 1
      %p320 = por %p318, %p319
      %p322 = scmp.ne.s32.totalorder %s307, %s321
      %p323 = scmp.eq.s32.totalorder %s31, 0
      %p324 = por %p322, %p323
      %s325 = ssub.s32 %s32, %s44
      %p326 = scmp.eq.s32.totalorder %s325, 0
      %s328 = sadd.s32 %s327, 1
      %s329 = scalar_select %p326, %s327, %s328
      %p332 = pneg %p326
      %p333 = scmp.eq.s32.totalorder %s25, 1
      %p334 = por %p332, %p333
      %p335 = scmp.ne.s32.totalorder %s327, %s330
      %p336 = scmp.eq.s32.totalorder %s25, 0
      %p337 = por %p335, %p336
      %p338 = scmp.ne.s32.totalorder %s327, %s330
      %p339 = scmp.eq.s32.totalorder %s30, 1
      %p340 = por %p338, %p339
      %p341 = scmp.ne.s32.totalorder %s330, %s331
      %p342 = scmp.eq.s32.totalorder %s30, 0
      %p343 = por %p341, %p342
      %p344 = scmp.ne.s32.totalorder %s330, %s331
      %p345 = scmp.eq.s32.totalorder %s31, 1
      %p346 = por %p344, %p345
      %p348 = scmp.ne.s32.totalorder %s331, %s347
      %p349 = scmp.eq.s32.totalorder %s31, 0
      %p350 = por %p348, %p349
      %p351 = scmp.le.s32.totalorder 1, %s25
      %p352 = scmp.lt.s32.totalorder %s25, 3
      %p353 = pnand %p351, %p352
      %p354 = pneg %p353
      // Predicated region
      $region9: #{tpu_custom_call.1} parent=5 // pred_check
        _
      $region10: #{tpu_custom_call.1} parent=5 // pred_check_branch
        %356 = sbr.rel (%p353) target = $region12
      $region11: #{tpu_custom_call.1} parent=5 // pred_region
        %s357 = ssub.s32 %s25, 1
        // Predicated region
        $region13: #{tpu_custom_call.1} parent=11 // pred_check
          %p358 = pneg %p86
        $region14: #{tpu_custom_call.1} parent=11 // pred_check_branch
          %360 = sbr.rel (%p358) target = $region16
        $region15: #{tpu_custom_call.1} parent=11 // pred_region
          _
        $region16: #{tpu_custom_call.1} parent=11 // pred_fallthru
          _
        // Predicated region
        $region17: #{tpu_custom_call.1} parent=11 // pred_check
          %p361 = pneg %p107
        $region18: #{tpu_custom_call.1} parent=11 // pred_check_branch
          %363 = sbr.rel (%p361) target = $region20
        $region19: #{tpu_custom_call.1} parent=11 // pred_region
          %365 = vsyncadd [#allocation4], 0
          %s367 = sshll.u32 %s2, 4
          %s368 = int_to_ptr.hbm [resolvable:$true] %s367
          %s369 = sshll.u32 [#allocation3], 4
          %s370 = int_to_ptr.vmem [resolvable:$true] %s369
          %372 = dma.hbm_to_vmem [thread:$0]  %s368, 16, %s370, [#allocation4]
        $region20: #{tpu_custom_call.1} parent=11 // pred_fallthru
          _
        // Predicated region
        $region21: #{tpu_custom_call.1} parent=11 // pred_check
          %p373 = pneg %p128
        $region22: #{tpu_custom_call.1} parent=11 // pred_check_branch
          %375 = sbr.rel (%p373) target = $region24
        $region23: #{tpu_custom_call.1} parent=11 // pred_region
          _
        $region24: #{tpu_custom_call.1} parent=11 // pred_fallthru
          _
        // Predicated region
        $region25: #{tpu_custom_call.1} parent=11 // pred_check
          %p376 = pneg %p149
        $region26: #{tpu_custom_call.1} parent=11 // pred_check_branch
          %378 = sbr.rel (%p376) target = $region28
        $region27: #{tpu_custom_call.1} parent=11 // pred_region
          _
        $region28: #{tpu_custom_call.1} parent=11 // pred_fallthru
          _
        // Predicated region
        $region29: #{tpu_custom_call.1} parent=11 // pred_check
          %p379 = pneg %p170
        $region30: #{tpu_custom_call.1} parent=11 // pred_check_branch
          %381 = sbr.rel (%p379) target = $region32
        $region31: #{tpu_custom_call.1} parent=11 // pred_region
          %383 = vsyncadd [#allocation7], 0
          %s384 = sshll.u32 %s5, 4
          %s385 = int_to_ptr.hbm [resolvable:$true] %s384
          %s386 = sshll.u32 [#allocation6], 4
          %s387 = int_to_ptr.vmem [resolvable:$true] %s386
          %392 = dma.hbm_to_vmem [thread:$0]  %s385, 8192, %s387, [#allocation7], 512, 512, 32
        $region32: #{tpu_custom_call.1} parent=11 // pred_fallthru
          _
        // Predicated region
        $region33: #{tpu_custom_call.1} parent=11 // pred_check
          %p393 = pneg %p191
        $region34: #{tpu_custom_call.1} parent=11 // pred_check_branch
          %395 = sbr.rel (%p393) target = $region36
        $region35: #{tpu_custom_call.1} parent=11 // pred_region
          _
        $region36: #{tpu_custom_call.1} parent=11 // pred_fallthru
          _
        // Predicated region
        $region37: #{tpu_custom_call.1} parent=11 // pred_check
          %p396 = pneg %p212
        $region38: #{tpu_custom_call.1} parent=11 // pred_check_branch
          %398 = sbr.rel (%p396) target = $region40
        $region39: #{tpu_custom_call.1} parent=11 // pred_region
          %400 = vsyncadd [#allocation7], 0
          %s401 = sshll.u32 %s7, 4
          %s402 = int_to_ptr.hbm [resolvable:$true] %s401
          %s403 = sshll.u32 [#allocation8], 4
          %s404 = int_to_ptr.vmem [resolvable:$true] %s403
          %409 = dma.hbm_to_vmem [thread:$0]  %s402, 32768, %s404, [#allocation7], 256, 256, 16
        $region40: #{tpu_custom_call.1} parent=11 // pred_fallthru
          _
        // Predicated region
        $region41: #{tpu_custom_call.1} parent=11 // pred_check
          %p410 = pneg %p233
        $region42: #{tpu_custom_call.1} parent=11 // pred_check_branch
          %412 = sbr.rel (%p410) target = $region44
        $region43: #{tpu_custom_call.1} parent=11 // pred_region
          _
        $region44: #{tpu_custom_call.1} parent=11 // pred_fallthru
          _
        // Predicated region
        $region45: #{tpu_custom_call.1} parent=11 // pred_check
          %p413 = pneg %p254
        $region46: #{tpu_custom_call.1} parent=11 // pred_check_branch
          %415 = sbr.rel (%p413) target = $region48
        $region47: #{tpu_custom_call.1} parent=11 // pred_region
          %417 = vsyncadd [#allocation10], 0
          %s418 = sshll.u32 %s9, 4
          %s419 = int_to_ptr.hbm [resolvable:$true] %s418
          %s420 = sshll.u32 [#allocation9], 4
          %s421 = int_to_ptr.vmem [resolvable:$true] %s420
          %426 = dma.hbm_to_vmem [thread:$0]  %s419, 8192, %s421, [#allocation10], 128, 128, 8
        $region48: #{tpu_custom_call.1} parent=11 // pred_fallthru
          _
        // Predicated region
        $region49: #{tpu_custom_call.1} parent=11 // pred_check
          %p427 = pneg %p275
        $region50: #{tpu_custom_call.1} parent=11 // pred_check_branch
          %429 = sbr.rel (%p427) target = $region52
        $region51: #{tpu_custom_call.1} parent=11 // pred_region
          _
        $region52: #{tpu_custom_call.1} parent=11 // pred_fallthru
          _
        // Predicated region
        $region53: #{tpu_custom_call.1} parent=11 // pred_check
          %p430 = pneg %p296
        $region54: #{tpu_custom_call.1} parent=11 // pred_check_branch
          %432 = sbr.rel (%p430) target = $region56
        $region55: #{tpu_custom_call.1} parent=11 // pred_region
          %434 = vsyncadd [#allocation10], 0
          %s435 = sshll.u32 %s11, 4
          %s436 = int_to_ptr.hbm [resolvable:$true] %s435
          %s437 = sshll.u32 [#allocation11], 4
          %s438 = int_to_ptr.vmem [resolvable:$true] %s437
          %443 = dma.hbm_to_vmem [thread:$0]  %s436, 4096, %s438, [#allocation10], 128, 128, 8
        $region56: #{tpu_custom_call.1} parent=11 // pred_fallthru
          _
        // Predicated region
        $region57: #{tpu_custom_call.1} parent=11 // pred_check
          %p444 = pneg %p317
        $region58: #{tpu_custom_call.1} parent=11 // pred_check_branch
          %446 = sbr.rel (%p444) target = $region60
        $region59: #{tpu_custom_call.1} parent=11 // pred_region
          _
        $region60: #{tpu_custom_call.1} parent=11 // pred_fallthru
          _
      $region12: #{tpu_custom_call.1} parent=5 // pred_fallthru
        _
      %p447 = scmp.lt.s32.totalorder %s25, 2
      // Predicated region
      $region61: #{tpu_custom_call.1} parent=5 // pred_check
        %p448 = pneg %p447
      $region62: #{tpu_custom_call.1} parent=5 // pred_check_branch
        %450 = sbr.rel (%p448) target = $region64
      $region63: #{tpu_custom_call.1} parent=5 // pred_region
        // Predicated region
        $region65: #{tpu_custom_call.1} parent=63 // pred_check
          %p451 = pneg %p59
        $region66: #{tpu_custom_call.1} parent=63 // pred_check_branch
          %453 = sbr.rel (%p451) target = $region68
        $region67: #{tpu_custom_call.1} parent=63 // pred_region
          %s454 = smul.u32 2, %s33
          %p455 = scmp.lt.s32.totalorder %s32, 1
          %s456 = scalar_select %p455, %s32, 1
          %p457 = scmp.lt.s32.totalorder %s454, 1
          %s458 = scalar_select %p457, %s454, 1
          %s459 = smul.addr %s456, 2
          %s460 = sadd.s32 %s458, %s459
          %s461 = smul.addr %s460, 8
          %s462 = scalar_lea.vmem %s0, %s461
          %s463 = smul.u32 2, %s33
        $region68: #{tpu_custom_call.1} parent=63 // pred_fallthru
          _
      $region64: #{tpu_custom_call.1} parent=5 // pred_fallthru
        _
      %p464 = scmp.le.s32.totalorder 1, %s25
      %p465 = scmp.lt.s32.totalorder %s25, 3
      %p466 = pnand %p464, %p465
      %p467 = pneg %p466
      // Predicated region
      $region69: #{tpu_custom_call.1} parent=5 // pred_check
        _
      $region70: #{tpu_custom_call.1} parent=5 // pred_check_branch
        %469 = sbr.rel (%p466) target = $region72
      $region71: #{tpu_custom_call.1} parent=5 // pred_region
        %s470 = ssub.s32 %s25, 1
        // Predicated region
        $region73: #{tpu_custom_call.1} parent=71 // pred_check
          %p471 = pneg %p107
        $region74: #{tpu_custom_call.1} parent=71 // pred_check_branch
          %473 = sbr.rel (%p471) target = $region76
        $region75: #{tpu_custom_call.1} parent=71 // pred_region
          %475 = dma.done [#allocation4], 16
        $region76: #{tpu_custom_call.1} parent=71 // pred_fallthru
          _
        // Predicated region
        $region77: #{tpu_custom_call.1} parent=71 // pred_check
          %p476 = pneg %p170
        $region78: #{tpu_custom_call.1} parent=71 // pred_check_branch
          %478 = sbr.rel (%p476) target = $region80
        $region79: #{tpu_custom_call.1} parent=71 // pred_region
          %480 = dma.done [#allocation7], 8192
        $region80: #{tpu_custom_call.1} parent=71 // pred_fallthru
          _
        // Predicated region
        $region81: #{tpu_custom_call.1} parent=71 // pred_check
          %p481 = pneg %p212
        $region82: #{tpu_custom_call.1} parent=71 // pred_check_branch
          %483 = sbr.rel (%p481) target = $region84
        $region83: #{tpu_custom_call.1} parent=71 // pred_region
          %485 = dma.done [#allocation7], 32768
        $region84: #{tpu_custom_call.1} parent=71 // pred_fallthru
          _
        // Predicated region
        $region85: #{tpu_custom_call.1} parent=71 // pred_check
          %p486 = pneg %p254
        $region86: #{tpu_custom_call.1} parent=71 // pred_check_branch
          %488 = sbr.rel (%p486) target = $region88
        $region87: #{tpu_custom_call.1} parent=71 // pred_region
          %490 = dma.done [#allocation10], 8192
        $region88: #{tpu_custom_call.1} parent=71 // pred_fallthru
          _
        // Predicated region
        $region89: #{tpu_custom_call.1} parent=71 // pred_check
          %p491 = pneg %p296
        $region90: #{tpu_custom_call.1} parent=71 // pred_check_branch
          %493 = sbr.rel (%p491) target = $region92
        $region91: #{tpu_custom_call.1} parent=71 // pred_region
          %495 = dma.done [#allocation10], 4096
        $region92: #{tpu_custom_call.1} parent=71 // pred_fallthru
          _
        %s496 = smul.u32 2, %s35
        %p497 = scmp.lt.s32.totalorder %s34, 1
        %s498 = scalar_select %p497, %s34, 1
        %p499 = scmp.lt.s32.totalorder %s496, 1
        %s500 = scalar_select %p499, %s496, 1
        %s501 = smul.addr %s498, 2
        %s502 = sadd.s32 %s500, %s501
        %s503 = smul.addr %s502, 8
        %s504 = scalar_lea.vmem %s0, %s503
        %p505 = pneg %p65
        %p506 = pneg %p62
        %p507 = pneg %p86
        %p508 = pneg %p83
        %p509 = pneg %p107
        %p510 = pneg %p104
        %p511 = pneg %p128
        %p512 = pneg %p125
        %p513 = pneg %p149
        %p514 = pneg %p146
        %p515 = pneg %p170
        %p516 = pneg %p167
        %p517 = pneg %p191
        %p518 = pneg %p188
        %p519 = pneg %p212
        %p520 = pneg %p209
        %p521 = pneg %p233
        %p522 = pneg %p230
        %p523 = pneg %p254
        %p524 = pneg %p251
        %p525 = pneg %p275
        %p526 = pneg %p272
        %p527 = pneg %p296
        %p528 = pneg %p293
        %p529 = pneg %p317
        %p530 = pneg %p314
        %p531 = pneg %p343
        %p532 = pneg %p340
        %s533 = sand.u32 %s330, 1
        %s534 = scalar_lea.sflag [#allocation5], %s533
        %s535 = sand.u32 %s330, 1
        %s536 = scalar_lea.vmem [#allocation12], %s535
        %s537 = smul.u32 2, %s35
        %p538 = scmp.lt.s32.totalorder %s34, 1
        %s539 = scalar_select %p538, %s34, 1
        %p540 = scmp.lt.s32.totalorder %s537, 1
        %s541 = scalar_select %p540, %s537, 1
        %s542 = smul.addr %s539, 2
        %s543 = sadd.s32 %s541, %s542
        %s544 = smul.addr %s543, 8
        %s545 = scalar_lea.vmem %s0, %s544
        %s546 = smul.u32 2, %s35
        %p548 = scmp.eq.s32.totalorder %s35, 0
        // Predicated region
        $region93: #{tpu_custom_call.1} parent=71 // pred_check
          %p549 = pneg %p548
        $region94: #{tpu_custom_call.1} parent=71 // pred_check_branch
          %551 = sbr.rel (%p549) target = $region96
        $region95: #{tpu_custom_call.1} parent=71 // pred_region
          %552 = vst [vmem:[#allocation2] sm:$0xff] -inf
        $region96: #{tpu_custom_call.1} parent=71 // pred_fallthru
          _
        %v553 = vld [vmem:[%s545] sm:$0xff]
        %v554 = vld [vmem:[%s545 + $0x8] sm:$0xff]
        %v555 = vpack.c.bf16 %v554, %v553
        %v556 = vld [vmem:[%s1] sm:$0xf]
        %v557 = vld [vmem:[#allocation3] sm:$0x1]
        %v559 = vperm.slane %v557, 0
        %vm561 = vcmask 64512
        %v563 = vsel %vm561, %v555, 0
        %vm565 = vcmask 1043456
        %v567 = vsel %vm565, %v556, 0
        %569 = vmatpush.bf16.msra.mxu0 0
        %570 = vmatpush.bf16.msra.mxu0 0
        %571 = vmatpush.bf16.msra.mxu0 0
        %572 = vmatpush.bf16.msra.mxu0 0
        %573 = vmatpush.bf16.msra.mxu0 0
        %574 = vmatpush.bf16.msra.mxu0 0
        %575 = vmatpush.bf16.msra.mxu0 0
        %576 = vmatpush.bf16.msra.mxu0 %v567
        %577 = vmatmul.bf16.gmra.mxu0 %v563
        %v578 = vpop.f32.mrf.mxu0
        %v579 = vadd.f32 %v559, %v578
        %v580 = vpop.f32.mrf.mxu0
        %v581 = vadd.f32 %v559, %v580
        %582 = vdwg.mxu0
        %v583 = vmax.f32 %v579, 0.0
        %v584 = vmax.f32 %v581, 0.0
        %v585 = vpack.c.bf16 %v584, %v583
        %v586 = vld [vmem:[%s3] sm:$0xf]
        %v587 = vld [vmem:[%s3 + $0x4] sm:$0xf]
        %v588 = vld [vmem:[%s3 + $0x8] sm:$0xf]
        %v589 = vld [vmem:[%s3 + $0xc] sm:$0xf]
        %v590 = vld [vmem:[%s3 + $0x10] sm:$0xf]
        %v591 = vld [vmem:[%s3 + $0x14] sm:$0xf]
        %v592 = vld [vmem:[%s3 + $0x18] sm:$0xf]
        %v593 = vld [vmem:[%s3 + $0x1c] sm:$0xf]
        %v594 = vld [vmem:[%s4] sm:$0x1]
        %v596 = vperm.slane %v594, 0
        %v606 = vunpack.c.l.b16 %v586
        %v607 = vunpack.c.l.b16 %v587
        %v608 = vunpack.c.l.b16 %v588
        %v609 = vunpack.c.l.b16 %v589
        %v610 = vunpack.c.l.b16 %v590
        %v611 = vunpack.c.l.b16 %v591
        %v612 = vunpack.c.l.b16 %v592
        %v613 = vunpack.c.l.b16 %v593
        %v614 = vpack.c.b16 %v607, %v606
        %v615 = vpack.c.b16 %v609, %v608
        %v616 = vpack.c.b16 %v611, %v610
        %v617 = vpack.c.b16 %v613, %v612
        %vm622 = vcmask 523264
        %v624 = vsel %vm622, %v585, 0
        %626 = vmatpush.bf16.msra.mxu0 0
        %627 = vmatpush.bf16.msra.mxu0 0
        %628 = vmatpush.bf16.msra.mxu0 0
        %629 = vmatpush.bf16.msra.mxu0 0
        %630 = vmatpush.bf16.msra.mxu0 %v617
        %631 = vmatpush.bf16.msra.mxu0 %v616
        %632 = vmatpush.bf16.msra.mxu0 %v615
        %633 = vmatpush.bf16.msra.mxu0 %v614
        %634 = vmatmul.bf16.gmra.mxu0 %v624
        %v635 = vpop.f32.mrf.mxu0
        %v636 = vadd.f32 %v596, %v635
        %v637 = vpop.f32.mrf.mxu0
        %v638 = vadd.f32 %v596, %v637
        %639 = vdwg.mxu0
        %v640 = vmax.f32 %v636, 0.0
        %v641 = vmax.f32 %v638, 0.0
        %v642 = vpack.c.bf16 %v641, %v640
        %v643 = vld [vmem:[#allocation6] sm:$0xff]
        %v644 = vld [vmem:[#allocation6 + $0x8] sm:$0xff]
        %v645 = vld [vmem:[#allocation6 + $0x10] sm:$0xff]
        %v646 = vld [vmem:[#allocation6 + $0x18] sm:$0xff]
        %v647 = vld [vmem:[#allocation6 + $0x20] sm:$0xff]
        %v648 = vld [vmem:[#allocation6 + $0x28] sm:$0xff]
        %v649 = vld [vmem:[#allocation6 + $0x30] sm:$0xff]
        %v650 = vld [vmem:[#allocation6 + $0x38] sm:$0xff]
        %v651 = vld [vmem:[#allocation6 + $0x40] sm:$0xff]
        %v652 = vld [vmem:[#allocation6 + $0x48] sm:$0xff]
        %v653 = vld [vmem:[#allocation6 + $0x50] sm:$0xff]
        %v654 = vld [vmem:[#allocation6 + $0x58] sm:$0xff]
        %v655 = vld [vmem:[#allocation6 + $0x60] sm:$0xff]
        %v656 = vld [vmem:[#allocation6 + $0x68] sm:$0xff]
        %v657 = vld [vmem:[#allocation6 + $0x70] sm:$0xff]
        %v658 = vld [vmem:[#allocation6 + $0x78] sm:$0xff]
        %v659 = vld [vmem:[#allocation6 + $0x80] sm:$0xff]
        %v660 = vld [vmem:[#allocation6 + $0x88] sm:$0xff]
        %v661 = vld [vmem:[#allocation6 + $0x90] sm:$0xff]
        %v662 = vld [vmem:[#allocation6 + $0x98] sm:$0xff]
        %v663 = vld [vmem:[#allocation6 + $0xa0] sm:$0xff]
        %v664 = vld [vmem:[#allocation6 + $0xa8] sm:$0xff]
        %v665 = vld [vmem:[#allocation6 + $0xb0] sm:$0xff]
        %v666 = vld [vmem:[#allocation6 + $0xb8] sm:$0xff]
        %v667 = vld [vmem:[#allocation6 + $0xc0] sm:$0xff]
        %v668 = vld [vmem:[#allocation6 + $0xc8] sm:$0xff]
        %v669 = vld [vmem:[#allocation6 + $0xd0] sm:$0xff]
        %v670 = vld [vmem:[#allocation6 + $0xd8] sm:$0xff]
        %v671 = vld [vmem:[#allocation6 + $0xe0] sm:$0xff]
        %v672 = vld [vmem:[#allocation6 + $0xe8] sm:$0xff]
        %v673 = vld [vmem:[#allocation6 + $0xf0] sm:$0xff]
        %v674 = vld [vmem:[#allocation6 + $0xf8] sm:$0xff]
        %v675 = vld [vmem:[#allocation6 + $0x100] sm:$0xff]
        %v676 = vld [vmem:[#allocation6 + $0x108] sm:$0xff]
        %v677 = vld [vmem:[#allocation6 + $0x110] sm:$0xff]
        %v678 = vld [vmem:[#allocation6 + $0x118] sm:$0xff]
        %v679 = vld [vmem:[#allocation6 + $0x120] sm:$0xff]
        %v680 = vld [vmem:[#allocation6 + $0x128] sm:$0xff]
        %v681 = vld [vmem:[#allocation6 + $0x130] sm:$0xff]
        %v682 = vld [vmem:[#allocation6 + $0x138] sm:$0xff]
        %v683 = vld [vmem:[#allocation6 + $0x140] sm:$0xff]
        %v684 = vld [vmem:[#allocation6 + $0x148] sm:$0xff]
        %v685 = vld [vmem:[#allocation6 + $0x150] sm:$0xff]
        %v686 = vld [vmem:[#allocation6 + $0x158] sm:$0xff]
        %v687 = vld [vmem:[#allocation6 + $0x160] sm:$0xff]
        %v688 = vld [vmem:[#allocation6 + $0x168] sm:$0xff]
        %v689 = vld [vmem:[#allocation6 + $0x170] sm:$0xff]
        %v690 = vld [vmem:[#allocation6 + $0x178] sm:$0xff]
        %v691 = vld [vmem:[#allocation6 + $0x180] sm:$0xff]
        %v692 = vld [vmem:[#allocation6 + $0x188] sm:$0xff]
        %v693 = vld [vmem:[#allocation6 + $0x190] sm:$0xff]
        %v694 = vld [vmem:[#allocation6 + $0x198] sm:$0xff]
        %v695 = vld [vmem:[#allocation6 + $0x1a0] sm:$0xff]
        %v696 = vld [vmem:[#allocation6 + $0x1a8] sm:$0xff]
        %v697 = vld [vmem:[#allocation6 + $0x1b0] sm:$0xff]
        %v698 = vld [vmem:[#allocation6 + $0x1b8] sm:$0xff]
        %v699 = vld [vmem:[#allocation6 + $0x1c0] sm:$0xff]
        %v700 = vld [vmem:[#allocation6 + $0x1c8] sm:$0xff]
        %v701 = vld [vmem:[#allocation6 + $0x1d0] sm:$0xff]
        %v702 = vld [vmem:[#allocation6 + $0x1d8] sm:$0xff]
        %v703 = vld [vmem:[#allocation6 + $0x1e0] sm:$0xff]
        %v704 = vld [vmem:[#allocation6 + $0x1e8] sm:$0xff]
        %v705 = vld [vmem:[#allocation6 + $0x1f0] sm:$0xff]
        %v706 = vld [vmem:[#allocation6 + $0x1f8] sm:$0xff]
        %v771 = vunpack.c.l.b16 %v643
        %v772 = vunpack.c.h.b16 %v643
        %v773 = vunpack.c.l.b16 %v644
        %v774 = vunpack.c.h.b16 %v644
        %v775 = vunpack.c.l.b16 %v645
        %v776 = vunpack.c.h.b16 %v645
        %v777 = vunpack.c.l.b16 %v646
        %v778 = vunpack.c.h.b16 %v646
        %v779 = vunpack.c.l.b16 %v647
        %v780 = vunpack.c.h.b16 %v647
        %v781 = vunpack.c.l.b16 %v648
        %v782 = vunpack.c.h.b16 %v648
        %v783 = vunpack.c.l.b16 %v649
        %v784 = vunpack.c.h.b16 %v649
        %v785 = vunpack.c.l.b16 %v650
        %v786 = vunpack.c.h.b16 %v650
        %v787 = vunpack.c.l.b16 %v651
        %v788 = vunpack.c.h.b16 %v651
        %v789 = vunpack.c.l.b16 %v652
        %v790 = vunpack.c.h.b16 %v652
        %v791 = vunpack.c.l.b16 %v653
        %v792 = vunpack.c.h.b16 %v653
        %v793 = vunpack.c.l.b16 %v654
        %v794 = vunpack.c.h.b16 %v654
        %v795 = vunpack.c.l.b16 %v655
        %v796 = vunpack.c.h.b16 %v655
        %v797 = vunpack.c.l.b16 %v656
        %v798 = vunpack.c.h.b16 %v656
        %v799 = vunpack.c.l.b16 %v657
        %v800 = vunpack.c.h.b16 %v657
        %v801 = vunpack.c.l.b16 %v658
        %v802 = vunpack.c.h.b16 %v658
        %v803 = vunpack.c.l.b16 %v659
        %v804 = vunpack.c.h.b16 %v659
        %v805 = vunpack.c.l.b16 %v660
        %v806 = vunpack.c.h.b16 %v660
        %v807 = vunpack.c.l.b16 %v661
        %v808 = vunpack.c.h.b16 %v661
        %v809 = vunpack.c.l.b16 %v662
        %v810 = vunpack.c.h.b16 %v662
        %v811 = vunpack.c.l.b16 %v663
        %v812 = vunpack.c.h.b16 %v663
        %v813 = vunpack.c.l.b16 %v664
        %v814 = vunpack.c.h.b16 %v664
        %v815 = vunpack.c.l.b16 %v665
        %v816 = vunpack.c.h.b16 %v665
        %v817 = vunpack.c.l.b16 %v666
        %v818 = vunpack.c.h.b16 %v666
        %v819 = vunpack.c.l.b16 %v667
        %v820 = vunpack.c.h.b16 %v667
        %v821 = vunpack.c.l.b16 %v668
        %v822 = vunpack.c.h.b16 %v668
        %v823 = vunpack.c.l.b16 %v669
        %v824 = vunpack.c.h.b16 %v669
        %v825 = vunpack.c.l.b16 %v670
        %v826 = vunpack.c.h.b16 %v670
        %v827 = vunpack.c.l.b16 %v671
        %v828 = vunpack.c.h.b16 %v671
        %v829 = vunpack.c.l.b16 %v672
        %v830 = vunpack.c.h.b16 %v672
        %v831 = vunpack.c.l.b16 %v673
        %v832 = vunpack.c.h.b16 %v673
        %v833 = vunpack.c.l.b16 %v674
        %v834 = vunpack.c.h.b16 %v674
        %v835 = vunpack.c.l.b16 %v675
        %v836 = vunpack.c.h.b16 %v675
        %v837 = vunpack.c.l.b16 %v676
        %v838 = vunpack.c.h.b16 %v676
        %v839 = vunpack.c.l.b16 %v677
        %v840 = vunpack.c.h.b16 %v677
        %v841 = vunpack.c.l.b16 %v678
        %v842 = vunpack.c.h.b16 %v678
        %v843 = vunpack.c.l.b16 %v679
        %v844 = vunpack.c.h.b16 %v679
        %v845 = vunpack.c.l.b16 %v680
        %v846 = vunpack.c.h.b16 %v680
        %v847 = vunpack.c.l.b16 %v681
        %v848 = vunpack.c.h.b16 %v681
        %v849 = vunpack.c.l.b16 %v682
        %v850 = vunpack.c.h.b16 %v682
        %v851 = vunpack.c.l.b16 %v683
        %v852 = vunpack.c.h.b16 %v683
        %v853 = vunpack.c.l.b16 %v684
        %v854 = vunpack.c.h.b16 %v684
        %v855 = vunpack.c.l.b16 %v685
        %v856 = vunpack.c.h.b16 %v685
        %v857 = vunpack.c.l.b16 %v686
        %v858 = vunpack.c.h.b16 %v686
        %v859 = vunpack.c.l.b16 %v687
        %v860 = vunpack.c.h.b16 %v687
        %v861 = vunpack.c.l.b16 %v688
        %v862 = vunpack.c.h.b16 %v688
        %v863 = vunpack.c.l.b16 %v689
        %v864 = vunpack.c.h.b16 %v689
        %v865 = vunpack.c.l.b16 %v690
        %v866 = vunpack.c.h.b16 %v690
        %v867 = vunpack.c.l.b16 %v691
        %v868 = vunpack.c.h.b16 %v691
        %v869 = vunpack.c.l.b16 %v692
        %v870 = vunpack.c.h.b16 %v692
        %v871 = vunpack.c.l.b16 %v693
        %v872 = vunpack.c.h.b16 %v693
        %v873 = vunpack.c.l.b16 %v694
        %v874 = vunpack.c.h.b16 %v694
        %v875 = vunpack.c.l.b16 %v695
        %v876 = vunpack.c.h.b16 %v695
        %v877 = vunpack.c.l.b16 %v696
        %v878 = vunpack.c.h.b16 %v696
        %v879 = vunpack.c.l.b16 %v697
        %v880 = vunpack.c.h.b16 %v697
        %v881 = vunpack.c.l.b16 %v698
        %v882 = vunpack.c.h.b16 %v698
        %v883 = vunpack.c.l.b16 %v699
        %v884 = vunpack.c.h.b16 %v699
        %v885 = vunpack.c.l.b16 %v700
        %v886 = vunpack.c.h.b16 %v700
        %v887 = vunpack.c.l.b16 %v701
        %v888 = vunpack.c.h.b16 %v701
        %v889 = vunpack.c.l.b16 %v702
        %v890 = vunpack.c.h.b16 %v702
        %v891 = vunpack.c.l.b16 %v703
        %v892 = vunpack.c.h.b16 %v703
        %v893 = vunpack.c.l.b16 %v704
        %v894 = vunpack.c.h.b16 %v704
        %v895 = vunpack.c.l.b16 %v705
        %v896 = vunpack.c.h.b16 %v705
        %v897 = vunpack.c.l.b16 %v706
        %v898 = vunpack.c.h.b16 %v706
        %v899 = vpack.c.b16 %v779, %v771
        %v900 = vpack.c.b16 %v780, %v772
        %v901 = vpack.c.b16 %v781, %v773
        %v902 = vpack.c.b16 %v782, %v774
        %v903 = vpack.c.b16 %v783, %v775
        %v904 = vpack.c.b16 %v784, %v776
        %v905 = vpack.c.b16 %v785, %v777
        %v906 = vpack.c.b16 %v786, %v778
        %v907 = vpack.c.b16 %v795, %v787
        %v908 = vpack.c.b16 %v796, %v788
        %v909 = vpack.c.b16 %v797, %v789
        %v910 = vpack.c.b16 %v798, %v790
        %v911 = vpack.c.b16 %v799, %v791
        %v912 = vpack.c.b16 %v800, %v792
        %v913 = vpack.c.b16 %v801, %v793
        %v914 = vpack.c.b16 %v802, %v794
        %v915 = vpack.c.b16 %v811, %v803
        %v916 = vpack.c.b16 %v812, %v804
        %v917 = vpack.c.b16 %v813, %v805
        %v918 = vpack.c.b16 %v814, %v806
        %v919 = vpack.c.b16 %v815, %v807
        %v920 = vpack.c.b16 %v816, %v808
        %v921 = vpack.c.b16 %v817, %v809
        %v922 = vpack.c.b16 %v818, %v810
        %v923 = vpack.c.b16 %v827, %v819
        %v924 = vpack.c.b16 %v828, %v820
        %v925 = vpack.c.b16 %v829, %v821
        %v926 = vpack.c.b16 %v830, %v822
        %v927 = vpack.c.b16 %v831, %v823
        %v928 = vpack.c.b16 %v832, %v824
        %v929 = vpack.c.b16 %v833, %v825
        %v930 = vpack.c.b16 %v834, %v826
        %v931 = vpack.c.b16 %v843, %v835
        %v932 = vpack.c.b16 %v844, %v836
        %v933 = vpack.c.b16 %v845, %v837
        %v934 = vpack.c.b16 %v846, %v838
        %v935 = vpack.c.b16 %v847, %v839
        %v936 = vpack.c.b16 %v848, %v840
        %v937 = vpack.c.b16 %v849, %v841
        %v938 = vpack.c.b16 %v850, %v842
        %v939 = vpack.c.b16 %v859, %v851
        %v940 = vpack.c.b16 %v860, %v852
        %v941 = vpack.c.b16 %v861, %v853
        %v942 = vpack.c.b16 %v862, %v854
        %v943 = vpack.c.b16 %v863, %v855
        %v944 = vpack.c.b16 %v864, %v856
        %v945 = vpack.c.b16 %v865, %v857
        %v946 = vpack.c.b16 %v866, %v858
        %v947 = vpack.c.b16 %v875, %v867
        %v948 = vpack.c.b16 %v876, %v868
        %v949 = vpack.c.b16 %v877, %v869
        %v950 = vpack.c.b16 %v878, %v870
        %v951 = vpack.c.b16 %v879, %v871
        %v952 = vpack.c.b16 %v880, %v872
        %v953 = vpack.c.b16 %v881, %v873
        %v954 = vpack.c.b16 %v882, %v874
        %v955 = vpack.c.b16 %v891, %v883
        %v956 = vpack.c.b16 %v892, %v884
        %v957 = vpack.c.b16 %v893, %v885
        %v958 = vpack.c.b16 %v894, %v886
        %v959 = vpack.c.b16 %v895, %v887
        %v960 = vpack.c.b16 %v896, %v888
        %v961 = vpack.c.b16 %v897, %v889
        %v962 = vpack.c.b16 %v898, %v890
        %1027 = vmatpush.bf16.msra.mxu0 %v955
        %1028 = vmatpush.bf16.msra.mxu0 %v947
        %1029 = vmatpush.bf16.msra.mxu0 %v939
        %1030 = vmatpush.bf16.msra.mxu0 %v931
        %1031 = vmatpush.bf16.msra.mxu0 %v923
        %1032 = vmatpush.bf16.msra.mxu0 %v915
        %1033 = vmatpush.bf16.msra.mxu0 %v907
        %1034 = vmatpush.bf16.msra.mxu0 %v899
        %1035 = vmatmul.bf16.gmra.mxu0 %v642
        %v1036 = vpop.f32.mrf.mxu0
        %v1037 = vadd.f32 0.0, %v1036
        %v1038 = vpop.f32.mrf.mxu0
        %v1039 = vadd.f32 0.0, %v1038
        %1040 = vdwg.mxu0
        %1041 = vmatpush.bf16.msra.mxu0 %v956
        %1042 = vmatpush.bf16.msra.mxu0 %v948
        %1043 = vmatpush.bf16.msra.mxu0 %v940
        %1044 = vmatpush.bf16.msra.mxu0 %v932
        %1045 = vmatpush.bf16.msra.mxu0 %v924
        %1046 = vmatpush.bf16.msra.mxu0 %v916
        %1047 = vmatpush.bf16.msra.mxu0 %v908
        %1048 = vmatpush.bf16.msra.mxu0 %v900
        %1049 = vmatmul.bf16.gmra.mxu0 %v642
        %v1050 = vpop.f32.mrf.mxu0
        %v1051 = vadd.f32 0.0, %v1050
        %v1052 = vpop.f32.mrf.mxu0
        %v1053 = vadd.f32 0.0, %v1052
        %1054 = vdwg.mxu0
        %1055 = vmatpush.bf16.msra.mxu0 %v957
        %1056 = vmatpush.bf16.msra.mxu0 %v949
        %1057 = vmatpush.bf16.msra.mxu0 %v941
        %1058 = vmatpush.bf16.msra.mxu0 %v933
        %1059 = vmatpush.bf16.msra.mxu0 %v925
        %1060 = vmatpush.bf16.msra.mxu0 %v917
        %1061 = vmatpush.bf16.msra.mxu0 %v909
        %1062 = vmatpush.bf16.msra.mxu0 %v901
        %1063 = vmatmul.bf16.gmra.mxu0 %v642
        %v1064 = vpop.f32.mrf.mxu0
        %v1065 = vadd.f32 0.0, %v1064
        %v1066 = vpop.f32.mrf.mxu0
        %v1067 = vadd.f32 0.0, %v1066
        %1068 = vdwg.mxu0
        %1069 = vmatpush.bf16.msra.mxu0 %v958
        %1070 = vmatpush.bf16.msra.mxu0 %v950
        %1071 = vmatpush.bf16.msra.mxu0 %v942
        %1072 = vmatpush.bf16.msra.mxu0 %v934
        %1073 = vmatpush.bf16.msra.mxu0 %v926
        %1074 = vmatpush.bf16.msra.mxu0 %v918
        %1075 = vmatpush.bf16.msra.mxu0 %v910
        %1076 = vmatpush.bf16.msra.mxu0 %v902
        %1077 = vmatmul.bf16.gmra.mxu0 %v642
        %v1078 = vpop.f32.mrf.mxu0
        %v1079 = vadd.f32 0.0, %v1078
        %v1080 = vpop.f32.mrf.mxu0
        %v1081 = vadd.f32 0.0, %v1080
        %1082 = vdwg.mxu0
        %1083 = vmatpush.bf16.msra.mxu0 %v959
        %1084 = vmatpush.bf16.msra.mxu0 %v951
        %1085 = vmatpush.bf16.msra.mxu0 %v943
        %1086 = vmatpush.bf16.msra.mxu0 %v935
        %1087 = vmatpush.bf16.msra.mxu0 %v927
        %1088 = vmatpush.bf16.msra.mxu0 %v919
        %1089 = vmatpush.bf16.msra.mxu0 %v911
        %1090 = vmatpush.bf16.msra.mxu0 %v903
        %1091 = vmatmul.bf16.gmra.mxu0 %v642
        %v1092 = vpop.f32.mrf.mxu0
        %v1093 = vadd.f32 0.0, %v1092
        %v1094 = vpop.f32.mrf.mxu0
        %v1095 = vadd.f32 0.0, %v1094
        %1096 = vdwg.mxu0
        %1097 = vmatpush.bf16.msra.mxu0 %v960
        %1098 = vmatpush.bf16.msra.mxu0 %v952
        %1099 = vmatpush.bf16.msra.mxu0 %v944
        %1100 = vmatpush.bf16.msra.mxu0 %v936
        %1101 = vmatpush.bf16.msra.mxu0 %v928
        %1102 = vmatpush.bf16.msra.mxu0 %v920
        %1103 = vmatpush.bf16.msra.mxu0 %v912
        %1104 = vmatpush.bf16.msra.mxu0 %v904
        %1105 = vmatmul.bf16.gmra.mxu0 %v642
        %v1106 = vpop.f32.mrf.mxu0
        %v1107 = vadd.f32 0.0, %v1106
        %v1108 = vpop.f32.mrf.mxu0
        %v1109 = vadd.f32 0.0, %v1108
        %1110 = vdwg.mxu0
        %1111 = vmatpush.bf16.msra.mxu0 %v961
        %1112 = vmatpush.bf16.msra.mxu0 %v953
        %1113 = vmatpush.bf16.msra.mxu0 %v945
        %1114 = vmatpush.bf16.msra.mxu0 %v937
        %1115 = vmatpush.bf16.msra.mxu0 %v929
        %1116 = vmatpush.bf16.msra.mxu0 %v921
        %1117 = vmatpush.bf16.msra.mxu0 %v913
        %1118 = vmatpush.bf16.msra.mxu0 %v905
        %1119 = vmatmul.bf16.gmra.mxu0 %v642
        %v1120 = vpop.f32.mrf.mxu0
        %v1121 = vadd.f32 0.0, %v1120
        %v1122 = vpop.f32.mrf.mxu0
        %v1123 = vadd.f32 0.0, %v1122
        %1124 = vdwg.mxu0
        %1125 = vmatpush.bf16.msra.mxu0 %v962
        %1126 = vmatpush.bf16.msra.mxu0 %v954
        %1127 = vmatpush.bf16.msra.mxu0 %v946
        %1128 = vmatpush.bf16.msra.mxu0 %v938
        %1129 = vmatpush.bf16.msra.mxu0 %v930
        %1130 = vmatpush.bf16.msra.mxu0 %v922
        %1131 = vmatpush.bf16.msra.mxu0 %v914
        %1132 = vmatpush.bf16.msra.mxu0 %v906
        %1133 = vmatmul.bf16.gmra.mxu0 %v642
        %v1134 = vpop.f32.mrf.mxu0
        %v1135 = vadd.f32 0.0, %v1134
        %v1136 = vpop.f32.mrf.mxu0
        %v1137 = vadd.f32 0.0, %v1136
        %1138 = vdwg.mxu0
        %v1139 = vmax.f32 %v1037, %v1039
        %v1140 = vrot.slane %v1139, 4
        %v1141 = vmax.f32 %v1139, %v1140
        %v1142 = vrot.slane %v1141, 2
        %v1143 = vmax.f32 %v1141, %v1142
        %v1144 = vrot.slane %v1143, 1
        %v1145 = vmax.f32 %v1143, %v1144
        %v1146 = vmax.f32 %v1051, %v1053
        %v1147 = vrot.slane %v1146, 4
        %v1148 = vmax.f32 %v1146, %v1147
        %v1149 = vrot.slane %v1148, 2
        %v1150 = vmax.f32 %v1148, %v1149
        %v1151 = vrot.slane %v1150, 1
        %v1152 = vmax.f32 %v1150, %v1151
        %v1153 = vmax.f32 %v1065, %v1067
        %v1154 = vrot.slane %v1153, 4
        %v1155 = vmax.f32 %v1153, %v1154
        %v1156 = vrot.slane %v1155, 2
        %v1157 = vmax.f32 %v1155, %v1156
        %v1158 = vrot.slane %v1157, 1
        %v1159 = vmax.f32 %v1157, %v1158
        %v1160 = vmax.f32 %v1079, %v1081
        %v1161 = vrot.slane %v1160, 4
        %v1162 = vmax.f32 %v1160, %v1161
        %v1163 = vrot.slane %v1162, 2
        %v1164 = vmax.f32 %v1162, %v1163
        %v1165 = vrot.slane %v1164, 1
        %v1166 = vmax.f32 %v1164, %v1165
        %v1167 = vmax.f32 %v1093, %v1095
        %v1168 = vrot.slane %v1167, 4
        %v1169 = vmax.f32 %v1167, %v1168
        %v1170 = vrot.slane %v1169, 2
        %v1171 = vmax.f32 %v1169, %v1170
        %v1172 = vrot.slane %v1171, 1
        %v1173 = vmax.f32 %v1171, %v1172
        %v1174 = vmax.f32 %v1107, %v1109
        %v1175 = vrot.slane %v1174, 4
        %v1176 = vmax.f32 %v1174, %v1175
        %v1177 = vrot.slane %v1176, 2
        %v1178 = vmax.f32 %v1176, %v1177
        %v1179 = vrot.slane %v1178, 1
        %v1180 = vmax.f32 %v1178, %v1179
        %v1181 = vmax.f32 %v1121, %v1123
        %v1182 = vrot.slane %v1181, 4
        %v1183 = vmax.f32 %v1181, %v1182
        %v1184 = vrot.slane %v1183, 2
        %v1185 = vmax.f32 %v1183, %v1184
        %v1186 = vrot.slane %v1185, 1
        %v1187 = vmax.f32 %v1185, %v1186
        %v1188 = vmax.f32 %v1135, %v1137
        %v1189 = vrot.slane %v1188, 4
        %v1190 = vmax.f32 %v1188, %v1189
        %v1191 = vrot.slane %v1190, 2
        %v1192 = vmax.f32 %v1190, %v1191
        %v1193 = vrot.slane %v1192, 1
        %v1194 = vmax.f32 %v1192, %v1193
        %v1195 = vld [vmem:[#allocation2] sm:$0xff]
        %v1204 = vrot.slane %v1152, 7
        %v1205 = vrot.slane %v1159, 6
        %v1206 = vrot.slane %v1166, 5
        %v1207 = vrot.slane %v1173, 4
        %v1208 = vrot.slane %v1180, 3
        %v1209 = vrot.slane %v1187, 2
        %v1210 = vrot.slane %v1194, 1
        %vm1211 = vcmask 1040384
        %v1212 = vsel %vm1211, %v1145, %v1204
        %vm1213 = vcmask 1042434
        %v1214 = vsel %vm1213, %v1205, %v1206
        %vm1215 = vcmask 1041408
        %v1216 = vsel %vm1215, %v1212, %v1214
        %vm1217 = vcmask 1044484
        %v1218 = vsel %vm1217, %v1207, %v1208
        %vm1219 = vcmask 1046534
        %v1220 = vsel %vm1219, %v1209, %v1210
        %vm1221 = vcmask 1045508
        %v1222 = vsel %vm1221, %v1218, %v1220
        %v1223 = vsel %vm565, %v1216, %v1222
        %v1225 = vmax.f32 %v1195, %v1223
        %1226 = vst [vmem:[#allocation2] sm:$0xff] %v1225
        // Predicated region
        $region97: #{tpu_custom_call.1} parent=71 // pred_check
          %p1227 = pneg %p548
        $region98: #{tpu_custom_call.1} parent=71 // pred_check_branch
          %1229 = sbr.rel (%p1227) target = $region100
        $region99: #{tpu_custom_call.1} parent=71 // pred_region
          %v1230 = vld [vmem:[#allocation2] sm:$0xff]
          %v1231 = vld [vmem:[%s6] sm:$0xff]
          %v1232 = vadd.f32 %v1230, %v1231
          %v1233 = vmax.f32 %v1232, 0.0
          %v1235 = vperm.slane %v1233, 0
          %v1236 = vperm.slane %v1233, 1
          %v1237 = vperm.slane %v1233, 2
          %v1238 = vperm.slane %v1233, 3
          %v1239 = vperm.slane %v1233, 4
          %v1240 = vperm.slane %v1233, 5
          %v1241 = vperm.slane %v1233, 6
          %v1242 = vperm.slane %v1233, 7
          %v1251 = vpack.c.bf16 %v1235, %v1235
          %v1252 = vpack.c.bf16 %v1236, %v1236
          %v1253 = vpack.c.bf16 %v1237, %v1237
          %v1254 = vpack.c.bf16 %v1238, %v1238
          %v1255 = vpack.c.bf16 %v1239, %v1239
          %v1256 = vpack.c.bf16 %v1240, %v1240
          %v1257 = vpack.c.bf16 %v1241, %v1241
          %v1258 = vpack.c.bf16 %v1242, %v1242
          %v1259 = vld [vmem:[#allocation8] sm:$0xff]
          %v1260 = vld [vmem:[#allocation8 + $0x8] sm:$0xff]
          %v1261 = vld [vmem:[#allocation8 + $0x10] sm:$0xff]
          %v1262 = vld [vmem:[#allocation8 + $0x18] sm:$0xff]
          %v1263 = vld [vmem:[#allocation8 + $0x20] sm:$0xff]
          %v1264 = vld [vmem:[#allocation8 + $0x28] sm:$0xff]
          %v1265 = vld [vmem:[#allocation8 + $0x30] sm:$0xff]
          %v1266 = vld [vmem:[#allocation8 + $0x38] sm:$0xff]
          %v1267 = vld [vmem:[#allocation8 + $0x40] sm:$0xff]
          %v1268 = vld [vmem:[#allocation8 + $0x48] sm:$0xff]
          %v1269 = vld [vmem:[#allocation8 + $0x50] sm:$0xff]
          %v1270 = vld [vmem:[#allocation8 + $0x58] sm:$0xff]
          %v1271 = vld [vmem:[#allocation8 + $0x60] sm:$0xff]
          %v1272 = vld [vmem:[#allocation8 + $0x68] sm:$0xff]
          %v1273 = vld [vmem:[#allocation8 + $0x70] sm:$0xff]
          %v1274 = vld [vmem:[#allocation8 + $0x78] sm:$0xff]
          %v1275 = vld [vmem:[#allocation8 + $0x80] sm:$0xff]
          %v1276 = vld [vmem:[#allocation8 + $0x88] sm:$0xff]
          %v1277 = vld [vmem:[#allocation8 + $0x90] sm:$0xff]
          %v1278 = vld [vmem:[#allocation8 + $0x98] sm:$0xff]
          %v1279 = vld [vmem:[#allocation8 + $0xa0] sm:$0xff]
          %v1280 = vld [vmem:[#allocation8 + $0xa8] sm:$0xff]
          %v1281 = vld [vmem:[#allocation8 + $0xb0] sm:$0xff]
          %v1282 = vld [vmem:[#allocation8 + $0xb8] sm:$0xff]
          %v1283 = vld [vmem:[#allocation8 + $0xc0] sm:$0xff]
          %v1284 = vld [vmem:[#allocation8 + $0xc8] sm:$0xff]
          %v1285 = vld [vmem:[#allocation8 + $0xd0] sm:$0xff]
          %v1286 = vld [vmem:[#allocation8 + $0xd8] sm:$0xff]
          %v1287 = vld [vmem:[#allocation8 + $0xe0] sm:$0xff]
          %v1288 = vld [vmem:[#allocation8 + $0xe8] sm:$0xff]
          %v1289 = vld [vmem:[#allocation8 + $0xf0] sm:$0xff]
          %v1290 = vld [vmem:[#allocation8 + $0xf8] sm:$0xff]
          %v1291 = vld [vmem:[#allocation8 + $0x100] sm:$0xff]
          %v1292 = vld [vmem:[#allocation8 + $0x108] sm:$0xff]
          %v1293 = vld [vmem:[#allocation8 + $0x110] sm:$0xff]
          %v1294 = vld [vmem:[#allocation8 + $0x118] sm:$0xff]
          %v1295 = vld [vmem:[#allocation8 + $0x120] sm:$0xff]
          %v1296 = vld [vmem:[#allocation8 + $0x128] sm:$0xff]
          %v1297 = vld [vmem:[#allocation8 + $0x130] sm:$0xff]
          %v1298 = vld [vmem:[#allocation8 + $0x138] sm:$0xff]
          %v1299 = vld [vmem:[#allocation8 + $0x140] sm:$0xff]
          %v1300 = vld [vmem:[#allocation8 + $0x148] sm:$0xff]
          %v1301 = vld [vmem:[#allocation8 + $0x150] sm:$0xff]
          %v1302 = vld [vmem:[#allocation8 + $0x158] sm:$0xff]
          %v1303 = vld [vmem:[#allocation8 + $0x160] sm:$0xff]
          %v1304 = vld [vmem:[#allocation8 + $0x168] sm:$0xff]
          %v1305 = vld [vmem:[#allocation8 + $0x170] sm:$0xff]
          %v1306 = vld [vmem:[#allocation8 + $0x178] sm:$0xff]
          %v1307 = vld [vmem:[#allocation8 + $0x180] sm:$0xff]
          %v1308 = vld [vmem:[#allocation8 + $0x188] sm:$0xff]
          %v1309 = vld [vmem:[#allocation8 + $0x190] sm:$0xff]
          %v1310 = vld [vmem:[#allocation8 + $0x198] sm:$0xff]
          %v1311 = vld [vmem:[#allocation8 + $0x1a0] sm:$0xff]
          %v1312 = vld [vmem:[#allocation8 + $0x1a8] sm:$0xff]
          %v1313 = vld [vmem:[#allocation8 + $0x1b0] sm:$0xff]
          %v1314 = vld [vmem:[#allocation8 + $0x1b8] sm:$0xff]
          %v1315 = vld [vmem:[#allocation8 + $0x1c0] sm:$0xff]
          %v1316 = vld [vmem:[#allocation8 + $0x1c8] sm:$0xff]
          %v1317 = vld [vmem:[#allocation8 + $0x1d0] sm:$0xff]
          %v1318 = vld [vmem:[#allocation8 + $0x1d8] sm:$0xff]
          %v1319 = vld [vmem:[#allocation8 + $0x1e0] sm:$0xff]
          %v1320 = vld [vmem:[#allocation8 + $0x1e8] sm:$0xff]
          %v1321 = vld [vmem:[#allocation8 + $0x1f0] sm:$0xff]
          %v1322 = vld [vmem:[#allocation8 + $0x1f8] sm:$0xff]
          %v1323 = vld [vmem:[#allocation8 + $0x200] sm:$0xff]
          %v1324 = vld [vmem:[#allocation8 + $0x208] sm:$0xff]
          %v1325 = vld [vmem:[#allocation8 + $0x210] sm:$0xff]
          %v1326 = vld [vmem:[#allocation8 + $0x218] sm:$0xff]
          %v1327 = vld [vmem:[#allocation8 + $0x220] sm:$0xff]
          %v1328 = vld [vmem:[#allocation8 + $0x228] sm:$0xff]
          %v1329 = vld [vmem:[#allocation8 + $0x230] sm:$0xff]
          %v1330 = vld [vmem:[#allocation8 + $0x238] sm:$0xff]
          %v1331 = vld [vmem:[#allocation8 + $0x240] sm:$0xff]
          %v1332 = vld [vmem:[#allocation8 + $0x248] sm:$0xff]
          %v1333 = vld [vmem:[#allocation8 + $0x250] sm:$0xff]
          %v1334 = vld [vmem:[#allocation8 + $0x258] sm:$0xff]
          %v1335 = vld [vmem:[#allocation8 + $0x260] sm:$0xff]
          %v1336 = vld [vmem:[#allocation8 + $0x268] sm:$0xff]
          %v1337 = vld [vmem:[#allocation8 + $0x270] sm:$0xff]
          %v1338 = vld [vmem:[#allocation8 + $0x278] sm:$0xff]
          %v1339 = vld [vmem:[#allocation8 + $0x280] sm:$0xff]
          %v1340 = vld [vmem:[#allocation8 + $0x288] sm:$0xff]
          %v1341 = vld [vmem:[#allocation8 + $0x290] sm:$0xff]
          %v1342 = vld [vmem:[#allocation8 + $0x298] sm:$0xff]
          %v1343 = vld [vmem:[#allocation8 + $0x2a0] sm:$0xff]
          %v1344 = vld [vmem:[#allocation8 + $0x2a8] sm:$0xff]
          %v1345 = vld [vmem:[#allocation8 + $0x2b0] sm:$0xff]
          %v1346 = vld [vmem:[#allocation8 + $0x2b8] sm:$0xff]
          %v1347 = vld [vmem:[#allocation8 + $0x2c0] sm:$0xff]
          %v1348 = vld [vmem:[#allocation8 + $0x2c8] sm:$0xff]
          %v1349 = vld [vmem:[#allocation8 + $0x2d0] sm:$0xff]
          %v1350 = vld [vmem:[#allocation8 + $0x2d8] sm:$0xff]
          %v1351 = vld [vmem:[#allocation8 + $0x2e0] sm:$0xff]
          %v1352 = vld [vmem:[#allocation8 + $0x2e8] sm:$0xff]
          %v1353 = vld [vmem:[#allocation8 + $0x2f0] sm:$0xff]
          %v1354 = vld [vmem:[#allocation8 + $0x2f8] sm:$0xff]
          %v1355 = vld [vmem:[#allocation8 + $0x300] sm:$0xff]
          %v1356 = vld [vmem:[#allocation8 + $0x308] sm:$0xff]
          %v1357 = vld [vmem:[#allocation8 + $0x310] sm:$0xff]
          %v1358 = vld [vmem:[#allocation8 + $0x318] sm:$0xff]
          %v1359 = vld [vmem:[#allocation8 + $0x320] sm:$0xff]
          %v1360 = vld [vmem:[#allocation8 + $0x328] sm:$0xff]
          %v1361 = vld [vmem:[#allocation8 + $0x330] sm:$0xff]
          %v1362 = vld [vmem:[#allocation8 + $0x338] sm:$0xff]
          %v1363 = vld [vmem:[#allocation8 + $0x340] sm:$0xff]
          %v1364 = vld [vmem:[#allocation8 + $0x348] sm:$0xff]
          %v1365 = vld [vmem:[#allocation8 + $0x350] sm:$0xff]
          %v1366 = vld [vmem:[#allocation8 + $0x358] sm:$0xff]
          %v1367 = vld [vmem:[#allocation8 + $0x360] sm:$0xff]
          %v1368 = vld [vmem:[#allocation8 + $0x368] sm:$0xff]
          %v1369 = vld [vmem:[#allocation8 + $0x370] sm:$0xff]
          %v1370 = vld [vmem:[#allocation8 + $0x378] sm:$0xff]
          %v1371 = vld [vmem:[#allocation8 + $0x380] sm:$0xff]
          %v1372 = vld [vmem:[#allocation8 + $0x388] sm:$0xff]
          %v1373 = vld [vmem:[#allocation8 + $0x390] sm:$0xff]
          %v1374 = vld [vmem:[#allocation8 + $0x398] sm:$0xff]
          %v1375 = vld [vmem:[#allocation8 + $0x3a0] sm:$0xff]
          %v1376 = vld [vmem:[#allocation8 + $0x3a8] sm:$0xff]
          %v1377 = vld [vmem:[#allocation8 + $0x3b0] sm:$0xff]
          %v1378 = vld [vmem:[#allocation8 + $0x3b8] sm:$0xff]
          %v1379 = vld [vmem:[#allocation8 + $0x3c0] sm:$0xff]
          %v1380 = vld [vmem:[#allocation8 + $0x3c8] sm:$0xff]
          %v1381 = vld [vmem:[#allocation8 + $0x3d0] sm:$0xff]
          %v1382 = vld [vmem:[#allocation8 + $0x3d8] sm:$0xff]
          %v1383 = vld [vmem:[#allocation8 + $0x3e0] sm:$0xff]
          %v1384 = vld [vmem:[#allocation8 + $0x3e8] sm:$0xff]
          %v1385 = vld [vmem:[#allocation8 + $0x3f0] sm:$0xff]
          %v1386 = vld [vmem:[#allocation8 + $0x3f8] sm:$0xff]
          %v1387 = vld [vmem:[#allocation8 + $0x400] sm:$0xff]
          %v1388 = vld [vmem:[#allocation8 + $0x408] sm:$0xff]
          %v1389 = vld [vmem:[#allocation8 + $0x410] sm:$0xff]
          %v1390 = vld [vmem:[#allocation8 + $0x418] sm:$0xff]
          %v1391 = vld [vmem:[#allocation8 + $0x420] sm:$0xff]
          %v1392 = vld [vmem:[#allocation8 + $0x428] sm:$0xff]
          %v1393 = vld [vmem:[#allocation8 + $0x430] sm:$0xff]
          %v1394 = vld [vmem:[#allocation8 + $0x438] sm:$0xff]
          %v1395 = vld [vmem:[#allocation8 + $0x440] sm:$0xff]
          %v1396 = vld [vmem:[#allocation8 + $0x448] sm:$0xff]
          %v1397 = vld [vmem:[#allocation8 + $0x450] sm:$0xff]
          %v1398 = vld [vmem:[#allocation8 + $0x458] sm:$0xff]
          %v1399 = vld [vmem:[#allocation8 + $0x460] sm:$0xff]
          %v1400 = vld [vmem:[#allocation8 + $0x468] sm:$0xff]
          %v1401 = vld [vmem:[#allocation8 + $0x470] sm:$0xff]
          %v1402 = vld [vmem:[#allocation8 + $0x478] sm:$0xff]
          %v1403 = vld [vmem:[#allocation8 + $0x480] sm:$0xff]
          %v1404 = vld [vmem:[#allocation8 + $0x488] sm:$0xff]
          %v1405 = vld [vmem:[#allocation8 + $0x490] sm:$0xff]
          %v1406 = vld [vmem:[#allocation8 + $0x498] sm:$0xff]
          %v1407 = vld [vmem:[#allocation8 + $0x4a0] sm:$0xff]
          %v1408 = vld [vmem:[#allocation8 + $0x4a8] sm:$0xff]
          %v1409 = vld [vmem:[#allocation8 + $0x4b0] sm:$0xff]
          %v1410 = vld [vmem:[#allocation8 + $0x4b8] sm:$0xff]
          %v1411 = vld [vmem:[#allocation8 + $0x4c0] sm:$0xff]
          %v1412 = vld [vmem:[#allocation8 + $0x4c8] sm:$0xff]
          %v1413 = vld [vmem:[#allocation8 + $0x4d0] sm:$0xff]
          %v1414 = vld [vmem:[#allocation8 + $0x4d8] sm:$0xff]
          %v1415 = vld [vmem:[#allocation8 + $0x4e0] sm:$0xff]
          %v1416 = vld [vmem:[#allocation8 + $0x4e8] sm:$0xff]
          %v1417 = vld [vmem:[#allocation8 + $0x4f0] sm:$0xff]
          %v1418 = vld [vmem:[#allocation8 + $0x4f8] sm:$0xff]
          %v1419 = vld [vmem:[#allocation8 + $0x500] sm:$0xff]
          %v1420 = vld [vmem:[#allocation8 + $0x508] sm:$0xff]
          %v1421 = vld [vmem:[#allocation8 + $0x510] sm:$0xff]
          %v1422 = vld [vmem:[#allocation8 + $0x518] sm:$0xff]
          %v1423 = vld [vmem:[#allocation8 + $0x520] sm:$0xff]
          %v1424 = vld [vmem:[#allocation8 + $0x528] sm:$0xff]
          %v1425 = vld [vmem:[#allocation8 + $0x530] sm:$0xff]
          %v1426 = vld [vmem:[#allocation8 + $0x538] sm:$0xff]
          %v1427 = vld [vmem:[#allocation8 + $0x540] sm:$0xff]
          %v1428 = vld [vmem:[#allocation8 + $0x548] sm:$0xff]
          %v1429 = vld [vmem:[#allocation8 + $0x550] sm:$0xff]
          %v1430 = vld [vmem:[#allocation8 + $0x558] sm:$0xff]
          %v1431 = vld [vmem:[#allocation8 + $0x560] sm:$0xff]
          %v1432 = vld [vmem:[#allocation8 + $0x568] sm:$0xff]
          %v1433 = vld [vmem:[#allocation8 + $0x570] sm:$0xff]
          %v1434 = vld [vmem:[#allocation8 + $0x578] sm:$0xff]
          %v1435 = vld [vmem:[#allocation8 + $0x580] sm:$0xff]
          %v1436 = vld [vmem:[#allocation8 + $0x588] sm:$0xff]
          %v1437 = vld [vmem:[#allocation8 + $0x590] sm:$0xff]
          %v1438 = vld [vmem:[#allocation8 + $0x598] sm:$0xff]
          %v1439 = vld [vmem:[#allocation8 + $0x5a0] sm:$0xff]
          %v1440 = vld [vmem:[#allocation8 + $0x5a8] sm:$0xff]
          %v1441 = vld [vmem:[#allocation8 + $0x5b0] sm:$0xff]
          %v1442 = vld [vmem:[#allocation8 + $0x5b8] sm:$0xff]
          %v1443 = vld [vmem:[#allocation8 + $0x5c0] sm:$0xff]
          %v1444 = vld [vmem:[#allocation8 + $0x5c8] sm:$0xff]
          %v1445 = vld [vmem:[#allocation8 + $0x5d0] sm:$0xff]
          %v1446 = vld [vmem:[#allocation8 + $0x5d8] sm:$0xff]
          %v1447 = vld [vmem:[#allocation8 + $0x5e0] sm:$0xff]
          %v1448 = vld [vmem:[#allocation8 + $0x5e8] sm:$0xff]
          %v1449 = vld [vmem:[#allocation8 + $0x5f0] sm:$0xff]
          %v1450 = vld [vmem:[#allocation8 + $0x5f8] sm:$0xff]
          %v1451 = vld [vmem:[#allocation8 + $0x600] sm:$0xff]
          %v1452 = vld [vmem:[#allocation8 + $0x608] sm:$0xff]
          %v1453 = vld [vmem:[#allocation8 + $0x610] sm:$0xff]
          %v1454 = vld [vmem:[#allocation8 + $0x618] sm:$0xff]
          %v1455 = vld [vmem:[#allocation8 + $0x620] sm:$0xff]
          %v1456 = vld [vmem:[#allocation8 + $0x628] sm:$0xff]
          %v1457 = vld [vmem:[#allocation8 + $0x630] sm:$0xff]
          %v1458 = vld [vmem:[#allocation8 + $0x638] sm:$0xff]
          %v1459 = vld [vmem:[#allocation8 + $0x640] sm:$0xff]
          %v1460 = vld [vmem:[#allocation8 + $0x648] sm:$0xff]
          %v1461 = vld [vmem:[#allocation8 + $0x650] sm:$0xff]
          %v1462 = vld [vmem:[#allocation8 + $0x658] sm:$0xff]
          %v1463 = vld [vmem:[#allocation8 + $0x660] sm:$0xff]
          %v1464 = vld [vmem:[#allocation8 + $0x668] sm:$0xff]
          %v1465 = vld [vmem:[#allocation8 + $0x670] sm:$0xff]
          %v1466 = vld [vmem:[#allocation8 + $0x678] sm:$0xff]
          %v1467 = vld [vmem:[#allocation8 + $0x680] sm:$0xff]
          %v1468 = vld [vmem:[#allocation8 + $0x688] sm:$0xff]
          %v1469 = vld [vmem:[#allocation8 + $0x690] sm:$0xff]
          %v1470 = vld [vmem:[#allocation8 + $0x698] sm:$0xff]
          %v1471 = vld [vmem:[#allocation8 + $0x6a0] sm:$0xff]
          %v1472 = vld [vmem:[#allocation8 + $0x6a8] sm:$0xff]
          %v1473 = vld [vmem:[#allocation8 + $0x6b0] sm:$0xff]
          %v1474 = vld [vmem:[#allocation8 + $0x6b8] sm:$0xff]
          %v1475 = vld [vmem:[#allocation8 + $0x6c0] sm:$0xff]
          %v1476 = vld [vmem:[#allocation8 + $0x6c8] sm:$0xff]
          %v1477 = vld [vmem:[#allocation8 + $0x6d0] sm:$0xff]
          %v1478 = vld [vmem:[#allocation8 + $0x6d8] sm:$0xff]
          %v1479 = vld [vmem:[#allocation8 + $0x6e0] sm:$0xff]
          %v1480 = vld [vmem:[#allocation8 + $0x6e8] sm:$0xff]
          %v1481 = vld [vmem:[#allocation8 + $0x6f0] sm:$0xff]
          %v1482 = vld [vmem:[#allocation8 + $0x6f8] sm:$0xff]
          %v1483 = vld [vmem:[#allocation8 + $0x700] sm:$0xff]
          %v1484 = vld [vmem:[#allocation8 + $0x708] sm:$0xff]
          %v1485 = vld [vmem:[#allocation8 + $0x710] sm:$0xff]
          %v1486 = vld [vmem:[#allocation8 + $0x718] sm:$0xff]
          %v1487 = vld [vmem:[#allocation8 + $0x720] sm:$0xff]
          %v1488 = vld [vmem:[#allocation8 + $0x728] sm:$0xff]
          %v1489 = vld [vmem:[#allocation8 + $0x730] sm:$0xff]
          %v1490 = vld [vmem:[#allocation8 + $0x738] sm:$0xff]
          %v1491 = vld [vmem:[#allocation8 + $0x740] sm:$0xff]
          %v1492 = vld [vmem:[#allocation8 + $0x748] sm:$0xff]
          %v1493 = vld [vmem:[#allocation8 + $0x750] sm:$0xff]
          %v1494 = vld [vmem:[#allocation8 + $0x758] sm:$0xff]
          %v1495 = vld [vmem:[#allocation8 + $0x760] sm:$0xff]
          %v1496 = vld [vmem:[#allocation8 + $0x768] sm:$0xff]
          %v1497 = vld [vmem:[#allocation8 + $0x770] sm:$0xff]
          %v1498 = vld [vmem:[#allocation8 + $0x778] sm:$0xff]
          %v1499 = vld [vmem:[#allocation8 + $0x780] sm:$0xff]
          %v1500 = vld [vmem:[#allocation8 + $0x788] sm:$0xff]
          %v1501 = vld [vmem:[#allocation8 + $0x790] sm:$0xff]
          %v1502 = vld [vmem:[#allocation8 + $0x798] sm:$0xff]
          %v1503 = vld [vmem:[#allocation8 + $0x7a0] sm:$0xff]
          %v1504 = vld [vmem:[#allocation8 + $0x7a8] sm:$0xff]
          %v1505 = vld [vmem:[#allocation8 + $0x7b0] sm:$0xff]
          %v1506 = vld [vmem:[#allocation8 + $0x7b8] sm:$0xff]
          %v1507 = vld [vmem:[#allocation8 + $0x7c0] sm:$0xff]
          %v1508 = vld [vmem:[#allocation8 + $0x7c8] sm:$0xff]
          %v1509 = vld [vmem:[#allocation8 + $0x7d0] sm:$0xff]
          %v1510 = vld [vmem:[#allocation8 + $0x7d8] sm:$0xff]
          %v1511 = vld [vmem:[#allocation8 + $0x7e0] sm:$0xff]
          %v1512 = vld [vmem:[#allocation8 + $0x7e8] sm:$0xff]
          %v1513 = vld [vmem:[#allocation8 + $0x7f0] sm:$0xff]
          %v1514 = vld [vmem:[#allocation8 + $0x7f8] sm:$0xff]
          %v1515 = vld [vmem:[%s8] sm:$0xf]
          %v1772 = vunpack.c.l.b16 %v1259
          %v1773 = vunpack.c.h.b16 %v1259
          %v1774 = vunpack.c.l.b16 %v1260
          %v1775 = vunpack.c.h.b16 %v1260
          %v1776 = vunpack.c.l.b16 %v1261
          %v1777 = vunpack.c.h.b16 %v1261
          %v1778 = vunpack.c.l.b16 %v1262
          %v1779 = vunpack.c.h.b16 %v1262
          %v1780 = vunpack.c.l.b16 %v1263
          %v1781 = vunpack.c.h.b16 %v1263
          %v1782 = vunpack.c.l.b16 %v1264
          %v1783 = vunpack.c.h.b16 %v1264
          %v1784 = vunpack.c.l.b16 %v1265
          %v1785 = vunpack.c.h.b16 %v1265
          %v1786 = vunpack.c.l.b16 %v1266
          %v1787 = vunpack.c.h.b16 %v1266
          %v1788 = vunpack.c.l.b16 %v1267
          %v1789 = vunpack.c.h.b16 %v1267
          %v1790 = vunpack.c.l.b16 %v1268
          %v1791 = vunpack.c.h.b16 %v1268
          %v1792 = vunpack.c.l.b16 %v1269
          %v1793 = vunpack.c.h.b16 %v1269
          %v1794 = vunpack.c.l.b16 %v1270
          %v1795 = vunpack.c.h.b16 %v1270
          %v1796 = vunpack.c.l.b16 %v1271
          %v1797 = vunpack.c.h.b16 %v1271
          %v1798 = vunpack.c.l.b16 %v1272
          %v1799 = vunpack.c.h.b16 %v1272
          %v1800 = vunpack.c.l.b16 %v1273
          %v1801 = vunpack.c.h.b16 %v1273
          %v1802 = vunpack.c.l.b16 %v1274
          %v1803 = vunpack.c.h.b16 %v1274
          %v1804 = vunpack.c.l.b16 %v1275
          %v1805 = vunpack.c.h.b16 %v1275
          %v1806 = vunpack.c.l.b16 %v1276
          %v1807 = vunpack.c.h.b16 %v1276
          %v1808 = vunpack.c.l.b16 %v1277
          %v1809 = vunpack.c.h.b16 %v1277
          %v1810 = vunpack.c.l.b16 %v1278
          %v1811 = vunpack.c.h.b16 %v1278
          %v1812 = vunpack.c.l.b16 %v1279
          %v1813 = vunpack.c.h.b16 %v1279
          %v1814 = vunpack.c.l.b16 %v1280
          %v1815 = vunpack.c.h.b16 %v1280
          %v1816 = vunpack.c.l.b16 %v1281
          %v1817 = vunpack.c.h.b16 %v1281
          %v1818 = vunpack.c.l.b16 %v1282
          %v1819 = vunpack.c.h.b16 %v1282
          %v1820 = vunpack.c.l.b16 %v1283
          %v1821 = vunpack.c.h.b16 %v1283
          %v1822 = vunpack.c.l.b16 %v1284
          %v1823 = vunpack.c.h.b16 %v1284
          %v1824 = vunpack.c.l.b16 %v1285
          %v1825 = vunpack.c.h.b16 %v1285
          %v1826 = vunpack.c.l.b16 %v1286
          %v1827 = vunpack.c.h.b16 %v1286
          %v1828 = vunpack.c.l.b16 %v1287
          %v1829 = vunpack.c.h.b16 %v1287
          %v1830 = vunpack.c.l.b16 %v1288
          %v1831 = vunpack.c.h.b16 %v1288
          %v1832 = vunpack.c.l.b16 %v1289
          %v1833 = vunpack.c.h.b16 %v1289
          %v1834 = vunpack.c.l.b16 %v1290
          %v1835 = vunpack.c.h.b16 %v1290
          %v1836 = vunpack.c.l.b16 %v1291
          %v1837 = vunpack.c.h.b16 %v1291
          %v1838 = vunpack.c.l.b16 %v1292
          %v1839 = vunpack.c.h.b16 %v1292
          %v1840 = vunpack.c.l.b16 %v1293
          %v1841 = vunpack.c.h.b16 %v1293
          %v1842 = vunpack.c.l.b16 %v1294
          %v1843 = vunpack.c.h.b16 %v1294
          %v1844 = vunpack.c.l.b16 %v1295
          %v1845 = vunpack.c.h.b16 %v1295
          %v1846 = vunpack.c.l.b16 %v1296
          %v1847 = vunpack.c.h.b16 %v1296
          %v1848 = vunpack.c.l.b16 %v1297
          %v1849 = vunpack.c.h.b16 %v1297
          %v1850 = vunpack.c.l.b16 %v1298
          %v1851 = vunpack.c.h.b16 %v1298
          %v1852 = vunpack.c.l.b16 %v1299
          %v1853 = vunpack.c.h.b16 %v1299
          %v1854 = vunpack.c.l.b16 %v1300
          %v1855 = vunpack.c.h.b16 %v1300
          %v1856 = vunpack.c.l.b16 %v1301
          %v1857 = vunpack.c.h.b16 %v1301
          %v1858 = vunpack.c.l.b16 %v1302
          %v1859 = vunpack.c.h.b16 %v1302
          %v1860 = vunpack.c.l.b16 %v1303
          %v1861 = vunpack.c.h.b16 %v1303
          %v1862 = vunpack.c.l.b16 %v1304
          %v1863 = vunpack.c.h.b16 %v1304
          %v1864 = vunpack.c.l.b16 %v1305
          %v1865 = vunpack.c.h.b16 %v1305
          %v1866 = vunpack.c.l.b16 %v1306
          %v1867 = vunpack.c.h.b16 %v1306
          %v1868 = vunpack.c.l.b16 %v1307
          %v1869 = vunpack.c.h.b16 %v1307
          %v1870 = vunpack.c.l.b16 %v1308
          %v1871 = vunpack.c.h.b16 %v1308
          %v1872 = vunpack.c.l.b16 %v1309
          %v1873 = vunpack.c.h.b16 %v1309
          %v1874 = vunpack.c.l.b16 %v1310
          %v1875 = vunpack.c.h.b16 %v1310
          %v1876 = vunpack.c.l.b16 %v1311
          %v1877 = vunpack.c.h.b16 %v1311
          %v1878 = vunpack.c.l.b16 %v1312
          %v1879 = vunpack.c.h.b16 %v1312
          %v1880 = vunpack.c.l.b16 %v1313
          %v1881 = vunpack.c.h.b16 %v1313
          %v1882 = vunpack.c.l.b16 %v1314
          %v1883 = vunpack.c.h.b16 %v1314
          %v1884 = vunpack.c.l.b16 %v1315
          %v1885 = vunpack.c.h.b16 %v1315
          %v1886 = vunpack.c.l.b16 %v1316
          %v1887 = vunpack.c.h.b16 %v1316
          %v1888 = vunpack.c.l.b16 %v1317
          %v1889 = vunpack.c.h.b16 %v1317
          %v1890 = vunpack.c.l.b16 %v1318
          %v1891 = vunpack.c.h.b16 %v1318
          %v1892 = vunpack.c.l.b16 %v1319
          %v1893 = vunpack.c.h.b16 %v1319
          %v1894 = vunpack.c.l.b16 %v1320
          %v1895 = vunpack.c.h.b16 %v1320
          %v1896 = vunpack.c.l.b16 %v1321
          %v1897 = vunpack.c.h.b16 %v1321
          %v1898 = vunpack.c.l.b16 %v1322
          %v1899 = vunpack.c.h.b16 %v1322
          %v1900 = vunpack.c.l.b16 %v1323
          %v1901 = vunpack.c.h.b16 %v1323
          %v1902 = vunpack.c.l.b16 %v1324
          %v1903 = vunpack.c.h.b16 %v1324
          %v1904 = vunpack.c.l.b16 %v1325
          %v1905 = vunpack.c.h.b16 %v1325
          %v1906 = vunpack.c.l.b16 %v1326
          %v1907 = vunpack.c.h.b16 %v1326
          %v1908 = vunpack.c.l.b16 %v1327
          %v1909 = vunpack.c.h.b16 %v1327
          %v1910 = vunpack.c.l.b16 %v1328
          %v1911 = vunpack.c.h.b16 %v1328
          %v1912 = vunpack.c.l.b16 %v1329
          %v1913 = vunpack.c.h.b16 %v1329
          %v1914 = vunpack.c.l.b16 %v1330
          %v1915 = vunpack.c.h.b16 %v1330
          %v1916 = vunpack.c.l.b16 %v1331
          %v1917 = vunpack.c.h.b16 %v1331
          %v1918 = vunpack.c.l.b16 %v1332
          %v1919 = vunpack.c.h.b16 %v1332
          %v1920 = vunpack.c.l.b16 %v1333
          %v1921 = vunpack.c.h.b16 %v1333
          %v1922 = vunpack.c.l.b16 %v1334
          %v1923 = vunpack.c.h.b16 %v1334
          %v1924 = vunpack.c.l.b16 %v1335
          %v1925 = vunpack.c.h.b16 %v1335
          %v1926 = vunpack.c.l.b16 %v1336
          %v1927 = vunpack.c.h.b16 %v1336
          %v1928 = vunpack.c.l.b16 %v1337
          %v1929 = vunpack.c.h.b16 %v1337
          %v1930 = vunpack.c.l.b16 %v1338
          %v1931 = vunpack.c.h.b16 %v1338
          %v1932 = vunpack.c.l.b16 %v1339
          %v1933 = vunpack.c.h.b16 %v1339
          %v1934 = vunpack.c.l.b16 %v1340
          %v1935 = vunpack.c.h.b16 %v1340
          %v1936 = vunpack.c.l.b16 %v1341
          %v1937 = vunpack.c.h.b16 %v1341
          %v1938 = vunpack.c.l.b16 %v1342
          %v1939 = vunpack.c.h.b16 %v1342
          %v1940 = vunpack.c.l.b16 %v1343
          %v1941 = vunpack.c.h.b16 %v1343
          %v1942 = vunpack.c.l.b16 %v1344
          %v1943 = vunpack.c.h.b16 %v1344
          %v1944 = vunpack.c.l.b16 %v1345
          %v1945 = vunpack.c.h.b16 %v1345
          %v1946 = vunpack.c.l.b16 %v1346
          %v1947 = vunpack.c.h.b16 %v1346
          %v1948 = vunpack.c.l.b16 %v1347
          %v1949 = vunpack.c.h.b16 %v1347
          %v1950 = vunpack.c.l.b16 %v1348
          %v1951 = vunpack.c.h.b16 %v1348
          %v1952 = vunpack.c.l.b16 %v1349
          %v1953 = vunpack.c.h.b16 %v1349
          %v1954 = vunpack.c.l.b16 %v1350
          %v1955 = vunpack.c.h.b16 %v1350
          %v1956 = vunpack.c.l.b16 %v1351
          %v1957 = vunpack.c.h.b16 %v1351
          %v1958 = vunpack.c.l.b16 %v1352
          %v1959 = vunpack.c.h.b16 %v1352
          %v1960 = vunpack.c.l.b16 %v1353
          %v1961 = vunpack.c.h.b16 %v1353
          %v1962 = vunpack.c.l.b16 %v1354
          %v1963 = vunpack.c.h.b16 %v1354
          %v1964 = vunpack.c.l.b16 %v1355
          %v1965 = vunpack.c.h.b16 %v1355
          %v1966 = vunpack.c.l.b16 %v1356
          %v1967 = vunpack.c.h.b16 %v1356
          %v1968 = vunpack.c.l.b16 %v1357
          %v1969 = vunpack.c.h.b16 %v1357
          %v1970 = vunpack.c.l.b16 %v1358
          %v1971 = vunpack.c.h.b16 %v1358
          %v1972 = vunpack.c.l.b16 %v1359
          %v1973 = vunpack.c.h.b16 %v1359
          %v1974 = vunpack.c.l.b16 %v1360
          %v1975 = vunpack.c.h.b16 %v1360
          %v1976 = vunpack.c.l.b16 %v1361
          %v1977 = vunpack.c.h.b16 %v1361
          %v1978 = vunpack.c.l.b16 %v1362
          %v1979 = vunpack.c.h.b16 %v1362
          %v1980 = vunpack.c.l.b16 %v1363
          %v1981 = vunpack.c.h.b16 %v1363
          %v1982 = vunpack.c.l.b16 %v1364
          %v1983 = vunpack.c.h.b16 %v1364
          %v1984 = vunpack.c.l.b16 %v1365
          %v1985 = vunpack.c.h.b16 %v1365
          %v1986 = vunpack.c.l.b16 %v1366
          %v1987 = vunpack.c.h.b16 %v1366
          %v1988 = vunpack.c.l.b16 %v1367
          %v1989 = vunpack.c.h.b16 %v1367
          %v1990 = vunpack.c.l.b16 %v1368
          %v1991 = vunpack.c.h.b16 %v1368
          %v1992 = vunpack.c.l.b16 %v1369
          %v1993 = vunpack.c.h.b16 %v1369
          %v1994 = vunpack.c.l.b16 %v1370
          %v1995 = vunpack.c.h.b16 %v1370
          %v1996 = vunpack.c.l.b16 %v1371
          %v1997 = vunpack.c.h.b16 %v1371
          %v1998 = vunpack.c.l.b16 %v1372
          %v1999 = vunpack.c.h.b16 %v1372
          %v2000 = vunpack.c.l.b16 %v1373
          %v2001 = vunpack.c.h.b16 %v1373
          %v2002 = vunpack.c.l.b16 %v1374
          %v2003 = vunpack.c.h.b16 %v1374
          %v2004 = vunpack.c.l.b16 %v1375
          %v2005 = vunpack.c.h.b16 %v1375
          %v2006 = vunpack.c.l.b16 %v1376
          %v2007 = vunpack.c.h.b16 %v1376
          %v2008 = vunpack.c.l.b16 %v1377
          %v2009 = vunpack.c.h.b16 %v1377
          %v2010 = vunpack.c.l.b16 %v1378
          %v2011 = vunpack.c.h.b16 %v1378
          %v2012 = vunpack.c.l.b16 %v1379
          %v2013 = vunpack.c.h.b16 %v1379
          %v2014 = vunpack.c.l.b16 %v1380
          %v2015 = vunpack.c.h.b16 %v1380
          %v2016 = vunpack.c.l.b16 %v1381
          %v2017 = vunpack.c.h.b16 %v1381
          %v2018 = vunpack.c.l.b16 %v1382
          %v2019 = vunpack.c.h.b16 %v1382
          %v2020 = vunpack.c.l.b16 %v1383
          %v2021 = vunpack.c.h.b16 %v1383
          %v2022 = vunpack.c.l.b16 %v1384
          %v2023 = vunpack.c.h.b16 %v1384
          %v2024 = vunpack.c.l.b16 %v1385
          %v2025 = vunpack.c.h.b16 %v1385
          %v2026 = vunpack.c.l.b16 %v1386
          %v2027 = vunpack.c.h.b16 %v1386
          %v2028 = vunpack.c.l.b16 %v1387
          %v2029 = vunpack.c.h.b16 %v1387
          %v2030 = vunpack.c.l.b16 %v1388
          %v2031 = vunpack.c.h.b16 %v1388
          %v2032 = vunpack.c.l.b16 %v1389
          %v2033 = vunpack.c.h.b16 %v1389
          %v2034 = vunpack.c.l.b16 %v1390
          %v2035 = vunpack.c.h.b16 %v1390
          %v2036 = vunpack.c.l.b16 %v1391
          %v2037 = vunpack.c.h.b16 %v1391
          %v2038 = vunpack.c.l.b16 %v1392
          %v2039 = vunpack.c.h.b16 %v1392
          %v2040 = vunpack.c.l.b16 %v1393
          %v2041 = vunpack.c.h.b16 %v1393
          %v2042 = vunpack.c.l.b16 %v1394
          %v2043 = vunpack.c.h.b16 %v1394
          %v2044 = vunpack.c.l.b16 %v1395
          %v2045 = vunpack.c.h.b16 %v1395
          %v2046 = vunpack.c.l.b16 %v1396
          %v2047 = vunpack.c.h.b16 %v1396
          %v2048 = vunpack.c.l.b16 %v1397
          %v2049 = vunpack.c.h.b16 %v1397
          %v2050 = vunpack.c.l.b16 %v1398
          %v2051 = vunpack.c.h.b16 %v1398
          %v2052 = vunpack.c.l.b16 %v1399
          %v2053 = vunpack.c.h.b16 %v1399
          %v2054 = vunpack.c.l.b16 %v1400
          %v2055 = vunpack.c.h.b16 %v1400
          %v2056 = vunpack.c.l.b16 %v1401
          %v2057 = vunpack.c.h.b16 %v1401
          %v2058 = vunpack.c.l.b16 %v1402
          %v2059 = vunpack.c.h.b16 %v1402
          %v2060 = vunpack.c.l.b16 %v1403
          %v2061 = vunpack.c.h.b16 %v1403
          %v2062 = vunpack.c.l.b16 %v1404
          %v2063 = vunpack.c.h.b16 %v1404
          %v2064 = vunpack.c.l.b16 %v1405
          %v2065 = vunpack.c.h.b16 %v1405
          %v2066 = vunpack.c.l.b16 %v1406
          %v2067 = vunpack.c.h.b16 %v1406
          %v2068 = vunpack.c.l.b16 %v1407
          %v2069 = vunpack.c.h.b16 %v1407
          %v2070 = vunpack.c.l.b16 %v1408
          %v2071 = vunpack.c.h.b16 %v1408
          %v2072 = vunpack.c.l.b16 %v1409
          %v2073 = vunpack.c.h.b16 %v1409
          %v2074 = vunpack.c.l.b16 %v1410
          %v2075 = vunpack.c.h.b16 %v1410
          %v2076 = vunpack.c.l.b16 %v1411
          %v2077 = vunpack.c.h.b16 %v1411
          %v2078 = vunpack.c.l.b16 %v1412
          %v2079 = vunpack.c.h.b16 %v1412
          %v2080 = vunpack.c.l.b16 %v1413
          %v2081 = vunpack.c.h.b16 %v1413
          %v2082 = vunpack.c.l.b16 %v1414
          %v2083 = vunpack.c.h.b16 %v1414
          %v2084 = vunpack.c.l.b16 %v1415
          %v2085 = vunpack.c.h.b16 %v1415
          %v2086 = vunpack.c.l.b16 %v1416
          %v2087 = vunpack.c.h.b16 %v1416
          %v2088 = vunpack.c.l.b16 %v1417
          %v2089 = vunpack.c.h.b16 %v1417
          %v2090 = vunpack.c.l.b16 %v1418
          %v2091 = vunpack.c.h.b16 %v1418
          %v2092 = vunpack.c.l.b16 %v1419
          %v2093 = vunpack.c.h.b16 %v1419
          %v2094 = vunpack.c.l.b16 %v1420
          %v2095 = vunpack.c.h.b16 %v1420
          %v2096 = vunpack.c.l.b16 %v1421
          %v2097 = vunpack.c.h.b16 %v1421
          %v2098 = vunpack.c.l.b16 %v1422
          %v2099 = vunpack.c.h.b16 %v1422
          %v2100 = vunpack.c.l.b16 %v1423
          %v2101 = vunpack.c.h.b16 %v1423
          %v2102 = vunpack.c.l.b16 %v1424
          %v2103 = vunpack.c.h.b16 %v1424
          %v2104 = vunpack.c.l.b16 %v1425
          %v2105 = vunpack.c.h.b16 %v1425
          %v2106 = vunpack.c.l.b16 %v1426
          %v2107 = vunpack.c.h.b16 %v1426
          %v2108 = vunpack.c.l.b16 %v1427
          %v2109 = vunpack.c.h.b16 %v1427
          %v2110 = vunpack.c.l.b16 %v1428
          %v2111 = vunpack.c.h.b16 %v1428
          %v2112 = vunpack.c.l.b16 %v1429
          %v2113 = vunpack.c.h.b16 %v1429
          %v2114 = vunpack.c.l.b16 %v1430
          %v2115 = vunpack.c.h.b16 %v1430
          %v2116 = vunpack.c.l.b16 %v1431
          %v2117 = vunpack.c.h.b16 %v1431
          %v2118 = vunpack.c.l.b16 %v1432
          %v2119 = vunpack.c.h.b16 %v1432
          %v2120 = vunpack.c.l.b16 %v1433
          %v2121 = vunpack.c.h.b16 %v1433
          %v2122 = vunpack.c.l.b16 %v1434
          %v2123 = vunpack.c.h.b16 %v1434
          %v2124 = vunpack.c.l.b16 %v1435
          %v2125 = vunpack.c.h.b16 %v1435
          %v2126 = vunpack.c.l.b16 %v1436
          %v2127 = vunpack.c.h.b16 %v1436
          %v2128 = vunpack.c.l.b16 %v1437
          %v2129 = vunpack.c.h.b16 %v1437
          %v2130 = vunpack.c.l.b16 %v1438
          %v2131 = vunpack.c.h.b16 %v1438
          %v2132 = vunpack.c.l.b16 %v1439
          %v2133 = vunpack.c.h.b16 %v1439
          %v2134 = vunpack.c.l.b16 %v1440
          %v2135 = vunpack.c.h.b16 %v1440
          %v2136 = vunpack.c.l.b16 %v1441
          %v2137 = vunpack.c.h.b16 %v1441
          %v2138 = vunpack.c.l.b16 %v1442
          %v2139 = vunpack.c.h.b16 %v1442
          %v2140 = vunpack.c.l.b16 %v1443
          %v2141 = vunpack.c.h.b16 %v1443
          %v2142 = vunpack.c.l.b16 %v1444
          %v2143 = vunpack.c.h.b16 %v1444
          %v2144 = vunpack.c.l.b16 %v1445
          %v2145 = vunpack.c.h.b16 %v1445
          %v2146 = vunpack.c.l.b16 %v1446
          %v2147 = vunpack.c.h.b16 %v1446
          %v2148 = vunpack.c.l.b16 %v1447
          %v2149 = vunpack.c.h.b16 %v1447
          %v2150 = vunpack.c.l.b16 %v1448
          %v2151 = vunpack.c.h.b16 %v1448
          %v2152 = vunpack.c.l.b16 %v1449
          %v2153 = vunpack.c.h.b16 %v1449
          %v2154 = vunpack.c.l.b16 %v1450
          %v2155 = vunpack.c.h.b16 %v1450
          %v2156 = vunpack.c.l.b16 %v1451
          %v2157 = vunpack.c.h.b16 %v1451
          %v2158 = vunpack.c.l.b16 %v1452
          %v2159 = vunpack.c.h.b16 %v1452
          %v2160 = vunpack.c.l.b16 %v1453
          %v2161 = vunpack.c.h.b16 %v1453
          %v2162 = vunpack.c.l.b16 %v1454
          %v2163 = vunpack.c.h.b16 %v1454
          %v2164 = vunpack.c.l.b16 %v1455
          %v2165 = vunpack.c.h.b16 %v1455
          %v2166 = vunpack.c.l.b16 %v1456
          %v2167 = vunpack.c.h.b16 %v1456
          %v2168 = vunpack.c.l.b16 %v1457
          %v2169 = vunpack.c.h.b16 %v1457
          %v2170 = vunpack.c.l.b16 %v1458
          %v2171 = vunpack.c.h.b16 %v1458
          %v2172 = vunpack.c.l.b16 %v1459
          %v2173 = vunpack.c.h.b16 %v1459
          %v2174 = vunpack.c.l.b16 %v1460
          %v2175 = vunpack.c.h.b16 %v1460
          %v2176 = vunpack.c.l.b16 %v1461
          %v2177 = vunpack.c.h.b16 %v1461
          %v2178 = vunpack.c.l.b16 %v1462
          %v2179 = vunpack.c.h.b16 %v1462
          %v2180 = vunpack.c.l.b16 %v1463
          %v2181 = vunpack.c.h.b16 %v1463
          %v2182 = vunpack.c.l.b16 %v1464
          %v2183 = vunpack.c.h.b16 %v1464
          %v2184 = vunpack.c.l.b16 %v1465
          %v2185 = vunpack.c.h.b16 %v1465
          %v2186 = vunpack.c.l.b16 %v1466
          %v2187 = vunpack.c.h.b16 %v1466
          %v2188 = vunpack.c.l.b16 %v1467
          %v2189 = vunpack.c.h.b16 %v1467
          %v2190 = vunpack.c.l.b16 %v1468
          %v2191 = vunpack.c.h.b16 %v1468
          %v2192 = vunpack.c.l.b16 %v1469
          %v2193 = vunpack.c.h.b16 %v1469
          %v2194 = vunpack.c.l.b16 %v1470
          %v2195 = vunpack.c.h.b16 %v1470
          %v2196 = vunpack.c.l.b16 %v1471
          %v2197 = vunpack.c.h.b16 %v1471
          %v2198 = vunpack.c.l.b16 %v1472
          %v2199 = vunpack.c.h.b16 %v1472
          %v2200 = vunpack.c.l.b16 %v1473
          %v2201 = vunpack.c.h.b16 %v1473
          %v2202 = vunpack.c.l.b16 %v1474
          %v2203 = vunpack.c.h.b16 %v1474
          %v2204 = vunpack.c.l.b16 %v1475
          %v2205 = vunpack.c.h.b16 %v1475
          %v2206 = vunpack.c.l.b16 %v1476
          %v2207 = vunpack.c.h.b16 %v1476
          %v2208 = vunpack.c.l.b16 %v1477
          %v2209 = vunpack.c.h.b16 %v1477
          %v2210 = vunpack.c.l.b16 %v1478
          %v2211 = vunpack.c.h.b16 %v1478
          %v2212 = vunpack.c.l.b16 %v1479
          %v2213 = vunpack.c.h.b16 %v1479
          %v2214 = vunpack.c.l.b16 %v1480
          %v2215 = vunpack.c.h.b16 %v1480
          %v2216 = vunpack.c.l.b16 %v1481
          %v2217 = vunpack.c.h.b16 %v1481
          %v2218 = vunpack.c.l.b16 %v1482
          %v2219 = vunpack.c.h.b16 %v1482
          %v2220 = vunpack.c.l.b16 %v1483
          %v2221 = vunpack.c.h.b16 %v1483
          %v2222 = vunpack.c.l.b16 %v1484
          %v2223 = vunpack.c.h.b16 %v1484
          %v2224 = vunpack.c.l.b16 %v1485
          %v2225 = vunpack.c.h.b16 %v1485
          %v2226 = vunpack.c.l.b16 %v1486
          %v2227 = vunpack.c.h.b16 %v1486
          %v2228 = vunpack.c.l.b16 %v1487
          %v2229 = vunpack.c.h.b16 %v1487
          %v2230 = vunpack.c.l.b16 %v1488
          %v2231 = vunpack.c.h.b16 %v1488
          %v2232 = vunpack.c.l.b16 %v1489
          %v2233 = vunpack.c.h.b16 %v1489
          %v2234 = vunpack.c.l.b16 %v1490
          %v2235 = vunpack.c.h.b16 %v1490
          %v2236 = vunpack.c.l.b16 %v1491
          %v2237 = vunpack.c.h.b16 %v1491
          %v2238 = vunpack.c.l.b16 %v1492
          %v2239 = vunpack.c.h.b16 %v1492
          %v2240 = vunpack.c.l.b16 %v1493
          %v2241 = vunpack.c.h.b16 %v1493
          %v2242 = vunpack.c.l.b16 %v1494
          %v2243 = vunpack.c.h.b16 %v1494
          %v2244 = vunpack.c.l.b16 %v1495
          %v2245 = vunpack.c.h.b16 %v1495
          %v2246 = vunpack.c.l.b16 %v1496
          %v2247 = vunpack.c.h.b16 %v1496
          %v2248 = vunpack.c.l.b16 %v1497
          %v2249 = vunpack.c.h.b16 %v1497
          %v2250 = vunpack.c.l.b16 %v1498
          %v2251 = vunpack.c.h.b16 %v1498
          %v2252 = vunpack.c.l.b16 %v1499
          %v2253 = vunpack.c.h.b16 %v1499
          %v2254 = vunpack.c.l.b16 %v1500
          %v2255 = vunpack.c.h.b16 %v1500
          %v2256 = vunpack.c.l.b16 %v1501
          %v2257 = vunpack.c.h.b16 %v1501
          %v2258 = vunpack.c.l.b16 %v1502
          %v2259 = vunpack.c.h.b16 %v1502
          %v2260 = vunpack.c.l.b16 %v1503
          %v2261 = vunpack.c.h.b16 %v1503
          %v2262 = vunpack.c.l.b16 %v1504
          %v2263 = vunpack.c.h.b16 %v1504
          %v2264 = vunpack.c.l.b16 %v1505
          %v2265 = vunpack.c.h.b16 %v1505
          %v2266 = vunpack.c.l.b16 %v1506
          %v2267 = vunpack.c.h.b16 %v1506
          %v2268 = vunpack.c.l.b16 %v1507
          %v2269 = vunpack.c.h.b16 %v1507
          %v2270 = vunpack.c.l.b16 %v1508
          %v2271 = vunpack.c.h.b16 %v1508
          %v2272 = vunpack.c.l.b16 %v1509
          %v2273 = vunpack.c.h.b16 %v1509
          %v2274 = vunpack.c.l.b16 %v1510
          %v2275 = vunpack.c.h.b16 %v1510
          %v2276 = vunpack.c.l.b16 %v1511
          %v2277 = vunpack.c.h.b16 %v1511
          %v2278 = vunpack.c.l.b16 %v1512
          %v2279 = vunpack.c.h.b16 %v1512
          %v2280 = vunpack.c.l.b16 %v1513
          %v2281 = vunpack.c.h.b16 %v1513
          %v2282 = vunpack.c.l.b16 %v1514
          %v2283 = vunpack.c.h.b16 %v1514
          %v2284 = vpack.c.b16 %v1776, %v1772
          %v2285 = vpack.c.b16 %v1777, %v1773
          %v2286 = vpack.c.b16 %v1778, %v1774
          %v2287 = vpack.c.b16 %v1779, %v1775
          %v2288 = vpack.c.b16 %v1784, %v1780
          %v2289 = vpack.c.b16 %v1785, %v1781
          %v2290 = vpack.c.b16 %v1786, %v1782
          %v2291 = vpack.c.b16 %v1787, %v1783
          %v2292 = vpack.c.b16 %v1792, %v1788
          %v2293 = vpack.c.b16 %v1793, %v1789
          %v2294 = vpack.c.b16 %v1794, %v1790
          %v2295 = vpack.c.b16 %v1795, %v1791
          %v2296 = vpack.c.b16 %v1800, %v1796
          %v2297 = vpack.c.b16 %v1801, %v1797
          %v2298 = vpack.c.b16 %v1802, %v1798
          %v2299 = vpack.c.b16 %v1803, %v1799
          %v2300 = vpack.c.b16 %v1808, %v1804
          %v2301 = vpack.c.b16 %v1809, %v1805
          %v2302 = vpack.c.b16 %v1810, %v1806
          %v2303 = vpack.c.b16 %v1811, %v1807
          %v2304 = vpack.c.b16 %v1816, %v1812
          %v2305 = vpack.c.b16 %v1817, %v1813
          %v2306 = vpack.c.b16 %v1818, %v1814
          %v2307 = vpack.c.b16 %v1819, %v1815
          %v2308 = vpack.c.b16 %v1824, %v1820
          %v2309 = vpack.c.b16 %v1825, %v1821
          %v2310 = vpack.c.b16 %v1826, %v1822
          %v2311 = vpack.c.b16 %v1827, %v1823
          %v2312 = vpack.c.b16 %v1832, %v1828
          %v2313 = vpack.c.b16 %v1833, %v1829
          %v2314 = vpack.c.b16 %v1834, %v1830
          %v2315 = vpack.c.b16 %v1835, %v1831
          %v2316 = vpack.c.b16 %v1840, %v1836
          %v2317 = vpack.c.b16 %v1841, %v1837
          %v2318 = vpack.c.b16 %v1842, %v1838
          %v2319 = vpack.c.b16 %v1843, %v1839
          %v2320 = vpack.c.b16 %v1848, %v1844
          %v2321 = vpack.c.b16 %v1849, %v1845
          %v2322 = vpack.c.b16 %v1850, %v1846
          %v2323 = vpack.c.b16 %v1851, %v1847
          %v2324 = vpack.c.b16 %v1856, %v1852
          %v2325 = vpack.c.b16 %v1857, %v1853
          %v2326 = vpack.c.b16 %v1858, %v1854
          %v2327 = vpack.c.b16 %v1859, %v1855
          %v2328 = vpack.c.b16 %v1864, %v1860
          %v2329 = vpack.c.b16 %v1865, %v1861
          %v2330 = vpack.c.b16 %v1866, %v1862
          %v2331 = vpack.c.b16 %v1867, %v1863
          %v2332 = vpack.c.b16 %v1872, %v1868
          %v2333 = vpack.c.b16 %v1873, %v1869
          %v2334 = vpack.c.b16 %v1874, %v1870
          %v2335 = vpack.c.b16 %v1875, %v1871
          %v2336 = vpack.c.b16 %v1880, %v1876
          %v2337 = vpack.c.b16 %v1881, %v1877
          %v2338 = vpack.c.b16 %v1882, %v1878
          %v2339 = vpack.c.b16 %v1883, %v1879
          %v2340 = vpack.c.b16 %v1888, %v1884
          %v2341 = vpack.c.b16 %v1889, %v1885
          %v2342 = vpack.c.b16 %v1890, %v1886
          %v2343 = vpack.c.b16 %v1891, %v1887
          %v2344 = vpack.c.b16 %v1896, %v1892
          %v2345 = vpack.c.b16 %v1897, %v1893
          %v2346 = vpack.c.b16 %v1898, %v1894
          %v2347 = vpack.c.b16 %v1899, %v1895
          %v2348 = vpack.c.b16 %v1904, %v1900
          %v2349 = vpack.c.b16 %v1905, %v1901
          %v2350 = vpack.c.b16 %v1906, %v1902
          %v2351 = vpack.c.b16 %v1907, %v1903
          %v2352 = vpack.c.b16 %v1912, %v1908
          %v2353 = vpack.c.b16 %v1913, %v1909
          %v2354 = vpack.c.b16 %v1914, %v1910
          %v2355 = vpack.c.b16 %v1915, %v1911
          %v2356 = vpack.c.b16 %v1920, %v1916
          %v2357 = vpack.c.b16 %v1921, %v1917
          %v2358 = vpack.c.b16 %v1922, %v1918
          %v2359 = vpack.c.b16 %v1923, %v1919
          %v2360 = vpack.c.b16 %v1928, %v1924
          %v2361 = vpack.c.b16 %v1929, %v1925
          %v2362 = vpack.c.b16 %v1930, %v1926
          %v2363 = vpack.c.b16 %v1931, %v1927
          %v2364 = vpack.c.b16 %v1936, %v1932
          %v2365 = vpack.c.b16 %v1937, %v1933
          %v2366 = vpack.c.b16 %v1938, %v1934
          %v2367 = vpack.c.b16 %v1939, %v1935
          %v2368 = vpack.c.b16 %v1944, %v1940
          %v2369 = vpack.c.b16 %v1945, %v1941
          %v2370 = vpack.c.b16 %v1946, %v1942
          %v2371 = vpack.c.b16 %v1947, %v1943
          %v2372 = vpack.c.b16 %v1952, %v1948
          %v2373 = vpack.c.b16 %v1953, %v1949
          %v2374 = vpack.c.b16 %v1954, %v1950
          %v2375 = vpack.c.b16 %v1955, %v1951
          %v2376 = vpack.c.b16 %v1960, %v1956
          %v2377 = vpack.c.b16 %v1961, %v1957
          %v2378 = vpack.c.b16 %v1962, %v1958
          %v2379 = vpack.c.b16 %v1963, %v1959
          %v2380 = vpack.c.b16 %v1968, %v1964
          %v2381 = vpack.c.b16 %v1969, %v1965
          %v2382 = vpack.c.b16 %v1970, %v1966
          %v2383 = vpack.c.b16 %v1971, %v1967
          %v2384 = vpack.c.b16 %v1976, %v1972
          %v2385 = vpack.c.b16 %v1977, %v1973
          %v2386 = vpack.c.b16 %v1978, %v1974
          %v2387 = vpack.c.b16 %v1979, %v1975
          %v2388 = vpack.c.b16 %v1984, %v1980
          %v2389 = vpack.c.b16 %v1985, %v1981
          %v2390 = vpack.c.b16 %v1986, %v1982
          %v2391 = vpack.c.b16 %v1987, %v1983
          %v2392 = vpack.c.b16 %v1992, %v1988
          %v2393 = vpack.c.b16 %v1993, %v1989
          %v2394 = vpack.c.b16 %v1994, %v1990
          %v2395 = vpack.c.b16 %v1995, %v1991
          %v2396 = vpack.c.b16 %v2000, %v1996
          %v2397 = vpack.c.b16 %v2001, %v1997
          %v2398 = vpack.c.b16 %v2002, %v1998
          %v2399 = vpack.c.b16 %v2003, %v1999
          %v2400 = vpack.c.b16 %v2008, %v2004
          %v2401 = vpack.c.b16 %v2009, %v2005
          %v2402 = vpack.c.b16 %v2010, %v2006
          %v2403 = vpack.c.b16 %v2011, %v2007
          %v2404 = vpack.c.b16 %v2016, %v2012
          %v2405 = vpack.c.b16 %v2017, %v2013
          %v2406 = vpack.c.b16 %v2018, %v2014
          %v2407 = vpack.c.b16 %v2019, %v2015
          %v2408 = vpack.c.b16 %v2024, %v2020
          %v2409 = vpack.c.b16 %v2025, %v2021
          %v2410 = vpack.c.b16 %v2026, %v2022
          %v2411 = vpack.c.b16 %v2027, %v2023
          %v2412 = vpack.c.b16 %v2032, %v2028
          %v2413 = vpack.c.b16 %v2033, %v2029
          %v2414 = vpack.c.b16 %v2034, %v2030
          %v2415 = vpack.c.b16 %v2035, %v2031
          %v2416 = vpack.c.b16 %v2040, %v2036
          %v2417 = vpack.c.b16 %v2041, %v2037
          %v2418 = vpack.c.b16 %v2042, %v2038
          %v2419 = vpack.c.b16 %v2043, %v2039
          %v2420 = vpack.c.b16 %v2048, %v2044
          %v2421 = vpack.c.b16 %v2049, %v2045
          %v2422 = vpack.c.b16 %v2050, %v2046
          %v2423 = vpack.c.b16 %v2051, %v2047
          %v2424 = vpack.c.b16 %v2056, %v2052
          %v2425 = vpack.c.b16 %v2057, %v2053
          %v2426 = vpack.c.b16 %v2058, %v2054
          %v2427 = vpack.c.b16 %v2059, %v2055
          %v2428 = vpack.c.b16 %v2064, %v2060
          %v2429 = vpack.c.b16 %v2065, %v2061
          %v2430 = vpack.c.b16 %v2066, %v2062
          %v2431 = vpack.c.b16 %v2067, %v2063
          %v2432 = vpack.c.b16 %v2072, %v2068
          %v2433 = vpack.c.b16 %v2073, %v2069
          %v2434 = vpack.c.b16 %v2074, %v2070
          %v2435 = vpack.c.b16 %v2075, %v2071
          %v2436 = vpack.c.b16 %v2080, %v2076
          %v2437 = vpack.c.b16 %v2081, %v2077
          %v2438 = vpack.c.b16 %v2082, %v2078
          %v2439 = vpack.c.b16 %v2083, %v2079
          %v2440 = vpack.c.b16 %v2088, %v2084
          %v2441 = vpack.c.b16 %v2089, %v2085
          %v2442 = vpack.c.b16 %v2090, %v2086
          %v2443 = vpack.c.b16 %v2091, %v2087
          %v2444 = vpack.c.b16 %v2096, %v2092
          %v2445 = vpack.c.b16 %v2097, %v2093
          %v2446 = vpack.c.b16 %v2098, %v2094
          %v2447 = vpack.c.b16 %v2099, %v2095
          %v2448 = vpack.c.b16 %v2104, %v2100
          %v2449 = vpack.c.b16 %v2105, %v2101
          %v2450 = vpack.c.b16 %v2106, %v2102
          %v2451 = vpack.c.b16 %v2107, %v2103
          %v2452 = vpack.c.b16 %v2112, %v2108
          %v2453 = vpack.c.b16 %v2113, %v2109
          %v2454 = vpack.c.b16 %v2114, %v2110
          %v2455 = vpack.c.b16 %v2115, %v2111
          %v2456 = vpack.c.b16 %v2120, %v2116
          %v2457 = vpack.c.b16 %v2121, %v2117
          %v2458 = vpack.c.b16 %v2122, %v2118
          %v2459 = vpack.c.b16 %v2123, %v2119
          %v2460 = vpack.c.b16 %v2128, %v2124
          %v2461 = vpack.c.b16 %v2129, %v2125
          %v2462 = vpack.c.b16 %v2130, %v2126
          %v2463 = vpack.c.b16 %v2131, %v2127
          %v2464 = vpack.c.b16 %v2136, %v2132
          %v2465 = vpack.c.b16 %v2137, %v2133
          %v2466 = vpack.c.b16 %v2138, %v2134
          %v2467 = vpack.c.b16 %v2139, %v2135
          %v2468 = vpack.c.b16 %v2144, %v2140
          %v2469 = vpack.c.b16 %v2145, %v2141
          %v2470 = vpack.c.b16 %v2146, %v2142
          %v2471 = vpack.c.b16 %v2147, %v2143
          %v2472 = vpack.c.b16 %v2152, %v2148
          %v2473 = vpack.c.b16 %v2153, %v2149
          %v2474 = vpack.c.b16 %v2154, %v2150
          %v2475 = vpack.c.b16 %v2155, %v2151
          %v2476 = vpack.c.b16 %v2160, %v2156
          %v2477 = vpack.c.b16 %v2161, %v2157
          %v2478 = vpack.c.b16 %v2162, %v2158
          %v2479 = vpack.c.b16 %v2163, %v2159
          %v2480 = vpack.c.b16 %v2168, %v2164
          %v2481 = vpack.c.b16 %v2169, %v2165
          %v2482 = vpack.c.b16 %v2170, %v2166
          %v2483 = vpack.c.b16 %v2171, %v2167
          %v2484 = vpack.c.b16 %v2176, %v2172
          %v2485 = vpack.c.b16 %v2177, %v2173
          %v2486 = vpack.c.b16 %v2178, %v2174
          %v2487 = vpack.c.b16 %v2179, %v2175
          %v2488 = vpack.c.b16 %v2184, %v2180
          %v2489 = vpack.c.b16 %v2185, %v2181
          %v2490 = vpack.c.b16 %v2186, %v2182
          %v2491 = vpack.c.b16 %v2187, %v2183
          %v2492 = vpack.c.b16 %v2192, %v2188
          %v2493 = vpack.c.b16 %v2193, %v2189
          %v2494 = vpack.c.b16 %v2194, %v2190
          %v2495 = vpack.c.b16 %v2195, %v2191
          %v2496 = vpack.c.b16 %v2200, %v2196
          %v2497 = vpack.c.b16 %v2201, %v2197
          %v2498 = vpack.c.b16 %v2202, %v2198
          %v2499 = vpack.c.b16 %v2203, %v2199
          %v2500 = vpack.c.b16 %v2208, %v2204
          %v2501 = vpack.c.b16 %v2209, %v2205
          %v2502 = vpack.c.b16 %v2210, %v2206
          %v2503 = vpack.c.b16 %v2211, %v2207
          %v2504 = vpack.c.b16 %v2216, %v2212
          %v2505 = vpack.c.b16 %v2217, %v2213
          %v2506 = vpack.c.b16 %v2218, %v2214
          %v2507 = vpack.c.b16 %v2219, %v2215
          %v2508 = vpack.c.b16 %v2224, %v2220
          %v2509 = vpack.c.b16 %v2225, %v2221
          %v2510 = vpack.c.b16 %v2226, %v2222
          %v2511 = vpack.c.b16 %v2227, %v2223
          %v2512 = vpack.c.b16 %v2232, %v2228
          %v2513 = vpack.c.b16 %v2233, %v2229
          %v2514 = vpack.c.b16 %v2234, %v2230
          %v2515 = vpack.c.b16 %v2235, %v2231
          %v2516 = vpack.c.b16 %v2240, %v2236
          %v2517 = vpack.c.b16 %v2241, %v2237
          %v2518 = vpack.c.b16 %v2242, %v2238
          %v2519 = vpack.c.b16 %v2243, %v2239
          %v2520 = vpack.c.b16 %v2248, %v2244
          %v2521 = vpack.c.b16 %v2249, %v2245
          %v2522 = vpack.c.b16 %v2250, %v2246
          %v2523 = vpack.c.b16 %v2251, %v2247
          %v2524 = vpack.c.b16 %v2256, %v2252
          %v2525 = vpack.c.b16 %v2257, %v2253
          %v2526 = vpack.c.b16 %v2258, %v2254
          %v2527 = vpack.c.b16 %v2259, %v2255
          %v2528 = vpack.c.b16 %v2264, %v2260
          %v2529 = vpack.c.b16 %v2265, %v2261
          %v2530 = vpack.c.b16 %v2266, %v2262
          %v2531 = vpack.c.b16 %v2267, %v2263
          %v2532 = vpack.c.b16 %v2272, %v2268
          %v2533 = vpack.c.b16 %v2273, %v2269
          %v2534 = vpack.c.b16 %v2274, %v2270
          %v2535 = vpack.c.b16 %v2275, %v2271
          %v2536 = vpack.c.b16 %v2280, %v2276
          %v2537 = vpack.c.b16 %v2281, %v2277
          %v2538 = vpack.c.b16 %v2282, %v2278
          %v2539 = vpack.c.b16 %v2283, %v2279
          %v2797 = vperm.slane %v1515, 0
          %v2798 = vperm.slane %v1515, 1
          %v2799 = vperm.slane %v1515, 2
          %v2800 = vperm.slane %v1515, 3
          %2805 = vmatpush.bf16.msra.mxu0 %v2312
          %2806 = vmatpush.bf16.msra.mxu0 %v2308
          %2807 = vmatpush.bf16.msra.mxu0 %v2304
          %2808 = vmatpush.bf16.msra.mxu0 %v2300
          %2809 = vmatpush.bf16.msra.mxu0 %v2296
          %2810 = vmatpush.bf16.msra.mxu0 %v2292
          %2811 = vmatpush.bf16.msra.mxu0 %v2288
          %2812 = vmatpush.bf16.msra.mxu0 %v2284
          %2813 = vmatmul.bf16.gmra.mxu0 %v1251
          %v2814 = vpop.f32.mrf.mxu0
          %v2815 = vadd.f32 %v2797, %v2814
          %v2816 = vpop.f32.mrf.mxu0
          %2817 = vdwg.mxu0
          %2818 = vmatpush.bf16.msra.mxu0 %v2344
          %2819 = vmatpush.bf16.msra.mxu0 %v2340
          %2820 = vmatpush.bf16.msra.mxu0 %v2336
          %2821 = vmatpush.bf16.msra.mxu0 %v2332
          %2822 = vmatpush.bf16.msra.mxu0 %v2328
          %2823 = vmatpush.bf16.msra.mxu0 %v2324
          %2824 = vmatpush.bf16.msra.mxu0 %v2320
          %2825 = vmatpush.bf16.msra.mxu0 %v2316
          %2826 = vmatmul.bf16.gmra.mxu0 %v1252
          %v2827 = vpop.f32.mrf.mxu0
          %v2828 = vadd.f32 %v2815, %v2827
          %v2829 = vpop.f32.mrf.mxu0
          %2830 = vdwg.mxu0
          %2831 = vmatpush.bf16.msra.mxu0 %v2376
          %2832 = vmatpush.bf16.msra.mxu0 %v2372
          %2833 = vmatpush.bf16.msra.mxu0 %v2368
          %2834 = vmatpush.bf16.msra.mxu0 %v2364
          %2835 = vmatpush.bf16.msra.mxu0 %v2360
          %2836 = vmatpush.bf16.msra.mxu0 %v2356
          %2837 = vmatpush.bf16.msra.mxu0 %v2352
          %2838 = vmatpush.bf16.msra.mxu0 %v2348
          %2839 = vmatmul.bf16.gmra.mxu0 %v1253
          %v2840 = vpop.f32.mrf.mxu0
          %v2841 = vadd.f32 %v2828, %v2840
          %v2842 = vpop.f32.mrf.mxu0
          %2843 = vdwg.mxu0
          %2844 = vmatpush.bf16.msra.mxu0 %v2408
          %2845 = vmatpush.bf16.msra.mxu0 %v2404
          %2846 = vmatpush.bf16.msra.mxu0 %v2400
          %2847 = vmatpush.bf16.msra.mxu0 %v2396
          %2848 = vmatpush.bf16.msra.mxu0 %v2392
          %2849 = vmatpush.bf16.msra.mxu0 %v2388
          %2850 = vmatpush.bf16.msra.mxu0 %v2384
          %2851 = vmatpush.bf16.msra.mxu0 %v2380
          %2852 = vmatmul.bf16.gmra.mxu0 %v1254
          %v2853 = vpop.f32.mrf.mxu0
          %v2854 = vadd.f32 %v2841, %v2853
          %v2855 = vpop.f32.mrf.mxu0
          %2856 = vdwg.mxu0
          %2857 = vmatpush.bf16.msra.mxu0 %v2440
          %2858 = vmatpush.bf16.msra.mxu0 %v2436
          %2859 = vmatpush.bf16.msra.mxu0 %v2432
          %2860 = vmatpush.bf16.msra.mxu0 %v2428
          %2861 = vmatpush.bf16.msra.mxu0 %v2424
          %2862 = vmatpush.bf16.msra.mxu0 %v2420
          %2863 = vmatpush.bf16.msra.mxu0 %v2416
          %2864 = vmatpush.bf16.msra.mxu0 %v2412
          %2865 = vmatmul.bf16.gmra.mxu0 %v1255
          %v2866 = vpop.f32.mrf.mxu0
          %v2867 = vadd.f32 %v2854, %v2866
          %v2868 = vpop.f32.mrf.mxu0
          %2869 = vdwg.mxu0
          %2870 = vmatpush.bf16.msra.mxu0 %v2472
          %2871 = vmatpush.bf16.msra.mxu0 %v2468
          %2872 = vmatpush.bf16.msra.mxu0 %v2464
          %2873 = vmatpush.bf16.msra.mxu0 %v2460
          %2874 = vmatpush.bf16.msra.mxu0 %v2456
          %2875 = vmatpush.bf16.msra.mxu0 %v2452
          %2876 = vmatpush.bf16.msra.mxu0 %v2448
          %2877 = vmatpush.bf16.msra.mxu0 %v2444
          %2878 = vmatmul.bf16.gmra.mxu0 %v1256
          %v2879 = vpop.f32.mrf.mxu0
          %v2880 = vadd.f32 %v2867, %v2879
          %v2881 = vpop.f32.mrf.mxu0
          %2882 = vdwg.mxu0
          %2883 = vmatpush.bf16.msra.mxu0 %v2504
          %2884 = vmatpush.bf16.msra.mxu0 %v2500
          %2885 = vmatpush.bf16.msra.mxu0 %v2496
          %2886 = vmatpush.bf16.msra.mxu0 %v2492
          %2887 = vmatpush.bf16.msra.mxu0 %v2488
          %2888 = vmatpush.bf16.msra.mxu0 %v2484
          %2889 = vmatpush.bf16.msra.mxu0 %v2480
          %2890 = vmatpush.bf16.msra.mxu0 %v2476
          %2891 = vmatmul.bf16.gmra.mxu0 %v1257
          %v2892 = vpop.f32.mrf.mxu0
          %v2893 = vadd.f32 %v2880, %v2892
          %v2894 = vpop.f32.mrf.mxu0
          %2895 = vdwg.mxu0
          %2896 = vmatpush.bf16.msra.mxu0 %v2536
          %2897 = vmatpush.bf16.msra.mxu0 %v2532
          %2898 = vmatpush.bf16.msra.mxu0 %v2528
          %2899 = vmatpush.bf16.msra.mxu0 %v2524
          %2900 = vmatpush.bf16.msra.mxu0 %v2520
          %2901 = vmatpush.bf16.msra.mxu0 %v2516
          %2902 = vmatpush.bf16.msra.mxu0 %v2512
          %2903 = vmatpush.bf16.msra.mxu0 %v2508
          %2904 = vmatmul.bf16.gmra.mxu0 %v1258
          %v2905 = vpop.f32.mrf.mxu0
          %v2906 = vadd.f32 %v2893, %v2905
          %v2907 = vpop.f32.mrf.mxu0
          %2908 = vdwg.mxu0
          %2909 = vmatpush.bf16.msra.mxu0 %v2313
          %2910 = vmatpush.bf16.msra.mxu0 %v2309
          %2911 = vmatpush.bf16.msra.mxu0 %v2305
          %2912 = vmatpush.bf16.msra.mxu0 %v2301
          %2913 = vmatpush.bf16.msra.mxu0 %v2297
          %2914 = vmatpush.bf16.msra.mxu0 %v2293
          %2915 = vmatpush.bf16.msra.mxu0 %v2289
          %2916 = vmatpush.bf16.msra.mxu0 %v2285
          %2917 = vmatmul.bf16.gmra.mxu0 %v1251
          %v2918 = vpop.f32.mrf.mxu0
          %v2919 = vadd.f32 %v2798, %v2918
          %v2920 = vpop.f32.mrf.mxu0
          %2921 = vdwg.mxu0
          %2922 = vmatpush.bf16.msra.mxu0 %v2345
          %2923 = vmatpush.bf16.msra.mxu0 %v2341
          %2924 = vmatpush.bf16.msra.mxu0 %v2337
          %2925 = vmatpush.bf16.msra.mxu0 %v2333
          %2926 = vmatpush.bf16.msra.mxu0 %v2329
          %2927 = vmatpush.bf16.msra.mxu0 %v2325
          %2928 = vmatpush.bf16.msra.mxu0 %v2321
          %2929 = vmatpush.bf16.msra.mxu0 %v2317
          %2930 = vmatmul.bf16.gmra.mxu0 %v1252
          %v2931 = vpop.f32.mrf.mxu0
          %v2932 = vadd.f32 %v2919, %v2931
          %v2933 = vpop.f32.mrf.mxu0
          %2934 = vdwg.mxu0
          %2935 = vmatpush.bf16.msra.mxu0 %v2377
          %2936 = vmatpush.bf16.msra.mxu0 %v2373
          %2937 = vmatpush.bf16.msra.mxu0 %v2369
          %2938 = vmatpush.bf16.msra.mxu0 %v2365
          %2939 = vmatpush.bf16.msra.mxu0 %v2361
          %2940 = vmatpush.bf16.msra.mxu0 %v2357
          %2941 = vmatpush.bf16.msra.mxu0 %v2353
          %2942 = vmatpush.bf16.msra.mxu0 %v2349
          %2943 = vmatmul.bf16.gmra.mxu0 %v1253
          %v2944 = vpop.f32.mrf.mxu0
          %v2945 = vadd.f32 %v2932, %v2944
          %v2946 = vpop.f32.mrf.mxu0
          %2947 = vdwg.mxu0
          %2948 = vmatpush.bf16.msra.mxu0 %v2409
          %2949 = vmatpush.bf16.msra.mxu0 %v2405
          %2950 = vmatpush.bf16.msra.mxu0 %v2401
          %2951 = vmatpush.bf16.msra.mxu0 %v2397
          %2952 = vmatpush.bf16.msra.mxu0 %v2393
          %2953 = vmatpush.bf16.msra.mxu0 %v2389
          %2954 = vmatpush.bf16.msra.mxu0 %v2385
          %2955 = vmatpush.bf16.msra.mxu0 %v2381
          %2956 = vmatmul.bf16.gmra.mxu0 %v1254
          %v2957 = vpop.f32.mrf.mxu0
          %v2958 = vadd.f32 %v2945, %v2957
          %v2959 = vpop.f32.mrf.mxu0
          %2960 = vdwg.mxu0
          %2961 = vmatpush.bf16.msra.mxu0 %v2441
          %2962 = vmatpush.bf16.msra.mxu0 %v2437
          %2963 = vmatpush.bf16.msra.mxu0 %v2433
          %2964 = vmatpush.bf16.msra.mxu0 %v2429
          %2965 = vmatpush.bf16.msra.mxu0 %v2425
          %2966 = vmatpush.bf16.msra.mxu0 %v2421
          %2967 = vmatpush.bf16.msra.mxu0 %v2417
          %2968 = vmatpush.bf16.msra.mxu0 %v2413
          %2969 = vmatmul.bf16.gmra.mxu0 %v1255
          %v2970 = vpop.f32.mrf.mxu0
          %v2971 = vadd.f32 %v2958, %v2970
          %v2972 = vpop.f32.mrf.mxu0
          %2973 = vdwg.mxu0
          %2974 = vmatpush.bf16.msra.mxu0 %v2473
          %2975 = vmatpush.bf16.msra.mxu0 %v2469
          %2976 = vmatpush.bf16.msra.mxu0 %v2465
          %2977 = vmatpush.bf16.msra.mxu0 %v2461
          %2978 = vmatpush.bf16.msra.mxu0 %v2457
          %2979 = vmatpush.bf16.msra.mxu0 %v2453
          %2980 = vmatpush.bf16.msra.mxu0 %v2449
          %2981 = vmatpush.bf16.msra.mxu0 %v2445
          %2982 = vmatmul.bf16.gmra.mxu0 %v1256
          %v2983 = vpop.f32.mrf.mxu0
          %v2984 = vadd.f32 %v2971, %v2983
          %v2985 = vpop.f32.mrf.mxu0
          %2986 = vdwg.mxu0
          %2987 = vmatpush.bf16.msra.mxu0 %v2505
          %2988 = vmatpush.bf16.msra.mxu0 %v2501
          %2989 = vmatpush.bf16.msra.mxu0 %v2497
          %2990 = vmatpush.bf16.msra.mxu0 %v2493
          %2991 = vmatpush.bf16.msra.mxu0 %v2489
          %2992 = vmatpush.bf16.msra.mxu0 %v2485
          %2993 = vmatpush.bf16.msra.mxu0 %v2481
          %2994 = vmatpush.bf16.msra.mxu0 %v2477
          %2995 = vmatmul.bf16.gmra.mxu0 %v1257
          %v2996 = vpop.f32.mrf.mxu0
          %v2997 = vadd.f32 %v2984, %v2996
          %v2998 = vpop.f32.mrf.mxu0
          %2999 = vdwg.mxu0
          %3000 = vmatpush.bf16.msra.mxu0 %v2537
          %3001 = vmatpush.bf16.msra.mxu0 %v2533
          %3002 = vmatpush.bf16.msra.mxu0 %v2529
          %3003 = vmatpush.bf16.msra.mxu0 %v2525
          %3004 = vmatpush.bf16.msra.mxu0 %v2521
          %3005 = vmatpush.bf16.msra.mxu0 %v2517
          %3006 = vmatpush.bf16.msra.mxu0 %v2513
          %3007 = vmatpush.bf16.msra.mxu0 %v2509
          %3008 = vmatmul.bf16.gmra.mxu0 %v1258
          %v3009 = vpop.f32.mrf.mxu0
          %v3010 = vadd.f32 %v2997, %v3009
          %v3011 = vpop.f32.mrf.mxu0
          %3012 = vdwg.mxu0
          %3013 = vmatpush.bf16.msra.mxu0 %v2314
          %3014 = vmatpush.bf16.msra.mxu0 %v2310
          %3015 = vmatpush.bf16.msra.mxu0 %v2306
          %3016 = vmatpush.bf16.msra.mxu0 %v2302
          %3017 = vmatpush.bf16.msra.mxu0 %v2298
          %3018 = vmatpush.bf16.msra.mxu0 %v2294
          %3019 = vmatpush.bf16.msra.mxu0 %v2290
          %3020 = vmatpush.bf16.msra.mxu0 %v2286
          %3021 = vmatmul.bf16.gmra.mxu0 %v1251
          %v3022 = vpop.f32.mrf.mxu0
          %v3023 = vadd.f32 %v2799, %v3022
          %v3024 = vpop.f32.mrf.mxu0
          %3025 = vdwg.mxu0
          %3026 = vmatpush.bf16.msra.mxu0 %v2346
          %3027 = vmatpush.bf16.msra.mxu0 %v2342
          %3028 = vmatpush.bf16.msra.mxu0 %v2338
          %3029 = vmatpush.bf16.msra.mxu0 %v2334
          %3030 = vmatpush.bf16.msra.mxu0 %v2330
          %3031 = vmatpush.bf16.msra.mxu0 %v2326
          %3032 = vmatpush.bf16.msra.mxu0 %v2322
          %3033 = vmatpush.bf16.msra.mxu0 %v2318
          %3034 = vmatmul.bf16.gmra.mxu0 %v1252
          %v3035 = vpop.f32.mrf.mxu0
          %v3036 = vadd.f32 %v3023, %v3035
          %v3037 = vpop.f32.mrf.mxu0
          %3038 = vdwg.mxu0
          %3039 = vmatpush.bf16.msra.mxu0 %v2378
          %3040 = vmatpush.bf16.msra.mxu0 %v2374
          %3041 = vmatpush.bf16.msra.mxu0 %v2370
          %3042 = vmatpush.bf16.msra.mxu0 %v2366
          %3043 = vmatpush.bf16.msra.mxu0 %v2362
          %3044 = vmatpush.bf16.msra.mxu0 %v2358
          %3045 = vmatpush.bf16.msra.mxu0 %v2354
          %3046 = vmatpush.bf16.msra.mxu0 %v2350
          %3047 = vmatmul.bf16.gmra.mxu0 %v1253
          %v3048 = vpop.f32.mrf.mxu0
          %v3049 = vadd.f32 %v3036, %v3048
          %v3050 = vpop.f32.mrf.mxu0
          %3051 = vdwg.mxu0
          %3052 = vmatpush.bf16.msra.mxu0 %v2410
          %3053 = vmatpush.bf16.msra.mxu0 %v2406
          %3054 = vmatpush.bf16.msra.mxu0 %v2402
          %3055 = vmatpush.bf16.msra.mxu0 %v2398
          %3056 = vmatpush.bf16.msra.mxu0 %v2394
          %3057 = vmatpush.bf16.msra.mxu0 %v2390
          %3058 = vmatpush.bf16.msra.mxu0 %v2386
          %3059 = vmatpush.bf16.msra.mxu0 %v2382
          %3060 = vmatmul.bf16.gmra.mxu0 %v1254
          %v3061 = vpop.f32.mrf.mxu0
          %v3062 = vadd.f32 %v3049, %v3061
          %v3063 = vpop.f32.mrf.mxu0
          %3064 = vdwg.mxu0
          %3065 = vmatpush.bf16.msra.mxu0 %v2442
          %3066 = vmatpush.bf16.msra.mxu0 %v2438
          %3067 = vmatpush.bf16.msra.mxu0 %v2434
          %3068 = vmatpush.bf16.msra.mxu0 %v2430
          %3069 = vmatpush.bf16.msra.mxu0 %v2426
          %3070 = vmatpush.bf16.msra.mxu0 %v2422
          %3071 = vmatpush.bf16.msra.mxu0 %v2418
          %3072 = vmatpush.bf16.msra.mxu0 %v2414
          %3073 = vmatmul.bf16.gmra.mxu0 %v1255
          %v3074 = vpop.f32.mrf.mxu0
          %v3075 = vadd.f32 %v3062, %v3074
          %v3076 = vpop.f32.mrf.mxu0
          %3077 = vdwg.mxu0
          %3078 = vmatpush.bf16.msra.mxu0 %v2474
          %3079 = vmatpush.bf16.msra.mxu0 %v2470
          %3080 = vmatpush.bf16.msra.mxu0 %v2466
          %3081 = vmatpush.bf16.msra.mxu0 %v2462
          %3082 = vmatpush.bf16.msra.mxu0 %v2458
          %3083 = vmatpush.bf16.msra.mxu0 %v2454
          %3084 = vmatpush.bf16.msra.mxu0 %v2450
          %3085 = vmatpush.bf16.msra.mxu0 %v2446
          %3086 = vmatmul.bf16.gmra.mxu0 %v1256
          %v3087 = vpop.f32.mrf.mxu0
          %v3088 = vadd.f32 %v3075, %v3087
          %v3089 = vpop.f32.mrf.mxu0
          %3090 = vdwg.mxu0
          %3091 = vmatpush.bf16.msra.mxu0 %v2506
          %3092 = vmatpush.bf16.msra.mxu0 %v2502
          %3093 = vmatpush.bf16.msra.mxu0 %v2498
          %3094 = vmatpush.bf16.msra.mxu0 %v2494
          %3095 = vmatpush.bf16.msra.mxu0 %v2490
          %3096 = vmatpush.bf16.msra.mxu0 %v2486
          %3097 = vmatpush.bf16.msra.mxu0 %v2482
          %3098 = vmatpush.bf16.msra.mxu0 %v2478
          %3099 = vmatmul.bf16.gmra.mxu0 %v1257
          %v3100 = vpop.f32.mrf.mxu0
          %v3101 = vadd.f32 %v3088, %v3100
          %v3102 = vpop.f32.mrf.mxu0
          %3103 = vdwg.mxu0
          %3104 = vmatpush.bf16.msra.mxu0 %v2538
          %3105 = vmatpush.bf16.msra.mxu0 %v2534
          %3106 = vmatpush.bf16.msra.mxu0 %v2530
          %3107 = vmatpush.bf16.msra.mxu0 %v2526
          %3108 = vmatpush.bf16.msra.mxu0 %v2522
          %3109 = vmatpush.bf16.msra.mxu0 %v2518
          %3110 = vmatpush.bf16.msra.mxu0 %v2514
          %3111 = vmatpush.bf16.msra.mxu0 %v2510
          %3112 = vmatmul.bf16.gmra.mxu0 %v1258
          %v3113 = vpop.f32.mrf.mxu0
          %v3114 = vadd.f32 %v3101, %v3113
          %v3115 = vpop.f32.mrf.mxu0
          %3116 = vdwg.mxu0
          %3117 = vmatpush.bf16.msra.mxu0 %v2315
          %3118 = vmatpush.bf16.msra.mxu0 %v2311
          %3119 = vmatpush.bf16.msra.mxu0 %v2307
          %3120 = vmatpush.bf16.msra.mxu0 %v2303
          %3121 = vmatpush.bf16.msra.mxu0 %v2299
          %3122 = vmatpush.bf16.msra.mxu0 %v2295
          %3123 = vmatpush.bf16.msra.mxu0 %v2291
          %3124 = vmatpush.bf16.msra.mxu0 %v2287
          %3125 = vmatmul.bf16.gmra.mxu0 %v1251
          %v3126 = vpop.f32.mrf.mxu0
          %v3127 = vadd.f32 %v2800, %v3126
          %v3128 = vpop.f32.mrf.mxu0
          %3129 = vdwg.mxu0
          %3130 = vmatpush.bf16.msra.mxu0 %v2347
          %3131 = vmatpush.bf16.msra.mxu0 %v2343
          %3132 = vmatpush.bf16.msra.mxu0 %v2339
          %3133 = vmatpush.bf16.msra.mxu0 %v2335
          %3134 = vmatpush.bf16.msra.mxu0 %v2331
          %3135 = vmatpush.bf16.msra.mxu0 %v2327
          %3136 = vmatpush.bf16.msra.mxu0 %v2323
          %3137 = vmatpush.bf16.msra.mxu0 %v2319
          %3138 = vmatmul.bf16.gmra.mxu0 %v1252
          %v3139 = vpop.f32.mrf.mxu0
          %v3140 = vadd.f32 %v3127, %v3139
          %v3141 = vpop.f32.mrf.mxu0
          %3142 = vdwg.mxu0
          %3143 = vmatpush.bf16.msra.mxu0 %v2379
          %3144 = vmatpush.bf16.msra.mxu0 %v2375
          %3145 = vmatpush.bf16.msra.mxu0 %v2371
          %3146 = vmatpush.bf16.msra.mxu0 %v2367
          %3147 = vmatpush.bf16.msra.mxu0 %v2363
          %3148 = vmatpush.bf16.msra.mxu0 %v2359
          %3149 = vmatpush.bf16.msra.mxu0 %v2355
          %3150 = vmatpush.bf16.msra.mxu0 %v2351
          %3151 = vmatmul.bf16.gmra.mxu0 %v1253
          %v3152 = vpop.f32.mrf.mxu0
          %v3153 = vadd.f32 %v3140, %v3152
          %v3154 = vpop.f32.mrf.mxu0
          %3155 = vdwg.mxu0
          %3156 = vmatpush.bf16.msra.mxu0 %v2411
          %3157 = vmatpush.bf16.msra.mxu0 %v2407
          %3158 = vmatpush.bf16.msra.mxu0 %v2403
          %3159 = vmatpush.bf16.msra.mxu0 %v2399
          %3160 = vmatpush.bf16.msra.mxu0 %v2395
          %3161 = vmatpush.bf16.msra.mxu0 %v2391
          %3162 = vmatpush.bf16.msra.mxu0 %v2387
          %3163 = vmatpush.bf16.msra.mxu0 %v2383
          %3164 = vmatmul.bf16.gmra.mxu0 %v1254
          %v3165 = vpop.f32.mrf.mxu0
          %v3166 = vadd.f32 %v3153, %v3165
          %v3167 = vpop.f32.mrf.mxu0
          %3168 = vdwg.mxu0
          %3169 = vmatpush.bf16.msra.mxu0 %v2443
          %3170 = vmatpush.bf16.msra.mxu0 %v2439
          %3171 = vmatpush.bf16.msra.mxu0 %v2435
          %3172 = vmatpush.bf16.msra.mxu0 %v2431
          %3173 = vmatpush.bf16.msra.mxu0 %v2427
          %3174 = vmatpush.bf16.msra.mxu0 %v2423
          %3175 = vmatpush.bf16.msra.mxu0 %v2419
          %3176 = vmatpush.bf16.msra.mxu0 %v2415
          %3177 = vmatmul.bf16.gmra.mxu0 %v1255
          %v3178 = vpop.f32.mrf.mxu0
          %v3179 = vadd.f32 %v3166, %v3178
          %v3180 = vpop.f32.mrf.mxu0
          %3181 = vdwg.mxu0
          %3182 = vmatpush.bf16.msra.mxu0 %v2475
          %3183 = vmatpush.bf16.msra.mxu0 %v2471
          %3184 = vmatpush.bf16.msra.mxu0 %v2467
          %3185 = vmatpush.bf16.msra.mxu0 %v2463
          %3186 = vmatpush.bf16.msra.mxu0 %v2459
          %3187 = vmatpush.bf16.msra.mxu0 %v2455
          %3188 = vmatpush.bf16.msra.mxu0 %v2451
          %3189 = vmatpush.bf16.msra.mxu0 %v2447
          %3190 = vmatmul.bf16.gmra.mxu0 %v1256
          %v3191 = vpop.f32.mrf.mxu0
          %v3192 = vadd.f32 %v3179, %v3191
          %v3193 = vpop.f32.mrf.mxu0
          %3194 = vdwg.mxu0
          %3195 = vmatpush.bf16.msra.mxu0 %v2507
          %3196 = vmatpush.bf16.msra.mxu0 %v2503
          %3197 = vmatpush.bf16.msra.mxu0 %v2499
          %3198 = vmatpush.bf16.msra.mxu0 %v2495
          %3199 = vmatpush.bf16.msra.mxu0 %v2491
          %3200 = vmatpush.bf16.msra.mxu0 %v2487
          %3201 = vmatpush.bf16.msra.mxu0 %v2483
          %3202 = vmatpush.bf16.msra.mxu0 %v2479
          %3203 = vmatmul.bf16.gmra.mxu0 %v1257
          %v3204 = vpop.f32.mrf.mxu0
          %v3205 = vadd.f32 %v3192, %v3204
          %v3206 = vpop.f32.mrf.mxu0
          %3207 = vdwg.mxu0
          %3208 = vmatpush.bf16.msra.mxu0 %v2539
          %3209 = vmatpush.bf16.msra.mxu0 %v2535
          %3210 = vmatpush.bf16.msra.mxu0 %v2531
          %3211 = vmatpush.bf16.msra.mxu0 %v2527
          %3212 = vmatpush.bf16.msra.mxu0 %v2523
          %3213 = vmatpush.bf16.msra.mxu0 %v2519
          %3214 = vmatpush.bf16.msra.mxu0 %v2515
          %3215 = vmatpush.bf16.msra.mxu0 %v2511
          %3216 = vmatmul.bf16.gmra.mxu0 %v1258
          %v3217 = vpop.f32.mrf.mxu0
          %v3218 = vadd.f32 %v3205, %v3217
          %v3219 = vpop.f32.mrf.mxu0
          %3220 = vdwg.mxu0
          %v3221 = vmax.f32 %v2906, 0.0
          %v3222 = vmax.f32 %v3010, 0.0
          %v3223 = vmax.f32 %v3114, 0.0
          %v3224 = vmax.f32 %v3218, 0.0
          %v3225 = vpack.c.bf16 %v3221, %v3221
          %v3226 = vpack.c.bf16 %v3222, %v3222
          %v3227 = vpack.c.bf16 %v3223, %v3223
          %v3228 = vpack.c.bf16 %v3224, %v3224
          %v3229 = vld [vmem:[#allocation9] sm:$0xff]
          %v3230 = vld [vmem:[#allocation9 + $0x8] sm:$0xff]
          %v3231 = vld [vmem:[#allocation9 + $0x10] sm:$0xff]
          %v3232 = vld [vmem:[#allocation9 + $0x18] sm:$0xff]
          %v3233 = vld [vmem:[#allocation9 + $0x20] sm:$0xff]
          %v3234 = vld [vmem:[#allocation9 + $0x28] sm:$0xff]
          %v3235 = vld [vmem:[#allocation9 + $0x30] sm:$0xff]
          %v3236 = vld [vmem:[#allocation9 + $0x38] sm:$0xff]
          %v3237 = vld [vmem:[#allocation9 + $0x40] sm:$0xff]
          %v3238 = vld [vmem:[#allocation9 + $0x48] sm:$0xff]
          %v3239 = vld [vmem:[#allocation9 + $0x50] sm:$0xff]
          %v3240 = vld [vmem:[#allocation9 + $0x58] sm:$0xff]
          %v3241 = vld [vmem:[#allocation9 + $0x60] sm:$0xff]
          %v3242 = vld [vmem:[#allocation9 + $0x68] sm:$0xff]
          %v3243 = vld [vmem:[#allocation9 + $0x70] sm:$0xff]
          %v3244 = vld [vmem:[#allocation9 + $0x78] sm:$0xff]
          %v3245 = vld [vmem:[#allocation9 + $0x80] sm:$0xff]
          %v3246 = vld [vmem:[#allocation9 + $0x88] sm:$0xff]
          %v3247 = vld [vmem:[#allocation9 + $0x90] sm:$0xff]
          %v3248 = vld [vmem:[#allocation9 + $0x98] sm:$0xff]
          %v3249 = vld [vmem:[#allocation9 + $0xa0] sm:$0xff]
          %v3250 = vld [vmem:[#allocation9 + $0xa8] sm:$0xff]
          %v3251 = vld [vmem:[#allocation9 + $0xb0] sm:$0xff]
          %v3252 = vld [vmem:[#allocation9 + $0xb8] sm:$0xff]
          %v3253 = vld [vmem:[#allocation9 + $0xc0] sm:$0xff]
          %v3254 = vld [vmem:[#allocation9 + $0xc8] sm:$0xff]
          %v3255 = vld [vmem:[#allocation9 + $0xd0] sm:$0xff]
          %v3256 = vld [vmem:[#allocation9 + $0xd8] sm:$0xff]
          %v3257 = vld [vmem:[#allocation9 + $0xe0] sm:$0xff]
          %v3258 = vld [vmem:[#allocation9 + $0xe8] sm:$0xff]
          %v3259 = vld [vmem:[#allocation9 + $0xf0] sm:$0xff]
          %v3260 = vld [vmem:[#allocation9 + $0xf8] sm:$0xff]
          %v3261 = vld [vmem:[#allocation9 + $0x100] sm:$0xff]
          %v3262 = vld [vmem:[#allocation9 + $0x108] sm:$0xff]
          %v3263 = vld [vmem:[#allocation9 + $0x110] sm:$0xff]
          %v3264 = vld [vmem:[#allocation9 + $0x118] sm:$0xff]
          %v3265 = vld [vmem:[#allocation9 + $0x120] sm:$0xff]
          %v3266 = vld [vmem:[#allocation9 + $0x128] sm:$0xff]
          %v3267 = vld [vmem:[#allocation9 + $0x130] sm:$0xff]
          %v3268 = vld [vmem:[#allocation9 + $0x138] sm:$0xff]
          %v3269 = vld [vmem:[#allocation9 + $0x140] sm:$0xff]
          %v3270 = vld [vmem:[#allocation9 + $0x148] sm:$0xff]
          %v3271 = vld [vmem:[#allocation9 + $0x150] sm:$0xff]
          %v3272 = vld [vmem:[#allocation9 + $0x158] sm:$0xff]
          %v3273 = vld [vmem:[#allocation9 + $0x160] sm:$0xff]
          %v3274 = vld [vmem:[#allocation9 + $0x168] sm:$0xff]
          %v3275 = vld [vmem:[#allocation9 + $0x170] sm:$0xff]
          %v3276 = vld [vmem:[#allocation9 + $0x178] sm:$0xff]
          %v3277 = vld [vmem:[#allocation9 + $0x180] sm:$0xff]
          %v3278 = vld [vmem:[#allocation9 + $0x188] sm:$0xff]
          %v3279 = vld [vmem:[#allocation9 + $0x190] sm:$0xff]
          %v3280 = vld [vmem:[#allocation9 + $0x198] sm:$0xff]
          %v3281 = vld [vmem:[#allocation9 + $0x1a0] sm:$0xff]
          %v3282 = vld [vmem:[#allocation9 + $0x1a8] sm:$0xff]
          %v3283 = vld [vmem:[#allocation9 + $0x1b0] sm:$0xff]
          %v3284 = vld [vmem:[#allocation9 + $0x1b8] sm:$0xff]
          %v3285 = vld [vmem:[#allocation9 + $0x1c0] sm:$0xff]
          %v3286 = vld [vmem:[#allocation9 + $0x1c8] sm:$0xff]
          %v3287 = vld [vmem:[#allocation9 + $0x1d0] sm:$0xff]
          %v3288 = vld [vmem:[#allocation9 + $0x1d8] sm:$0xff]
          %v3289 = vld [vmem:[#allocation9 + $0x1e0] sm:$0xff]
          %v3290 = vld [vmem:[#allocation9 + $0x1e8] sm:$0xff]
          %v3291 = vld [vmem:[#allocation9 + $0x1f0] sm:$0xff]
          %v3292 = vld [vmem:[#allocation9 + $0x1f8] sm:$0xff]
          %v3293 = vld [vmem:[%s10] sm:$0x3]
          %v3358 = vunpack.c.l.b16 %v3229
          %v3359 = vunpack.c.h.b16 %v3229
          %v3360 = vunpack.c.l.b16 %v3230
          %v3361 = vunpack.c.h.b16 %v3230
          %v3362 = vunpack.c.l.b16 %v3231
          %v3363 = vunpack.c.h.b16 %v3231
          %v3364 = vunpack.c.l.b16 %v3232
          %v3365 = vunpack.c.h.b16 %v3232
          %v3366 = vunpack.c.l.b16 %v3233
          %v3367 = vunpack.c.h.b16 %v3233
          %v3368 = vunpack.c.l.b16 %v3234
          %v3369 = vunpack.c.h.b16 %v3234
          %v3370 = vunpack.c.l.b16 %v3235
          %v3371 = vunpack.c.h.b16 %v3235
          %v3372 = vunpack.c.l.b16 %v3236
          %v3373 = vunpack.c.h.b16 %v3236
          %v3374 = vunpack.c.l.b16 %v3237
          %v3375 = vunpack.c.h.b16 %v3237
          %v3376 = vunpack.c.l.b16 %v3238
          %v3377 = vunpack.c.h.b16 %v3238
          %v3378 = vunpack.c.l.b16 %v3239
          %v3379 = vunpack.c.h.b16 %v3239
          %v3380 = vunpack.c.l.b16 %v3240
          %v3381 = vunpack.c.h.b16 %v3240
          %v3382 = vunpack.c.l.b16 %v3241
          %v3383 = vunpack.c.h.b16 %v3241
          %v3384 = vunpack.c.l.b16 %v3242
          %v3385 = vunpack.c.h.b16 %v3242
          %v3386 = vunpack.c.l.b16 %v3243
          %v3387 = vunpack.c.h.b16 %v3243
          %v3388 = vunpack.c.l.b16 %v3244
          %v3389 = vunpack.c.h.b16 %v3244
          %v3390 = vunpack.c.l.b16 %v3245
          %v3391 = vunpack.c.h.b16 %v3245
          %v3392 = vunpack.c.l.b16 %v3246
          %v3393 = vunpack.c.h.b16 %v3246
          %v3394 = vunpack.c.l.b16 %v3247
          %v3395 = vunpack.c.h.b16 %v3247
          %v3396 = vunpack.c.l.b16 %v3248
          %v3397 = vunpack.c.h.b16 %v3248
          %v3398 = vunpack.c.l.b16 %v3249
          %v3399 = vunpack.c.h.b16 %v3249
          %v3400 = vunpack.c.l.b16 %v3250
          %v3401 = vunpack.c.h.b16 %v3250
          %v3402 = vunpack.c.l.b16 %v3251
          %v3403 = vunpack.c.h.b16 %v3251
          %v3404 = vunpack.c.l.b16 %v3252
          %v3405 = vunpack.c.h.b16 %v3252
          %v3406 = vunpack.c.l.b16 %v3253
          %v3407 = vunpack.c.h.b16 %v3253
          %v3408 = vunpack.c.l.b16 %v3254
          %v3409 = vunpack.c.h.b16 %v3254
          %v3410 = vunpack.c.l.b16 %v3255
          %v3411 = vunpack.c.h.b16 %v3255
          %v3412 = vunpack.c.l.b16 %v3256
          %v3413 = vunpack.c.h.b16 %v3256
          %v3414 = vunpack.c.l.b16 %v3257
          %v3415 = vunpack.c.h.b16 %v3257
          %v3416 = vunpack.c.l.b16 %v3258
          %v3417 = vunpack.c.h.b16 %v3258
          %v3418 = vunpack.c.l.b16 %v3259
          %v3419 = vunpack.c.h.b16 %v3259
          %v3420 = vunpack.c.l.b16 %v3260
          %v3421 = vunpack.c.h.b16 %v3260
          %v3422 = vunpack.c.l.b16 %v3261
          %v3423 = vunpack.c.h.b16 %v3261
          %v3424 = vunpack.c.l.b16 %v3262
          %v3425 = vunpack.c.h.b16 %v3262
          %v3426 = vunpack.c.l.b16 %v3263
          %v3427 = vunpack.c.h.b16 %v3263
          %v3428 = vunpack.c.l.b16 %v3264
          %v3429 = vunpack.c.h.b16 %v3264
          %v3430 = vunpack.c.l.b16 %v3265
          %v3431 = vunpack.c.h.b16 %v3265
          %v3432 = vunpack.c.l.b16 %v3266
          %v3433 = vunpack.c.h.b16 %v3266
          %v3434 = vunpack.c.l.b16 %v3267
          %v3435 = vunpack.c.h.b16 %v3267
          %v3436 = vunpack.c.l.b16 %v3268
          %v3437 = vunpack.c.h.b16 %v3268
          %v3438 = vunpack.c.l.b16 %v3269
          %v3439 = vunpack.c.h.b16 %v3269
          %v3440 = vunpack.c.l.b16 %v3270
          %v3441 = vunpack.c.h.b16 %v3270
          %v3442 = vunpack.c.l.b16 %v3271
          %v3443 = vunpack.c.h.b16 %v3271
          %v3444 = vunpack.c.l.b16 %v3272
          %v3445 = vunpack.c.h.b16 %v3272
          %v3446 = vunpack.c.l.b16 %v3273
          %v3447 = vunpack.c.h.b16 %v3273
          %v3448 = vunpack.c.l.b16 %v3274
          %v3449 = vunpack.c.h.b16 %v3274
          %v3450 = vunpack.c.l.b16 %v3275
          %v3451 = vunpack.c.h.b16 %v3275
          %v3452 = vunpack.c.l.b16 %v3276
          %v3453 = vunpack.c.h.b16 %v3276
          %v3454 = vunpack.c.l.b16 %v3277
          %v3455 = vunpack.c.h.b16 %v3277
          %v3456 = vunpack.c.l.b16 %v3278
          %v3457 = vunpack.c.h.b16 %v3278
          %v3458 = vunpack.c.l.b16 %v3279
          %v3459 = vunpack.c.h.b16 %v3279
          %v3460 = vunpack.c.l.b16 %v3280
          %v3461 = vunpack.c.h.b16 %v3280
          %v3462 = vunpack.c.l.b16 %v3281
          %v3463 = vunpack.c.h.b16 %v3281
          %v3464 = vunpack.c.l.b16 %v3282
          %v3465 = vunpack.c.h.b16 %v3282
          %v3466 = vunpack.c.l.b16 %v3283
          %v3467 = vunpack.c.h.b16 %v3283
          %v3468 = vunpack.c.l.b16 %v3284
          %v3469 = vunpack.c.h.b16 %v3284
          %v3470 = vunpack.c.l.b16 %v3285
          %v3471 = vunpack.c.h.b16 %v3285
          %v3472 = vunpack.c.l.b16 %v3286
          %v3473 = vunpack.c.h.b16 %v3286
          %v3474 = vunpack.c.l.b16 %v3287
          %v3475 = vunpack.c.h.b16 %v3287
          %v3476 = vunpack.c.l.b16 %v3288
          %v3477 = vunpack.c.h.b16 %v3288
          %v3478 = vunpack.c.l.b16 %v3289
          %v3479 = vunpack.c.h.b16 %v3289
          %v3480 = vunpack.c.l.b16 %v3290
          %v3481 = vunpack.c.h.b16 %v3290
          %v3482 = vunpack.c.l.b16 %v3291
          %v3483 = vunpack.c.h.b16 %v3291
          %v3484 = vunpack.c.l.b16 %v3292
          %v3485 = vunpack.c.h.b16 %v3292
          %v3486 = vpack.c.b16 %v3360, %v3358
          %v3487 = vpack.c.b16 %v3361, %v3359
          %v3488 = vpack.c.b16 %v3364, %v3362
          %v3489 = vpack.c.b16 %v3365, %v3363
          %v3490 = vpack.c.b16 %v3368, %v3366
          %v3491 = vpack.c.b16 %v3369, %v3367
          %v3492 = vpack.c.b16 %v3372, %v3370
          %v3493 = vpack.c.b16 %v3373, %v3371
          %v3494 = vpack.c.b16 %v3376, %v3374
          %v3495 = vpack.c.b16 %v3377, %v3375
          %v3496 = vpack.c.b16 %v3380, %v3378
          %v3497 = vpack.c.b16 %v3381, %v3379
          %v3498 = vpack.c.b16 %v3384, %v3382
          %v3499 = vpack.c.b16 %v3385, %v3383
          %v3500 = vpack.c.b16 %v3388, %v3386
          %v3501 = vpack.c.b16 %v3389, %v3387
          %v3502 = vpack.c.b16 %v3392, %v3390
          %v3503 = vpack.c.b16 %v3393, %v3391
          %v3504 = vpack.c.b16 %v3396, %v3394
          %v3505 = vpack.c.b16 %v3397, %v3395
          %v3506 = vpack.c.b16 %v3400, %v3398
          %v3507 = vpack.c.b16 %v3401, %v3399
          %v3508 = vpack.c.b16 %v3404, %v3402
          %v3509 = vpack.c.b16 %v3405, %v3403
          %v3510 = vpack.c.b16 %v3408, %v3406
          %v3511 = vpack.c.b16 %v3409, %v3407
          %v3512 = vpack.c.b16 %v3412, %v3410
          %v3513 = vpack.c.b16 %v3413, %v3411
          %v3514 = vpack.c.b16 %v3416, %v3414
          %v3515 = vpack.c.b16 %v3417, %v3415
          %v3516 = vpack.c.b16 %v3420, %v3418
          %v3517 = vpack.c.b16 %v3421, %v3419
          %v3518 = vpack.c.b16 %v3424, %v3422
          %v3519 = vpack.c.b16 %v3425, %v3423
          %v3520 = vpack.c.b16 %v3428, %v3426
          %v3521 = vpack.c.b16 %v3429, %v3427
          %v3522 = vpack.c.b16 %v3432, %v3430
          %v3523 = vpack.c.b16 %v3433, %v3431
          %v3524 = vpack.c.b16 %v3436, %v3434
          %v3525 = vpack.c.b16 %v3437, %v3435
          %v3526 = vpack.c.b16 %v3440, %v3438
          %v3527 = vpack.c.b16 %v3441, %v3439
          %v3528 = vpack.c.b16 %v3444, %v3442
          %v3529 = vpack.c.b16 %v3445, %v3443
          %v3530 = vpack.c.b16 %v3448, %v3446
          %v3531 = vpack.c.b16 %v3449, %v3447
          %v3532 = vpack.c.b16 %v3452, %v3450
          %v3533 = vpack.c.b16 %v3453, %v3451
          %v3534 = vpack.c.b16 %v3456, %v3454
          %v3535 = vpack.c.b16 %v3457, %v3455
          %v3536 = vpack.c.b16 %v3460, %v3458
          %v3537 = vpack.c.b16 %v3461, %v3459
          %v3538 = vpack.c.b16 %v3464, %v3462
          %v3539 = vpack.c.b16 %v3465, %v3463
          %v3540 = vpack.c.b16 %v3468, %v3466
          %v3541 = vpack.c.b16 %v3469, %v3467
          %v3542 = vpack.c.b16 %v3472, %v3470
          %v3543 = vpack.c.b16 %v3473, %v3471
          %v3544 = vpack.c.b16 %v3476, %v3474
          %v3545 = vpack.c.b16 %v3477, %v3475
          %v3546 = vpack.c.b16 %v3480, %v3478
          %v3547 = vpack.c.b16 %v3481, %v3479
          %v3548 = vpack.c.b16 %v3484, %v3482
          %v3549 = vpack.c.b16 %v3485, %v3483
          %v3615 = vperm.slane %v3293, 0
          %v3616 = vperm.slane %v3293, 1
          %3619 = vmatpush.bf16.msra.mxu0 %v3500
          %3620 = vmatpush.bf16.msra.mxu0 %v3498
          %3621 = vmatpush.bf16.msra.mxu0 %v3496
          %3622 = vmatpush.bf16.msra.mxu0 %v3494
          %3623 = vmatpush.bf16.msra.mxu0 %v3492
          %3624 = vmatpush.bf16.msra.mxu0 %v3490
          %3625 = vmatpush.bf16.msra.mxu0 %v3488
          %3626 = vmatpush.bf16.msra.mxu0 %v3486
          %3627 = vmatmul.bf16.gmra.mxu0 %v3225
          %v3628 = vpop.f32.mrf.mxu0
          %v3629 = vadd.f32 %v3615, %v3628
          %v3630 = vpop.f32.mrf.mxu0
          %3631 = vdwg.mxu0
          %3632 = vmatpush.bf16.msra.mxu0 %v3516
          %3633 = vmatpush.bf16.msra.mxu0 %v3514
          %3634 = vmatpush.bf16.msra.mxu0 %v3512
          %3635 = vmatpush.bf16.msra.mxu0 %v3510
          %3636 = vmatpush.bf16.msra.mxu0 %v3508
          %3637 = vmatpush.bf16.msra.mxu0 %v3506
          %3638 = vmatpush.bf16.msra.mxu0 %v3504
          %3639 = vmatpush.bf16.msra.mxu0 %v3502
          %3640 = vmatmul.bf16.gmra.mxu0 %v3226
          %v3641 = vpop.f32.mrf.mxu0
          %v3642 = vadd.f32 %v3629, %v3641
          %v3643 = vpop.f32.mrf.mxu0
          %3644 = vdwg.mxu0
          %3645 = vmatpush.bf16.msra.mxu0 %v3532
          %3646 = vmatpush.bf16.msra.mxu0 %v3530
          %3647 = vmatpush.bf16.msra.mxu0 %v3528
          %3648 = vmatpush.bf16.msra.mxu0 %v3526
          %3649 = vmatpush.bf16.msra.mxu0 %v3524
          %3650 = vmatpush.bf16.msra.mxu0 %v3522
          %3651 = vmatpush.bf16.msra.mxu0 %v3520
          %3652 = vmatpush.bf16.msra.mxu0 %v3518
          %3653 = vmatmul.bf16.gmra.mxu0 %v3227
          %v3654 = vpop.f32.mrf.mxu0
          %v3655 = vadd.f32 %v3642, %v3654
          %v3656 = vpop.f32.mrf.mxu0
          %3657 = vdwg.mxu0
          %3658 = vmatpush.bf16.msra.mxu0 %v3548
          %3659 = vmatpush.bf16.msra.mxu0 %v3546
          %3660 = vmatpush.bf16.msra.mxu0 %v3544
          %3661 = vmatpush.bf16.msra.mxu0 %v3542
          %3662 = vmatpush.bf16.msra.mxu0 %v3540
          %3663 = vmatpush.bf16.msra.mxu0 %v3538
          %3664 = vmatpush.bf16.msra.mxu0 %v3536
          %3665 = vmatpush.bf16.msra.mxu0 %v3534
          %3666 = vmatmul.bf16.gmra.mxu0 %v3228
          %v3667 = vpop.f32.mrf.mxu0
          %v3668 = vadd.f32 %v3655, %v3667
          %v3669 = vpop.f32.mrf.mxu0
          %3670 = vdwg.mxu0
          %3671 = vmatpush.bf16.msra.mxu0 %v3501
          %3672 = vmatpush.bf16.msra.mxu0 %v3499
          %3673 = vmatpush.bf16.msra.mxu0 %v3497
          %3674 = vmatpush.bf16.msra.mxu0 %v3495
          %3675 = vmatpush.bf16.msra.mxu0 %v3493
          %3676 = vmatpush.bf16.msra.mxu0 %v3491
          %3677 = vmatpush.bf16.msra.mxu0 %v3489
          %3678 = vmatpush.bf16.msra.mxu0 %v3487
          %3679 = vmatmul.bf16.gmra.mxu0 %v3225
          %v3680 = vpop.f32.mrf.mxu0
          %v3681 = vadd.f32 %v3616, %v3680
          %v3682 = vpop.f32.mrf.mxu0
          %3683 = vdwg.mxu0
          %3684 = vmatpush.bf16.msra.mxu0 %v3517
          %3685 = vmatpush.bf16.msra.mxu0 %v3515
          %3686 = vmatpush.bf16.msra.mxu0 %v3513
          %3687 = vmatpush.bf16.msra.mxu0 %v3511
          %3688 = vmatpush.bf16.msra.mxu0 %v3509
          %3689 = vmatpush.bf16.msra.mxu0 %v3507
          %3690 = vmatpush.bf16.msra.mxu0 %v3505
          %3691 = vmatpush.bf16.msra.mxu0 %v3503
          %3692 = vmatmul.bf16.gmra.mxu0 %v3226
          %v3693 = vpop.f32.mrf.mxu0
          %v3694 = vadd.f32 %v3681, %v3693
          %v3695 = vpop.f32.mrf.mxu0
          %3696 = vdwg.mxu0
          %3697 = vmatpush.bf16.msra.mxu0 %v3533
          %3698 = vmatpush.bf16.msra.mxu0 %v3531
          %3699 = vmatpush.bf16.msra.mxu0 %v3529
          %3700 = vmatpush.bf16.msra.mxu0 %v3527
          %3701 = vmatpush.bf16.msra.mxu0 %v3525
          %3702 = vmatpush.bf16.msra.mxu0 %v3523
          %3703 = vmatpush.bf16.msra.mxu0 %v3521
          %3704 = vmatpush.bf16.msra.mxu0 %v3519
          %3705 = vmatmul.bf16.gmra.mxu0 %v3227
          %v3706 = vpop.f32.mrf.mxu0
          %v3707 = vadd.f32 %v3694, %v3706
          %v3708 = vpop.f32.mrf.mxu0
          %3709 = vdwg.mxu0
          %3710 = vmatpush.bf16.msra.mxu0 %v3549
          %3711 = vmatpush.bf16.msra.mxu0 %v3547
          %3712 = vmatpush.bf16.msra.mxu0 %v3545
          %3713 = vmatpush.bf16.msra.mxu0 %v3543
          %3714 = vmatpush.bf16.msra.mxu0 %v3541
          %3715 = vmatpush.bf16.msra.mxu0 %v3539
          %3716 = vmatpush.bf16.msra.mxu0 %v3537
          %3717 = vmatpush.bf16.msra.mxu0 %v3535
          %3718 = vmatmul.bf16.gmra.mxu0 %v3228
          %v3719 = vpop.f32.mrf.mxu0
          %v3720 = vadd.f32 %v3707, %v3719
          %v3721 = vpop.f32.mrf.mxu0
          %3722 = vdwg.mxu0
          %v3723 = vmax.f32 %v3668, 0.0
          %v3724 = vmax.f32 %v3720, 0.0
          %v3725 = vld [vmem:[#allocation11] sm:$0xff]
          %v3726 = vld [vmem:[#allocation11 + $0x8] sm:$0xff]
          %v3727 = vld [vmem:[#allocation11 + $0x10] sm:$0xff]
          %v3728 = vld [vmem:[#allocation11 + $0x18] sm:$0xff]
          %v3729 = vld [vmem:[#allocation11 + $0x20] sm:$0xff]
          %v3730 = vld [vmem:[#allocation11 + $0x28] sm:$0xff]
          %v3731 = vld [vmem:[#allocation11 + $0x30] sm:$0xff]
          %v3732 = vld [vmem:[#allocation11 + $0x38] sm:$0xff]
          %v3733 = vld [vmem:[#allocation11 + $0x40] sm:$0xff]
          %v3734 = vld [vmem:[#allocation11 + $0x48] sm:$0xff]
          %v3735 = vld [vmem:[#allocation11 + $0x50] sm:$0xff]
          %v3736 = vld [vmem:[#allocation11 + $0x58] sm:$0xff]
          %v3737 = vld [vmem:[#allocation11 + $0x60] sm:$0xff]
          %v3738 = vld [vmem:[#allocation11 + $0x68] sm:$0xff]
          %v3739 = vld [vmem:[#allocation11 + $0x70] sm:$0xff]
          %v3740 = vld [vmem:[#allocation11 + $0x78] sm:$0xff]
          %v3741 = vld [vmem:[#allocation11 + $0x80] sm:$0xff]
          %v3742 = vld [vmem:[#allocation11 + $0x88] sm:$0xff]
          %v3743 = vld [vmem:[#allocation11 + $0x90] sm:$0xff]
          %v3744 = vld [vmem:[#allocation11 + $0x98] sm:$0xff]
          %v3745 = vld [vmem:[#allocation11 + $0xa0] sm:$0xff]
          %v3746 = vld [vmem:[#allocation11 + $0xa8] sm:$0xff]
          %v3747 = vld [vmem:[#allocation11 + $0xb0] sm:$0xff]
          %v3748 = vld [vmem:[#allocation11 + $0xb8] sm:$0xff]
          %v3749 = vld [vmem:[#allocation11 + $0xc0] sm:$0xff]
          %v3750 = vld [vmem:[#allocation11 + $0xc8] sm:$0xff]
          %v3751 = vld [vmem:[#allocation11 + $0xd0] sm:$0xff]
          %v3752 = vld [vmem:[#allocation11 + $0xd8] sm:$0xff]
          %v3753 = vld [vmem:[#allocation11 + $0xe0] sm:$0xff]
          %v3754 = vld [vmem:[#allocation11 + $0xe8] sm:$0xff]
          %v3755 = vld [vmem:[#allocation11 + $0xf0] sm:$0xff]
          %v3756 = vld [vmem:[#allocation11 + $0xf8] sm:$0xff]
          %v3757 = vld [vmem:[%s12] sm:$0x1]
          %3758 = vmatpush.msra.mxu0 %v3740
          %3759 = vmatpush.msra.mxu0 %v3739
          %3760 = vmatpush.msra.mxu0 %v3738
          %3761 = vmatpush.msra.mxu0 %v3737
          %3762 = vmatpush.msra.mxu0 %v3736
          %3763 = vmatpush.msra.mxu0 %v3735
          %3764 = vmatpush.msra.mxu0 %v3734
          %3765 = vmatpush.msra.mxu0 %v3733
          %3766 = vmatpush.msra.mxu0 %v3732
          %3767 = vmatpush.msra.mxu0 %v3731
          %3768 = vmatpush.msra.mxu0 %v3730
          %3769 = vmatpush.msra.mxu0 %v3729
          %3770 = vmatpush.msra.mxu0 %v3728
          %3771 = vmatpush.msra.mxu0 %v3727
          %3772 = vmatpush.msra.mxu0 %v3726
          %3773 = vmatpush.msra.mxu0 %v3725
          %3774 = vmatmul.f32.gmra.mxu0 %v3723
          %v3775 = vpop.f32.mrf.mxu0
          %v3776 = vadd.f32 %v3757, %v3775
          %3777 = vdwg.mxu0
          %3778 = vmatpush.msra.mxu0 %v3756
          %3779 = vmatpush.msra.mxu0 %v3755
          %3780 = vmatpush.msra.mxu0 %v3754
          %3781 = vmatpush.msra.mxu0 %v3753
          %3782 = vmatpush.msra.mxu0 %v3752
          %3783 = vmatpush.msra.mxu0 %v3751
          %3784 = vmatpush.msra.mxu0 %v3750
          %3785 = vmatpush.msra.mxu0 %v3749
          %3786 = vmatpush.msra.mxu0 %v3748
          %3787 = vmatpush.msra.mxu0 %v3747
          %3788 = vmatpush.msra.mxu0 %v3746
          %3789 = vmatpush.msra.mxu0 %v3745
          %3790 = vmatpush.msra.mxu0 %v3744
          %3791 = vmatpush.msra.mxu0 %v3743
          %3792 = vmatpush.msra.mxu0 %v3742
          %3793 = vmatpush.msra.mxu0 %v3741
          %3794 = vmatmul.f32.gmra.mxu0 %v3724
          %v3795 = vpop.f32.mrf.mxu0
          %v3796 = vadd.f32 %v3776, %v3795
          %3797 = vdwg.mxu0
          %3798 = vst [vmem:[%s536] sm:$0x1] %v3796
        $region100: #{tpu_custom_call.1} parent=71 // pred_fallthru
          _
        %s3799 = sand.u32 %s330, 1
        %s3800 = scalar_lea.sflag [#allocation5], %s3799
        %s3801 = sand.u32 %s330, 1
        %s3802 = scalar_lea.vmem [#allocation12], %s3801
        // Predicated region
        $region101: #{tpu_custom_call.1} parent=71 // pred_check
          %p3803 = pneg %p340
        $region102: #{tpu_custom_call.1} parent=71 // pred_check_branch
          %3805 = sbr.rel (%p3803) target = $region104
        $region103: #{tpu_custom_call.1} parent=71 // pred_region
          %3807 = vsyncadd %s3800, 0
          %s3808 = scalar_lea.hbm %s13, %s34
          %s3810 = sshll.u32 %s3802, 4
          %s3811 = int_to_ptr.vmem [resolvable:$true] %s3810
          %s3812 = sshll.u32 %s3808, 4
          %s3813 = int_to_ptr.hbm [resolvable:$true] %s3812
          %3815 = dma.vmem_to_hbm [thread:$0]  %s3811, 16, %s3813, %s3800
        $region104: #{tpu_custom_call.1} parent=71 // pred_fallthru
          _
      $region72: #{tpu_custom_call.1} parent=5 // pred_fallthru
        _
      %p3816 = scmp.le.s32.totalorder 2, %s25
      // Predicated region
      $region105: #{tpu_custom_call.1} parent=5 // pred_check
        %p3817 = pneg %p3816
      $region106: #{tpu_custom_call.1} parent=5 // pred_check_branch
        %3819 = sbr.rel (%p3817) target = $region108
      $region107: #{tpu_custom_call.1} parent=5 // pred_region
        %s3820 = ssub.s32 %s25, 2
        // Predicated region
        $region109: #{tpu_custom_call.1} parent=107 // pred_check
          %p3821 = pneg %p346
        $region110: #{tpu_custom_call.1} parent=107 // pred_check_branch
          %3823 = sbr.rel (%p3821) target = $region112
        $region111: #{tpu_custom_call.1} parent=107 // pred_region
          %s3824 = sand.u32 %s331, 1
          %s3825 = scalar_lea.sflag [#allocation5], %s3824
          %s3826 = sand.u32 %s331, 1
          %s3827 = scalar_lea.vmem [#allocation12], %s3826
          %3829 = dma.done %s3825, 16
        $region112: #{tpu_custom_call.1} parent=107 // pred_fallthru
          _
      $region108: #{tpu_custom_call.1} parent=5 // pred_fallthru
        _
    $region6: #{tpu_custom_call.1} parent=1 // loop_footer
      %s29 = sadd.s32 1, %s25
    $region7: #{tpu_custom_call.1} parent=1 // loop_footer_branch
      %24 = sbr.rel target = $region3
    $region8: #{tpu_custom_call.1} parent=1 // loop_exit
      _
    %3830 = vsyncpa [#allocation4], 1
    %s3831 = scalar_lea.sflag [#allocation4], 1
    %3832 = vsyncpa %s3831, 1
    %3833 = vsyncpa [#allocation7], 1
    %3834 = vsyncpa [#allocation10], 1
    %3835 = vsyncpa [#allocation5], 1
    %s3836 = scalar_lea.sflag [#allocation5], 1
    %3837 = vsyncpa %s3836, 1

</llo_original>
